<compile_context>
chip_gen: v7x
topology: tpu7x:2x2x1
jax: 0.10.0
libtpu: 0.0.40
codegen_flags: <defaults>
</compile_context>

<pallas_src>
import math

import numpy as np
import jax
import jax.numpy as jnp
from jax import lax
from jax.experimental import pallas as pl
from jax.experimental.pallas import tpu as pltpu

# ---------------- configuration (small synthetic sizes) ----------------
BATCH = 2
SEQ_LEN = 32          # input_length
INPUT_DIM = 32        # per-position input feature dim
ENC_DIM = 64          # encoder_dim (d_model)
NUM_HEADS = 4
D_HEAD = ENC_DIM // NUM_HEADS
NUM_LAYERS = 2
KSIZE = 5
OUT_DIM = 4

HT = NUM_HEADS * SEQ_LEN                 # 128 (head, query) rows on sublanes
NBITS = (SEQ_LEN - 1).bit_length()       # 5 bits for the per-row shift amount
QKV_STRIDE = 128                          # lane-aligned column group per tensor

_VMEM_LIMIT = 32 * 1024 * 1024


def _swish(a):
    return a * (1.0 / (1.0 + jnp.exp(-a)))


def _lrelu(a):
    return jnp.where(a > 0, a, 0.1 * a)


# ---------------- fused encoder kernel ----------------
def encoder_kernel(x_ref, ipw1, ipb1, ipw2, ipb2, hmask_ref, sbits_ref,
                   lng, lnb, wqkv, bqkv, u_ref, vb_ref, penc_ref, wo_ref,
                   bo_ref, fing, finb, o_ref, h_ref):
    T, D, H = SEQ_LEN, ENC_DIM, NUM_HEADS
    f32, bf16 = jnp.float32, jnp.bfloat16
    l = pl.program_id(1)

    # ---- l == 0: input-projection MLP (Linear -> Swish -> Linear -> Swish) ----
    @pl.when(l == 0)
    def _():
        xb = x_ref[0].astype(bf16)                               # (T, INPUT_DIM)
        t = jnp.dot(xb, ipw1[...], preferred_element_type=f32) + ipb1[...]
        t = _swish(t)
        t = jnp.dot(t.astype(bf16), ipw2[...], preferred_element_type=f32) + ipb2[...]
        h_ref[...] = _swish(t)

    h = h_ref[...]                                               # (T, D) residual stream

    # ---- pre layer-norm (f32) ----
    mean = jnp.mean(h, axis=-1, keepdims=True)
    var = jnp.mean(jnp.square(h - mean), axis=-1, keepdims=True)
    xn = (h - mean) * lax.rsqrt(var + 1e-5) * lng[0] + lnb[0]

    # ---- fused QKV projection, each output group 128-lane aligned ----
    proj = jnp.dot(xn.astype(bf16), wqkv[0], preferred_element_type=f32) + bqkv[0]
    q = proj[:, 0:D]
    k = proj[:, QKV_STRIDE:QKV_STRIDE + D]
    v = proj[:, 2 * QKV_STRIDE:2 * QKV_STRIDE + D]

    # ---- heads-on-sublanes layout: (H*T, D) query stacks masked per head ----
    hmask = hmask_ref[...]                                       # (HT, D) bf16
    qu = jnp.concatenate([(q + u_ref[0]).astype(bf16)] * H, axis=0) * hmask
    qv = jnp.concatenate([(q + vb_ref[0]).astype(bf16)] * H, axis=0) * hmask
    k16 = k.astype(bf16)
    v16 = v.astype(bf16)

    dn = (((1,), (1,)), ((), ()))                                # contract last dims
    content = lax.dot_general(qu, k16, dn, preferred_element_type=f32)        # (HT, T)
    pos = lax.dot_general(qv, penc_ref[0], dn, preferred_element_type=f32)    # (HT, T)

    # ---- relative shift (pad/view trick), exact, fully in-kernel ----
    # Per (head, query-row i): out[c<=i] = pos[i, T-1-i+c]; out[i+1] = 0;
    # out[c>=i+2] = pos[i+1, c-i-2].  Build W[row] = [pos[row], 0,
    # pos[row+1, :T-2], 0] (width 2T) and left-rotate row `row` by
    # (T-1 - row%T) via log2(T) constant rotations selected per row with
    # host-precomputed bit masks.  Head-boundary "leak" in pos_up is harmless:
    # rows with i == T-1 rotate by 0 and never read the spill region.
    pos_up = jnp.concatenate([pos[1:], jnp.zeros((1, T), f32)], axis=0)
    w_buf = jnp.concatenate(
        [pos,
         jnp.zeros((HT, 1), f32),
         pos_up[:, :T - 2],
         jnp.zeros((HT, 1), f32)], axis=-1)                      # (HT, 2T)
    for bit in range(NBITS):
        s = 1 << bit
        rolled = jnp.concatenate([w_buf[:, s:], w_buf[:, :s]], axis=-1)
        take = sbits_ref[bit] > 0.0                              # (HT, 1) bool
        w_buf = jnp.where(take, rolled, w_buf)
    p_shift = w_buf[:, :T]                                       # (HT, T)

    # ---- softmax (plain per-row) + attention-weighted value ----
    score = (content + p_shift) * (1.0 / math.sqrt(D))
    m = jnp.max(score, axis=-1, keepdims=True)
    e = jnp.exp(score - m)
    attn = (e * pl.reciprocal(jnp.sum(e, axis=-1, keepdims=True),
                              approx=True)).astype(bf16)         # (HT, T)

    ctx = jnp.zeros((T, D), f32)
    for hh in range(H):
        v_h = v16 * hmask[hh * T:hh * T + 1, :]                  # zero non-head cols
        ctx = ctx + jnp.dot(attn[hh * T:(hh + 1) * T, :], v_h,
                            preferred_element_type=f32)          # (T, D)

    # ---- out-proj + residual (ResidualConnectionModule: module(x) + x) ----
    out = jnp.dot(ctx.astype(bf16), wo_ref[0], preferred_element_type=f32) + bo_ref[0]
    hnew = out + h
    h_ref[...] = hnew

    # ---- l == last: final layer norm, write output ----
    @pl.when(l == pl.num_programs(1) - 1)
    def _():
        m2 = jnp.mean(hnew, axis=-1, keepdims=True)
        v2 = jnp.mean(jnp.square(hnew - m2), axis=-1, keepdims=True)
        o_ref[0] = (hnew - m2) * lax.rsqrt(v2 + 1e-5) * fing[...] + finb[...]


def encoder_forward(x, fused):
    B, T, _ = x.shape
    D = ENC_DIM
    L = NUM_LAYERS

    def full(shape):
        return pl.BlockSpec(shape, lambda b, l: (0,) * len(shape))

    def per_layer(shape):
        return pl.BlockSpec(shape, lambda b, l: (l,) + (0,) * (len(shape) - 1))

    def per_batch(shape):
        return pl.BlockSpec(shape, lambda b, l: (b,) + (0,) * (len(shape) - 1))

    return pl.pallas_call(
        encoder_kernel,
        out_shape=jax.ShapeDtypeStruct((B, T, D), jnp.float32),
        grid=(B, L),
        in_specs=[
            per_batch((1, T, INPUT_DIM)),                         # x
            full((INPUT_DIM, 2 * D)), full((1, 2 * D)),           # input MLP
            full((2 * D, D)), full((1, D)),
            full((HT, D)),                                        # head mask
            full((NBITS, HT, 1)),                                 # shift bit masks
            per_layer((1, 1, D)), per_layer((1, 1, D)),           # ln g/b
            per_layer((1, D, 3 * QKV_STRIDE)),                    # fused QKV (padded)
            per_layer((1, 1, 3 * QKV_STRIDE)),
            per_layer((1, 1, D)), per_layer((1, 1, D)),           # u / v biases
            per_layer((1, T, D)),                                 # pe @ wp (hoisted)
            per_layer((1, D, D)), per_layer((1, 1, D)),           # wo / bo
            full((1, D)), full((1, D)),                           # final LN
        ],
        out_specs=per_batch((1, T, D)),
        scratch_shapes=[pltpu.VMEM((T, D), jnp.float32)],
        compiler_params=pltpu.CompilerParams(
            dimension_semantics=("parallel", "arbitrary"),
            vmem_limit_bytes=_VMEM_LIMIT),
    )(x, fused['ip_w1'], fused['ip_b1'], fused['ip_w2'], fused['ip_b2'],
      fused['head_mask'], fused['shift_bits'],
      fused['ln_g'], fused['ln_b'], fused['w_qkv'], fused['b_qkv'],
      fused['u'], fused['v'], fused['p_enc'], fused['wo'], fused['bo'],
      fused['fin_g'], fused['fin_b'])


# ---------------- conv + avg-pool stages ----------------
def conv_stage_kernel(pp_ref, w_ref, b_ref, o_ref):
    # conv(+bias)+avgpool folded into ONE matmul on pre-pooled im2col patches.
    # Batch lives on the lane axis (K, B*Q) -> lane-dense stores, single launch.
    o_ref[...] = (jnp.dot(w_ref[...], pp_ref[...],
                          preferred_element_type=jnp.float32) + b_ref[...])


def conv_pool_stage(pp, w_r, b_c):
    K, Q = pp.shape
    Cout = w_r.shape[0]
    return pl.pallas_call(
        conv_stage_kernel,
        out_shape=jax.ShapeDtypeStruct((Cout, Q), jnp.float32),
        grid=(1,),
        in_specs=[pl.BlockSpec((K, Q), lambda i: (0, 0)),
                  pl.BlockSpec((Cout, K), lambda i: (0, 0)),
                  pl.BlockSpec((Cout, 1), lambda i: (0, 0))],
        out_specs=pl.BlockSpec((Cout, Q), lambda i: (0, 0)),
        compiler_params=pltpu.CompilerParams(
            dimension_semantics=("arbitrary",), vmem_limit_bytes=_VMEM_LIMIT),
    )(pp, w_r, b_c)


def conv_head_kernel(pp_ref, w_ref, b_ref, hw1, hb1, hw2, hb2, hw3, hb3, o_ref):
    # last conv+pool stage (Cout=1) fused with the batched output MLP head
    f32, bf16 = jnp.float32, jnp.bfloat16
    flat_all = (jnp.dot(w_ref[...], pp_ref[...],
                        preferred_element_type=f32) + b_ref[...])   # (1, B*Q3)
    q3 = flat_all.shape[-1] // BATCH
    flat = jnp.concatenate(
        [flat_all[:, b * q3:(b + 1) * q3] for b in range(BATCH)], axis=0)  # (B, Q3)
    h1 = _lrelu(jnp.dot(flat.astype(bf16), hw1[...],
                        preferred_element_type=f32) + hb1[...])
    h2 = _lrelu(jnp.dot(h1.astype(bf16), hw2[...],
                        preferred_element_type=f32) + hb2[...])
    o_ref[...] = jnp.dot(h2.astype(bf16), hw3[...],
                         preferred_element_type=f32) + hb3[...]


def conv_head_stage(pp, w_r, b_c, hw1, hb1, hw2, hb2, hw3, hb3):
    K, Q = pp.shape
    return pl.pallas_call(
        conv_head_kernel,
        out_shape=jax.ShapeDtypeStruct((BATCH, OUT_DIM), jnp.float32),
        grid=(1,),
        in_specs=[pl.BlockSpec((K, Q), lambda i: (0, 0)),
                  pl.BlockSpec((1, K), lambda i: (0, 0)),
                  pl.BlockSpec((1, 1), lambda i: (0, 0)),
                  pl.BlockSpec(hw1.shape, lambda i: (0, 0)),
                  pl.BlockSpec(hb1.shape, lambda i: (0, 0)),
                  pl.BlockSpec(hw2.shape, lambda i: (0, 0)),
                  pl.BlockSpec(hb2.shape, lambda i: (0, 0)),
                  pl.BlockSpec(hw3.shape, lambda i: (0, 0)),
                  pl.BlockSpec(hb3.shape, lambda i: (0, 0))],
        out_specs=pl.BlockSpec((BATCH, OUT_DIM), lambda i: (0, 0)),
        compiler_params=pltpu.CompilerParams(
            dimension_semantics=("arbitrary",), vmem_limit_bytes=_VMEM_LIMIT),
    )(pp, w_r, b_c, hw1, hb1, hw2, hb2, hw3, hb3)


# ---------------- JAX glue ----------------
def positional_encoding(length, d_model):
    pe = np.zeros((length, d_model), np.float32)
    position = np.arange(length, dtype=np.float32)[:, None]
    div_term = np.exp(np.arange(0, d_model, 2, dtype=np.float32)
                      * -(math.log(10000.0) / d_model))
    pe[:, 0::2] = np.sin(position * div_term)
    pe[:, 1::2] = np.cos(position * div_term)
    return jnp.asarray(pe)


# TODO(synk): im2col / 2x2 pool-window extraction between conv stages stays in
# plain JAX (pure data movement; no clean single-kernel Pallas equivalent
# without unsupported in-kernel reshapes).
def pooled_patches(fm, ksize, pad):
    """im2col patches pre-averaged over each 2x2 pool window, laid out (K, B*Q).

    avg_pool(conv(x) + b) == conv(avg-pooled patches) + b (both linear), so
    each conv+pool stage reduces to a single matmul inside the kernel.
    """
    B, C, H, W = fm.shape
    xp = jnp.pad(fm, ((0, 0), (0, 0), (pad, pad), (pad, pad)))
    Ho = H + 2 * pad - ksize + 1
    Wo = W + 2 * pad - ksize + 1
    cols = [xp[:, :, ki:ki + Ho, kj:kj + Wo]
            for ki in range(ksize) for kj in range(ksize)]
    pt = jnp.stack(cols, axis=2).reshape(B, C * ksize * ksize, Ho, Wo)
    Hp, Wp = Ho // 2, Wo // 2
    pp = 0.25 * (pt[:, :, 0:2 * Hp:2, 0:2 * Wp:2]
                 + pt[:, :, 0:2 * Hp:2, 1:2 * Wp:2]
                 + pt[:, :, 1:2 * Hp:2, 0:2 * Wp:2]
                 + pt[:, :, 1:2 * Hp:2, 1:2 * Wp:2])
    pp = pp.reshape(B, C * ksize * ksize, Hp * Wp)
    pp = pp.transpose(1, 0, 2).reshape(C * ksize * ksize, B * Hp * Wp)
    return pp.astype(jnp.bfloat16), Hp, Wp


def relative_shift(ps):
    # used only by the pure-JAX reference
    Bn, Hn, T1, T2 = ps.shape
    zeros = jnp.zeros((Bn, Hn, T1, 1), ps.dtype)
    padded = jnp.concatenate([zeros, ps], axis=-1)
    padded = padded.reshape(Bn, Hn, T2 + 1, T1)
    return padded[:, :, 1:].reshape(Bn, Hn, T1, T2)


# ---------------- full forward (Pallas) ----------------
def forward(x, fused):
    B = x.shape[0]
    hn = encoder_forward(x, fused)                              # (B, T, D)
    fm = hn.reshape(B, 1, SEQ_LEN, ENC_DIM)                     # NCHW, C=1
    for i in range(2):
        pp, Hp, Wp = pooled_patches(fm, KSIZE, 1)
        out = conv_pool_stage(pp, fused['conv_wr'][i], fused['conv_bc'][i])
        Cout = out.shape[0]
        fm = out.reshape(Cout, B, Hp, Wp).transpose(1, 0, 2, 3)
    pp, _, _ = pooled_patches(fm, KSIZE, 1)
    out = conv_head_stage(pp, fused['conv_wr'][2], fused['conv_bc'][2],
                          fused['h_w1'], fused['h_b1'],
                          fused['h_w2'], fused['h_b2'],
                          fused['h_w3'], fused['h_b3'])
    return out                                                   # (B, OUT_DIM)


# ---------------- deterministic parameter init ----------------
def build_params(key):
    ks = iter(jax.random.split(key, 64))

    def xavier(shape):
        lim = math.sqrt(6.0 / (shape[0] + shape[-1]))
        return jax.random.uniform(next(ks), shape, jnp.float32, -lim, lim)

    def zeros(shape):
        return jnp.zeros(shape, jnp.float32)

    co_h = (((SEQ_LEN + 2 - KSIZE + 1) // 2 + 2 - KSIZE + 1) // 2
            + 2 - KSIZE + 1) // 2
    co_w = (((ENC_DIM + 2 - KSIZE + 1) // 2 + 2 - KSIZE + 1) // 2
            + 2 - KSIZE + 1) // 2
    conv_out_dim = co_h * co_w

    params = {
        'ip_w1': xavier((INPUT_DIM, 2 * ENC_DIM)), 'ip_b1': zeros((1, 2 * ENC_DIM)),
        'ip_w2': xavier((2 * ENC_DIM, ENC_DIM)), 'ip_b2': zeros((1, ENC_DIM)),
        'fin_g': jnp.ones((1, ENC_DIM), jnp.float32), 'fin_b': zeros((1, ENC_DIM)),
        'layers': [], 'conv_w': [], 'conv_b': [],
        'h_w1': xavier((conv_out_dim, 64)), 'h_b1': zeros((1, 64)),
        'h_w2': xavier((64, 32)), 'h_b2': zeros((1, 32)),
        'h_w3': xavier((32, OUT_DIM)), 'h_b3': zeros((1, OUT_DIM)),
    }
    for _ in range(NUM_LAYERS):
        params['layers'].append({
            'ln_g': jnp.ones((1, ENC_DIM), jnp.float32), 'ln_b': zeros((1, ENC_DIM)),
            'wq': xavier((ENC_DIM, ENC_DIM)), 'bq': zeros((1, ENC_DIM)),
            'wk': xavier((ENC_DIM, ENC_DIM)), 'bk': zeros((1, ENC_DIM)),
            'wv': xavier((ENC_DIM, ENC_DIM)), 'bv': zeros((1, ENC_DIM)),
            'wp': xavier((ENC_DIM, ENC_DIM)),
            'u': 0.1 * jax.random.normal(next(ks), (NUM_HEADS, 1, D_HEAD), jnp.float32),
            'v': 0.1 * jax.random.normal(next(ks), (NUM_HEADS, 1, D_HEAD), jnp.float32),
            'wo': xavier((ENC_DIM, ENC_DIM)), 'bo': zeros((1, ENC_DIM)),
        })
    for s in [(16, 1, KSIZE, KSIZE), (16, 16, KSIZE, KSIZE), (1, 16, KSIZE, KSIZE)]:
        scale = 1.0 / math.sqrt(s[1] * s[2] * s[3])
        params['conv_w'].append(scale * jax.random.normal(next(ks), s, jnp.float32))
        params['conv_b'].append(
            0.01 * jax.random.normal(next(ks), (1, s[0]), jnp.float32))
    return params


def fuse_params(p, pe):
    """Stack per-layer weights, pad QKV to lane-aligned groups, pre-cast bf16,
    hoist pe @ wp, and precompute the head mask / shift-bit constants."""
    bf16 = jnp.bfloat16
    D, T, H, dh = ENC_DIM, SEQ_LEN, NUM_HEADS, D_HEAD
    zcol = jnp.zeros((D, QKV_STRIDE - D), jnp.float32)
    zb = jnp.zeros((1, QKV_STRIDE - D), jnp.float32)

    def stack(fn):
        return jnp.stack([fn(lp) for lp in p['layers']], axis=0)

    head_mask = np.zeros((HT, D), np.float32)
    for h in range(H):
        head_mask[h * T:(h + 1) * T, h * dh:(h + 1) * dh] = 1.0

    rows = np.arange(HT)
    amount = (T - 1) - (rows % T)
    shift_bits = np.zeros((NBITS, HT, 1), np.float32)
    for b in range(NBITS):
        shift_bits[b, :, 0] = ((amount >> b) & 1).astype(np.float32)

    return {
        'ip_w1': p['ip_w1'].astype(bf16), 'ip_b1': p['ip_b1'],
        'ip_w2': p['ip_w2'].astype(bf16), 'ip_b2': p['ip_b2'],
        'head_mask': jnp.asarray(head_mask).astype(bf16),
        'shift_bits': jnp.asarray(shift_bits),
        'ln_g': stack(lambda lp: lp['ln_g']),
        'ln_b': stack(lambda lp: lp['ln_b']),
        'w_qkv': stack(lambda lp: jnp.concatenate(
            [lp['wq'], zcol, lp['wk'], zcol, lp['wv'], zcol], axis=1)).astype(bf16),
        'b_qkv': stack(lambda lp: jnp.concatenate(
            [lp['bq'], zb, lp['bk'], zb, lp['bv'], zb], axis=1)),
        'u': stack(lambda lp: lp['u'][:, 0, :].reshape(1, D)),
        'v': stack(lambda lp: lp['v'][:, 0, :].reshape(1, D)),
        'p_enc': stack(lambda lp: pe @ lp['wp']).astype(bf16),
        'wo': stack(lambda lp: lp['wo']).astype(bf16),
        'bo': stack(lambda lp: lp['bo']),
        'fin_g': p['fin_g'], 'fin_b': p['fin_b'],
        'conv_wr': [w.reshape(w.shape[0], -1).astype(bf16) for w in p['conv_w']],
        'conv_bc': [b.reshape(-1, 1) for b in p['conv_b']],
        'h_w1': p['h_w1'].astype(bf16), 'h_b1': p['h_b1'],
        'h_w2': p['h_w2'].astype(bf16), 'h_b2': p['h_b2'],
        'h_w3': p['h_w3'].astype(bf16), 'h_b3': p['h_b3'],
    }


# ---------------- pure-JAX reference (for correctness check) ----------------
def reference_forward(x, params, pe):
    sig = lambda a: 1.0 / (1.0 + jnp.exp(-a))
    lrelu = lambda a: jnp.where(a > 0, a, 0.1 * a)

    def ln(a, g, b):
        mean = jnp.mean(a, -1, keepdims=True)
        var = jnp.mean(jnp.square(a - mean), -1, keepdims=True)
        return (a - mean) * lax.rsqrt(var + 1e-5) * g + b

    h = x @ params['ip_w1'] + params['ip_b1']
    h = h * sig(h)
    h = h @ params['ip_w2'] + params['ip_b2']
    h = h * sig(h)

    Bn, Tn, Dn = h.shape
    for lp in params['layers']:
        xn = ln(h, lp['ln_g'], lp['ln_b'])
        q = xn @ lp['wq'] + lp['bq']
        k = xn @ lp['wk'] + lp['bk']
        v = xn @ lp['wv'] + lp['bv']
        p = pe @ lp['wp']
        q4 = q.reshape(Bn, Tn, NUM_HEADS, D_HEAD)
        k4 = k.reshape(Bn, Tn, NUM_HEADS, D_HEAD).transpose(0, 2, 1, 3)
        v4 = v.reshape(Bn, Tn, NUM_HEADS, D_HEAD).transpose(0, 2, 1, 3)
        p4 = jnp.broadcast_to(p[None], (Bn, Tn, Dn)).reshape(Bn, Tn, NUM_HEADS, D_HEAD)
        u = lp['u'][:, 0, :]
        vb = lp['v'][:, 0, :]
        content = jnp.matmul((q4 + u).transpose(0, 2, 1, 3), k4.transpose(0, 1, 3, 2))
        pos = jnp.matmul((q4 + vb).transpose(0, 2, 1, 3), p4.transpose(0, 2, 3, 1))
        pos = relative_shift(pos)
        score = (content + pos) / math.sqrt(Dn)
        attn = jax.nn.softmax(score, axis=-1)
        ctx = jnp.matmul(attn, v4).transpose(0, 2, 1, 3).reshape(Bn, Tn, Dn)
        h = ctx @ lp['wo'] + lp['bo'] + h          # ResidualConnectionModule

    hn = ln(h, params['fin_g'], params['fin_b'])
    fm = hn[:, None]
    for i in range(3):
        w = params['conv_w'][i]
        b = params['conv_b'][i]
        fm = lax.conv_general_dilated(fm, w, (1, 1), ((1, 1), (1, 1)),
                                      dimension_numbers=('NCHW', 'OIHW', 'NCHW'))
        fm = fm + b.reshape(1, -1, 1, 1)
        fm = lax.reduce_window(fm, 0.0, lax.add, (1, 1, 2, 2), (1, 1, 2, 2),
                               'VALID') / 4.0
    flat = fm.reshape(Bn, -1)
    o = lrelu(flat @ params['h_w1'] + params['h_b1'])
    o = lrelu(o @ params['h_w2'] + params['h_b2'])
    return o @ params['h_w3'] + params['h_b3']


if __name__ == "__main__":
    root = jax.random.PRNGKey(0)
    k_in, k_par = jax.random.split(root)
    params = build_params(k_par)
    pe = positional_encoding(SEQ_LEN, ENC_DIM)
    fused = fuse_params(params, pe)

    x = jax.random.normal(k_in, (BATCH, SEQ_LEN, INPUT_DIM), jnp.float32)

    fwd = jax.jit(forward)
    out = jax.block_until_ready(fwd(x, fused))
    assert out.shape == (BATCH, OUT_DIM), out.shape

    with jax.default_matmul_precision("highest"):
        ref = jax.block_until_ready(reference_forward(x, params, pe))
    # bf16 MXU operands with f32 accumulation -> slightly looser tolerance.
    np.testing.assert_allclose(np.asarray(out), np.asarray(ref),
                               rtol=2e-2, atol=2e-2)
    print("KERNEL_OK")
</pallas_src>

<mosaic_0001>
module attributes {stable_mosaic.version = 11 : i64} {
  func.func @encoder_kernel(%arg0: i32, %arg1: i32, %arg2: memref<1x32x32xf32, #tpu.memory_space<vmem>>, %arg3: memref<32x128xbf16, #tpu.memory_space<vmem>>, %arg4: memref<1x128xf32, #tpu.memory_space<vmem>>, %arg5: memref<128x64xbf16, #tpu.memory_space<vmem>>, %arg6: memref<1x64xf32, #tpu.memory_space<vmem>>, %arg7: memref<128x64xbf16, #tpu.memory_space<vmem>>, %arg8: memref<5x128x1xf32, #tpu.memory_space<vmem>>, %arg9: memref<1x1x64xf32, #tpu.memory_space<vmem>>, %arg10: memref<1x1x64xf32, #tpu.memory_space<vmem>>, %arg11: memref<1x64x384xbf16, #tpu.memory_space<vmem>>, %arg12: memref<1x1x384xf32, #tpu.memory_space<vmem>>, %arg13: memref<1x1x64xf32, #tpu.memory_space<vmem>>, %arg14: memref<1x1x64xf32, #tpu.memory_space<vmem>>, %arg15: memref<1x32x64xbf16, #tpu.memory_space<vmem>>, %arg16: memref<1x64x64xbf16, #tpu.memory_space<vmem>>, %arg17: memref<1x1x64xf32, #tpu.memory_space<vmem>>, %arg18: memref<1x64xf32, #tpu.memory_space<vmem>>, %arg19: memref<1x64xf32, #tpu.memory_space<vmem>>, %arg20: memref<1x32x64xf32, #tpu.memory_space<vmem>>, %arg21: memref<32x64xf32, #tpu.memory_space<vmem>>) attributes {dimension_semantics = [#tpu.dimension_semantics<parallel>, #tpu.dimension_semantics<arbitrary>], iteration_bounds = array<i64: 2, 2>, scalar_prefetch = 0 : i64, scratch_operands = 1 : i64, tpu.core_type = #tpu.core_type<tc>, window_params = [{transform_indices = @transform_0, window_bounds = array<i64: 1, 32, 32>}, {pipeline_mode = #tpu.pipeline_mode<synchronous>, transform_indices = @transform_1, window_bounds = array<i64: 32, 128>}, {pipeline_mode = #tpu.pipeline_mode<synchronous>, transform_indices = @transform_2, window_bounds = array<i64: 1, 128>}, {pipeline_mode = #tpu.pipeline_mode<synchronous>, transform_indices = @transform_3, window_bounds = array<i64: 128, 64>}, {pipeline_mode = #tpu.pipeline_mode<synchronous>, transform_indices = @transform_4, window_bounds = array<i64: 1, 64>}, {pipeline_mode = #tpu.pipeline_mode<synchronous>, transform_indices = @transform_5, window_bounds = array<i64: 128, 64>}, {pipeline_mode = #tpu.pipeline_mode<synchronous>, transform_indices = @transform_6, window_bounds = array<i64: 5, 128, 1>}, {transform_indices = @transform_7, window_bounds = array<i64: 1, 1, 64>}, {transform_indices = @transform_8, window_bounds = array<i64: 1, 1, 64>}, {transform_indices = @transform_9, window_bounds = array<i64: 1, 64, 384>}, {transform_indices = @transform_10, window_bounds = array<i64: 1, 1, 384>}, {transform_indices = @transform_11, window_bounds = array<i64: 1, 1, 64>}, {transform_indices = @transform_12, window_bounds = array<i64: 1, 1, 64>}, {transform_indices = @transform_13, window_bounds = array<i64: 1, 32, 64>}, {transform_indices = @transform_14, window_bounds = array<i64: 1, 64, 64>}, {transform_indices = @transform_15, window_bounds = array<i64: 1, 1, 64>}, {pipeline_mode = #tpu.pipeline_mode<synchronous>, transform_indices = @transform_16, window_bounds = array<i64: 1, 64>}, {pipeline_mode = #tpu.pipeline_mode<synchronous>, transform_indices = @transform_17, window_bounds = array<i64: 1, 64>}, {transform_indices = @transform_18, window_bounds = array<i64: 1, 32, 64>}]} {
    %c0_i32 = arith.constant 0 : i32
    %0 = arith.cmpi eq, %arg1, %c0_i32 : i32
    %1 = arith.extui %0 : i1 to i32
    %c0_i32_0 = arith.constant 0 : i32
    %2 = arith.cmpi ne, %1, %c0_i32_0 : i32
    scf.if %2 {
      %c0_69 = arith.constant 0 : index
      %c0_70 = arith.constant 0 : index
      %c0_71 = arith.constant 0 : index
      %172 = vector.load %arg2[%c0_69, %c0_70, %c0_71] : memref<1x32x32xf32, #tpu.memory_space<vmem>>, vector<1x32x32xf32>
      %173 = vector.shape_cast %172 : vector<1x32x32xf32> to vector<32x32xf32>
      %174 = arith.truncf %173 : vector<32x32xf32> to vector<32x32xbf16>
      %c0_72 = arith.constant 0 : index
      %c0_73 = arith.constant 0 : index
      %175 = vector.load %arg3[%c0_72, %c0_73] : memref<32x128xbf16, #tpu.memory_space<vmem>>, vector<32x128xbf16>
      %cst_74 = arith.constant dense<0.000000e+00> : vector<32x128xf32>
      %176 = tpu.matmul %174, %175, %cst_74 {dimension_numbers = #tpu.dot_dimension_numbers<[1], [0], [0], [1], [0, 0, 1, 1], [], []>} : vector<32x32xbf16>, vector<32x128xbf16>, vector<32x128xf32> -> vector<32x128xf32>
      %c0_75 = arith.constant 0 : index
      %c0_76 = arith.constant 0 : index
      %177 = vector.load %arg4[%c0_75, %c0_76] : memref<1x128xf32, #tpu.memory_space<vmem>>, vector<1x128xf32>
      %178 = vector.broadcast %177 : vector<1x128xf32> to vector<32x128xf32>
      %179 = arith.addf %176, %178 : vector<32x128xf32>
      %cst_77 = arith.constant 0.000000e+00 : f32
      %180 = vector.broadcast %cst_77 : f32 to vector<32x128xf32>
      %181 = arith.subf %180, %179 : vector<32x128xf32>
      %182 = math.exp %181 : vector<32x128xf32>
      %cst_78 = arith.constant 1.000000e+00 : f32
      %183 = vector.broadcast %cst_78 : f32 to vector<32x128xf32>
      %184 = arith.addf %183, %182 : vector<32x128xf32>
      %cst_79 = arith.constant 1.000000e+00 : f32
      %185 = vector.broadcast %cst_79 : f32 to vector<32x128xf32>
      %186 = arith.divf %185, %184 : vector<32x128xf32>
      %187 = arith.mulf %179, %186 : vector<32x128xf32>
      %188 = arith.truncf %187 : vector<32x128xf32> to vector<32x128xbf16>
      %c0_80 = arith.constant 0 : index
      %c0_81 = arith.constant 0 : index
      %189 = vector.load %arg5[%c0_80, %c0_81] : memref<128x64xbf16, #tpu.memory_space<vmem>>, vector<128x64xbf16>
      %cst_82 = arith.constant dense<0.000000e+00> : vector<32x64xf32>
      %190 = tpu.matmul %188, %189, %cst_82 {dimension_numbers = #tpu.dot_dimension_numbers<[1], [0], [0], [1], [0, 0, 1, 1], [], []>} : vector<32x128xbf16>, vector<128x64xbf16>, vector<32x64xf32> -> vector<32x64xf32>
      %c0_83 = arith.constant 0 : index
      %c0_84 = arith.constant 0 : index
      %191 = vector.load %arg6[%c0_83, %c0_84] : memref<1x64xf32, #tpu.memory_space<vmem>>, vector<1x64xf32>
      %192 = vector.broadcast %191 : vector<1x64xf32> to vector<32x64xf32>
      %193 = arith.addf %190, %192 : vector<32x64xf32>
      %cst_85 = arith.constant 0.000000e+00 : f32
      %194 = vector.broadcast %cst_85 : f32 to vector<32x64xf32>
      %195 = arith.subf %194, %193 : vector<32x64xf32>
      %196 = math.exp %195 : vector<32x64xf32>
      %cst_86 = arith.constant 1.000000e+00 : f32
      %197 = vector.broadcast %cst_86 : f32 to vector<32x64xf32>
      %198 = arith.addf %197, %196 : vector<32x64xf32>
      %cst_87 = arith.constant 1.000000e+00 : f32
      %199 = vector.broadcast %cst_87 : f32 to vector<32x64xf32>
      %200 = arith.divf %199, %198 : vector<32x64xf32>
      %201 = arith.mulf %193, %200 : vector<32x64xf32>
      %c0_88 = arith.constant 0 : index
      %c0_89 = arith.constant 0 : index
      %202 = vector.load %arg21[%c0_88, %c0_89] : memref<32x64xf32, #tpu.memory_space<vmem>>, vector<32x64xf32>
      tpu.vector_store %arg21[%c0_88, %c0_89], %201 {strides = array<i32>} : memref<32x64xf32, #tpu.memory_space<vmem>>, vector<32x64xf32>,
    } else {
    }
    %c0 = arith.constant 0 : index
    %c0_1 = arith.constant 0 : index
    %3 = vector.load %arg21[%c0, %c0_1] : memref<32x64xf32, #tpu.memory_space<vmem>>, vector<32x64xf32>
    %cst = arith.constant dense<0.000000e+00> : vector<32xf32>
    %4 = vector.multi_reduction <add>, %3, %cst [1] : vector<32x64xf32> to vector<32xf32>
    %5 = vector.shape_cast %4 : vector<32xf32> to vector<32x1xf32>
    %cst_2 = arith.constant 6.400000e+01 : f32
    %6 = vector.broadcast %cst_2 : f32 to vector<32x1xf32>
    %7 = arith.divf %5, %6 : vector<32x1xf32>
    %8 = vector.broadcast %7 : vector<32x1xf32> to vector<32x64xf32>
    %9 = arith.subf %3, %8 : vector<32x64xf32>
    %10 = arith.mulf %9, %9 : vector<32x64xf32>
    %cst_3 = arith.constant dense<0.000000e+00> : vector<32xf32>
    %11 = vector.multi_reduction <add>, %10, %cst_3 [1] : vector<32x64xf32> to vector<32xf32>
    %12 = vector.shape_cast %11 : vector<32xf32> to vector<32x1xf32>
    %cst_4 = arith.constant 6.400000e+01 : f32
    %13 = vector.broadcast %cst_4 : f32 to vector<32x1xf32>
    %14 = arith.divf %12, %13 : vector<32x1xf32>
    %15 = vector.broadcast %7 : vector<32x1xf32> to vector<32x64xf32>
    %16 = arith.subf %3, %15 : vector<32x64xf32>
    %cst_5 = arith.constant 9.99999974E-6 : f32
    %17 = vector.broadcast %cst_5 : f32 to vector<32x1xf32>
    %18 = arith.addf %14, %17 : vector<32x1xf32>
    %19 = math.rsqrt %18 : vector<32x1xf32>
    %20 = vector.broadcast %19 : vector<32x1xf32> to vector<32x64xf32>
    %21 = arith.mulf %16, %20 : vector<32x64xf32>
    %c0_6 = arith.constant 0 : index
    %c0_7 = arith.constant 0 : index
    %c0_8 = arith.constant 0 : index
    %22 = vector.load %arg9[%c0_6, %c0_7, %c0_8] : memref<1x1x64xf32, #tpu.memory_space<vmem>>, vector<1x1x64xf32>
    %23 = vector.shape_cast %22 : vector<1x1x64xf32> to vector<1x64xf32>
    %24 = vector.broadcast %23 : vector<1x64xf32> to vector<32x64xf32>
    %25 = arith.mulf %21, %24 : vector<32x64xf32>
    %c0_9 = arith.constant 0 : index
    %c0_10 = arith.constant 0 : index
    %c0_11 = arith.constant 0 : index
    %26 = vector.load %arg10[%c0_9, %c0_10, %c0_11] : memref<1x1x64xf32, #tpu.memory_space<vmem>>, vector<1x1x64xf32>
    %27 = vector.shape_cast %26 : vector<1x1x64xf32> to vector<1x64xf32>
    %28 = vector.broadcast %27 : vector<1x64xf32> to vector<32x64xf32>
    %29 = arith.addf %25, %28 : vector<32x64xf32>
    %30 = arith.truncf %29 : vector<32x64xf32> to vector<32x64xbf16>
    %c0_12 = arith.constant 0 : index
    %c0_13 = arith.constant 0 : index
    %c0_14 = arith.constant 0 : index
    %31 = vector.load %arg11[%c0_12, %c0_13, %c0_14] : memref<1x64x384xbf16, #tpu.memory_space<vmem>>, vector<1x64x384xbf16>
    %32 = vector.shape_cast %31 : vector<1x64x384xbf16> to vector<64x384xbf16>
    %cst_15 = arith.constant dense<0.000000e+00> : vector<32x384xf32>
    %33 = tpu.matmul %30, %32, %cst_15 {dimension_numbers = #tpu.dot_dimension_numbers<[1], [0], [0], [1], [0, 0, 1, 1], [], []>} : vector<32x64xbf16>, vector<64x384xbf16>, vector<32x384xf32> -> vector<32x384xf32>
    %c0_16 = arith.constant 0 : index
    %c0_17 = arith.constant 0 : index
    %c0_18 = arith.constant 0 : index
    %34 = vector.load %arg12[%c0_16, %c0_17, %c0_18] : memref<1x1x384xf32, #tpu.memory_space<vmem>>, vector<1x1x384xf32>
    %35 = vector.shape_cast %34 : vector<1x1x384xf32> to vector<1x384xf32>
    %36 = vector.broadcast %35 : vector<1x384xf32> to vector<32x384xf32>
    %37 = arith.addf %33, %36 : vector<32x384xf32>
    %38 = vector.extract_strided_slice %37 {offsets = [0, 0], sizes = [32, 64], strides = [1, 1]} : vector<32x384xf32> to vector<32x64xf32>
    %39 = vector.extract_strided_slice %37 {offsets = [0, 128], sizes = [32, 64], strides = [1, 1]} : vector<32x384xf32> to vector<32x64xf32>
    %40 = vector.extract_strided_slice %37 {offsets = [0, 256], sizes = [32, 64], strides = [1, 1]} : vector<32x384xf32> to vector<32x64xf32>
    %c0_19 = arith.constant 0 : index
    %c0_20 = arith.constant 0 : index
    %41 = vector.load %arg7[%c0_19, %c0_20] : memref<128x64xbf16, #tpu.memory_space<vmem>>, vector<128x64xbf16>
    %c0_21 = arith.constant 0 : index
    %c0_22 = arith.constant 0 : index
    %c0_23 = arith.constant 0 : index
    %42 = vector.load %arg13[%c0_21, %c0_22, %c0_23] : memref<1x1x64xf32, #tpu.memory_space<vmem>>, vector<1x1x64xf32>
    %43 = vector.shape_cast %42 : vector<1x1x64xf32> to vector<1x64xf32>
    %44 = vector.broadcast %43 : vector<1x64xf32> to vector<32x64xf32>
    %45 = arith.addf %38, %44 : vector<32x64xf32>
    %46 = arith.truncf %45 : vector<32x64xf32> to vector<32x64xbf16>
    %47 = tpu.concatenate %46, %46, %46, %46 in 0 : vector<32x64xbf16>, vector<32x64xbf16>, vector<32x64xbf16>, vector<32x64xbf16> -> vector<128x64xbf16>
    %48 = arith.mulf %47, %41 : vector<128x64xbf16>
    %c0_24 = arith.constant 0 : index
    %c0_25 = arith.constant 0 : index
    %c0_26 = arith.constant 0 : index
    %49 = vector.load %arg14[%c0_24, %c0_25, %c0_26] : memref<1x1x64xf32, #tpu.memory_space<vmem>>, vector<1x1x64xf32>
    %50 = vector.shape_cast %49 : vector<1x1x64xf32> to vector<1x64xf32>
    %51 = vector.broadcast %50 : vector<1x64xf32> to vector<32x64xf32>
    %52 = arith.addf %38, %51 : vector<32x64xf32>
    %53 = arith.truncf %52 : vector<32x64xf32> to vector<32x64xbf16>
    %54 = tpu.concatenate %53, %53, %53, %53 in 0 : vector<32x64xbf16>, vector<32x64xbf16>, vector<32x64xbf16>, vector<32x64xbf16> -> vector<128x64xbf16>
    %55 = arith.mulf %54, %41 : vector<128x64xbf16>
    %56 = arith.truncf %39 : vector<32x64xf32> to vector<32x64xbf16>
    %57 = arith.truncf %40 : vector<32x64xf32> to vector<32x64xbf16>
    %cst_27 = arith.constant dense<0.000000e+00> : vector<128x32xf32>
    %58 = tpu.matmul %48, %56, %cst_27 {dimension_numbers = #tpu.dot_dimension_numbers<[1], [1], [0], [0], [0, 0, 1, 0], [], []>} : vector<128x64xbf16>, vector<32x64xbf16>, vector<128x32xf32> -> vector<128x32xf32>
    %c0_28 = arith.constant 0 : index
    %c0_29 = arith.constant 0 : index
    %c0_30 = arith.constant 0 : index
    %59 = vector.load %arg15[%c0_28, %c0_29, %c0_30] : memref<1x32x64xbf16, #tpu.memory_space<vmem>>, vector<1x32x64xbf16>
    %60 = vector.shape_cast %59 : vector<1x32x64xbf16> to vector<32x64xbf16>
    %cst_31 = arith.constant dense<0.000000e+00> : vector<128x32xf32>
    %61 = tpu.matmul %55, %60, %cst_31 {dimension_numbers = #tpu.dot_dimension_numbers<[1], [1], [0], [0], [0, 0, 1, 0], [], []>} : vector<128x64xbf16>, vector<32x64xbf16>, vector<128x32xf32> -> vector<128x32xf32>
    %62 = vector.extract_strided_slice %61 {offsets = [1, 0], sizes = [127, 32], strides = [1, 1]} : vector<128x32xf32> to vector<127x32xf32>
    %cst_32 = arith.constant 0.000000e+00 : f32
    %63 = vector.broadcast %cst_32 : f32 to vector<1x32xf32>
    %64 = tpu.concatenate %62, %63 in 0 : vector<127x32xf32>, vector<1x32xf32> -> vector<128x32xf32>
    %cst_33 = arith.constant 0.000000e+00 : f32
    %65 = vector.broadcast %cst_33 : f32 to vector<128x1xf32>
    %66 = vector.extract_strided_slice %64 {offsets = [0, 0], sizes = [128, 30], strides = [1, 1]} : vector<128x32xf32> to vector<128x30xf32>
    %cst_34 = arith.constant 0.000000e+00 : f32
    %67 = vector.broadcast %cst_34 : f32 to vector<128x1xf32>
    %68 = tpu.concatenate %61, %65, %66, %67 in 1 : vector<128x32xf32>, vector<128x1xf32>, vector<128x30xf32>, vector<128x1xf32> -> vector<128x64xf32>
    %69 = vector.extract_strided_slice %68 {offsets = [0, 1], sizes = [128, 63], strides = [1, 1]} : vector<128x64xf32> to vector<128x63xf32>
    %70 = vector.extract_strided_slice %68 {offsets = [0, 0], sizes = [128, 1], strides = [1, 1]} : vector<128x64xf32> to vector<128x1xf32>
    %71 = tpu.concatenate %69, %70 in 1 : vector<128x63xf32>, vector<128x1xf32> -> vector<128x64xf32>
    %c0_35 = arith.constant 0 : index
    %c0_36 = arith.constant 0 : index
    %c0_37 = arith.constant 0 : index
    %72 = vector.load %arg8[%c0_35, %c0_36, %c0_37] : memref<5x128x1xf32, #tpu.memory_space<vmem>>, vector<1x128x1xf32>
    %73 = vector.shape_cast %72 : vector<1x128x1xf32> to vector<128x1xf32>
    %cst_38 = arith.constant 0.000000e+00 : f32
    %74 = vector.broadcast %cst_38 : f32 to vector<128x1xf32>
    %75 = arith.cmpf ogt, %73, %74 : vector<128x1xf32>
    %76 = vector.shape_cast %75 : vector<128x1xi1> to vector<128x1xi1>
    %77 = vector.broadcast %76 : vector<128x1xi1> to vector<128x64xi1>
    %78 = arith.select %77, %71, %68 : vector<128x64xi1>, vector<128x64xf32>
    %79 = vector.extract_strided_slice %78 {offsets = [0, 2], sizes = [128, 62], strides = [1, 1]} : vector<128x64xf32> to vector<128x62xf32>
    %80 = vector.extract_strided_slice %78 {offsets = [0, 0], sizes = [128, 2], strides = [1, 1]} : vector<128x64xf32> to vector<128x2xf32>
    %81 = tpu.concatenate %79, %80 in 1 : vector<128x62xf32>, vector<128x2xf32> -> vector<128x64xf32>
    %c1 = arith.constant 1 : index
    %c0_39 = arith.constant 0 : index
    %c0_40 = arith.constant 0 : index
    %82 = vector.load %arg8[%c1, %c0_39, %c0_40] : memref<5x128x1xf32, #tpu.memory_space<vmem>>, vector<1x128x1xf32>
    %83 = vector.shape_cast %82 : vector<1x128x1xf32> to vector<128x1xf32>
    %cst_41 = arith.constant 0.000000e+00 : f32
    %84 = vector.broadcast %cst_41 : f32 to vector<128x1xf32>
    %85 = arith.cmpf ogt, %83, %84 : vector<128x1xf32>
    %86 = vector.shape_cast %85 : vector<128x1xi1> to vector<128x1xi1>
    %87 = vector.broadcast %86 : vector<128x1xi1> to vector<128x64xi1>
    %88 = arith.select %87, %81, %78 : vector<128x64xi1>, vector<128x64xf32>
    %89 = vector.extract_strided_slice %88 {offsets = [0, 4], sizes = [128, 60], strides = [1, 1]} : vector<128x64xf32> to vector<128x60xf32>
    %90 = vector.extract_strided_slice %88 {offsets = [0, 0], sizes = [128, 4], strides = [1, 1]} : vector<128x64xf32> to vector<128x4xf32>
    %91 = tpu.concatenate %89, %90 in 1 : vector<128x60xf32>, vector<128x4xf32> -> vector<128x64xf32>
    %c2 = arith.constant 2 : index
    %c0_42 = arith.constant 0 : index
    %c0_43 = arith.constant 0 : index
    %92 = vector.load %arg8[%c2, %c0_42, %c0_43] : memref<5x128x1xf32, #tpu.memory_space<vmem>>, vector<1x128x1xf32>
    %93 = vector.shape_cast %92 : vector<1x128x1xf32> to vector<128x1xf32>
    %cst_44 = arith.constant 0.000000e+00 : f32
    %94 = vector.broadcast %cst_44 : f32 to vector<128x1xf32>
    %95 = arith.cmpf ogt, %93, %94 : vector<128x1xf32>
    %96 = vector.shape_cast %95 : vector<128x1xi1> to vector<128x1xi1>
    %97 = vector.broadcast %96 : vector<128x1xi1> to vector<128x64xi1>
    %98 = arith.select %97, %91, %88 : vector<128x64xi1>, vector<128x64xf32>
    %99 = vector.extract_strided_slice %98 {offsets = [0, 8], sizes = [128, 56], strides = [1, 1]} : vector<128x64xf32> to vector<128x56xf32>
    %100 = vector.extract_strided_slice %98 {offsets = [0, 0], sizes = [128, 8], strides = [1, 1]} : vector<128x64xf32> to vector<128x8xf32>
    %101 = tpu.concatenate %99, %100 in 1 : vector<128x56xf32>, vector<128x8xf32> -> vector<128x64xf32>
    %c3 = arith.constant 3 : index
    %c0_45 = arith.constant 0 : index
    %c0_46 = arith.constant 0 : index
    %102 = vector.load %arg8[%c3, %c0_45, %c0_46] : memref<5x128x1xf32, #tpu.memory_space<vmem>>, vector<1x128x1xf32>
    %103 = vector.shape_cast %102 : vector<1x128x1xf32> to vector<128x1xf32>
    %cst_47 = arith.constant 0.000000e+00 : f32
    %104 = vector.broadcast %cst_47 : f32 to vector<128x1xf32>
    %105 = arith.cmpf ogt, %103, %104 : vector<128x1xf32>
    %106 = vector.shape_cast %105 : vector<128x1xi1> to vector<128x1xi1>
    %107 = vector.broadcast %106 : vector<128x1xi1> to vector<128x64xi1>
    %108 = arith.select %107, %101, %98 : vector<128x64xi1>, vector<128x64xf32>
    %109 = vector.extract_strided_slice %108 {offsets = [0, 16], sizes = [128, 48], strides = [1, 1]} : vector<128x64xf32> to vector<128x48xf32>
    %110 = vector.extract_strided_slice %108 {offsets = [0, 0], sizes = [128, 16], strides = [1, 1]} : vector<128x64xf32> to vector<128x16xf32>
    %111 = tpu.concatenate %109, %110 in 1 : vector<128x48xf32>, vector<128x16xf32> -> vector<128x64xf32>
    %c4 = arith.constant 4 : index
    %c0_48 = arith.constant 0 : index
    %c0_49 = arith.constant 0 : index
    %112 = vector.load %arg8[%c4, %c0_48, %c0_49] : memref<5x128x1xf32, #tpu.memory_space<vmem>>, vector<1x128x1xf32>
    %113 = vector.shape_cast %112 : vector<1x128x1xf32> to vector<128x1xf32>
    %cst_50 = arith.constant 0.000000e+00 : f32
    %114 = vector.broadcast %cst_50 : f32 to vector<128x1xf32>
    %115 = arith.cmpf ogt, %113, %114 : vector<128x1xf32>
    %116 = vector.shape_cast %115 : vector<128x1xi1> to vector<128x1xi1>
    %117 = vector.broadcast %116 : vector<128x1xi1> to vector<128x64xi1>
    %118 = arith.select %117, %111, %108 : vector<128x64xi1>, vector<128x64xf32>
    %119 = vector.extract_strided_slice %118 {offsets = [0, 0], sizes = [128, 32], strides = [1, 1]} : vector<128x64xf32> to vector<128x32xf32>
    %120 = arith.addf %58, %119 : vector<128x32xf32>
    %cst_51 = arith.constant 1.250000e-01 : f32
    %121 = vector.broadcast %cst_51 : f32 to vector<128x32xf32>
    %122 = arith.mulf %120, %121 : vector<128x32xf32>
    %cst_52 = arith.constant dense<0xFF800000> : vector<128xf32>
    %123 = vector.multi_reduction <maximumf>, %122, %cst_52 [1] : vector<128x32xf32> to vector<128xf32>
    %124 = vector.shape_cast %123 : vector<128xf32> to vector<128x1xf32>
    %125 = vector.broadcast %124 : vector<128x1xf32> to vector<128x32xf32>
    %126 = arith.subf %122, %125 : vector<128x32xf32>
    %127 = math.exp %126 : vector<128x32xf32>
    %cst_53 = arith.constant dense<0.000000e+00> : vector<128xf32>
    %128 = vector.multi_reduction <add>, %127, %cst_53 [1] : vector<128x32xf32> to vector<128xf32>
    %129 = vector.shape_cast %128 : vector<128xf32> to vector<128x1xf32>
    %130 = tpu.reciprocal %129 {approx = true} : vector<128x1xf32> -> vector<128x1xf32>
    %131 = vector.broadcast %130 : vector<128x1xf32> to vector<128x32xf32>
    %132 = arith.mulf %127, %131 : vector<128x32xf32>
    %133 = arith.truncf %132 : vector<128x32xf32> to vector<128x32xbf16>
    %cst_54 = arith.constant 0.000000e+00 : f32
    %134 = vector.broadcast %cst_54 : f32 to vector<32x64xf32>
    %135 = vector.extract_strided_slice %41 {offsets = [0, 0], sizes = [1, 64], strides = [1, 1]} : vector<128x64xbf16> to vector<1x64xbf16>
    %136 = vector.broadcast %135 : vector<1x64xbf16> to vector<32x64xbf16>
    %137 = arith.mulf %57, %136 : vector<32x64xbf16>
    %138 = vector.extract_strided_slice %133 {offsets = [0, 0], sizes = [32, 32], strides = [1, 1]} : vector<128x32xbf16> to vector<32x32xbf16>
    %cst_55 = arith.constant dense<0.000000e+00> : vector<32x64xf32>
    %139 = tpu.matmul %138, %137, %cst_55 {dimension_numbers = #tpu.dot_dimension_numbers<[1], [0], [0], [1], [0, 0, 1, 1], [], []>} : vector<32x32xbf16>, vector<32x64xbf16>, vector<32x64xf32> -> vector<32x64xf32>
    %140 = arith.addf %134, %139 : vector<32x64xf32>
    %141 = vector.extract_strided_slice %41 {offsets = [32, 0], sizes = [1, 64], strides = [1, 1]} : vector<128x64xbf16> to vector<1x64xbf16>
    %142 = vector.broadcast %141 : vector<1x64xbf16> to vector<32x64xbf16>
    %143 = arith.mulf %57, %142 : vector<32x64xbf16>
    %144 = vector.extract_strided_slice %133 {offsets = [32, 0], sizes = [32, 32], strides = [1, 1]} : vector<128x32xbf16> to vector<32x32xbf16>
    %cst_56 = arith.constant dense<0.000000e+00> : vector<32x64xf32>
    %145 = tpu.matmul %144, %143, %cst_56 {dimension_numbers = #tpu.dot_dimension_numbers<[1], [0], [0], [1], [0, 0, 1, 1], [], []>} : vector<32x32xbf16>, vector<32x64xbf16>, vector<32x64xf32> -> vector<32x64xf32>
    %146 = arith.addf %140, %145 : vector<32x64xf32>
    %147 = vector.extract_strided_slice %41 {offsets = [64, 0], sizes = [1, 64], strides = [1, 1]} : vector<128x64xbf16> to vector<1x64xbf16>
    %148 = vector.broadcast %147 : vector<1x64xbf16> to vector<32x64xbf16>
    %149 = arith.mulf %57, %148 : vector<32x64xbf16>
    %150 = vector.extract_strided_slice %133 {offsets = [64, 0], sizes = [32, 32], strides = [1, 1]} : vector<128x32xbf16> to vector<32x32xbf16>
    %cst_57 = arith.constant dense<0.000000e+00> : vector<32x64xf32>
    %151 = tpu.matmul %150, %149, %cst_57 {dimension_numbers = #tpu.dot_dimension_numbers<[1], [0], [0], [1], [0, 0, 1, 1], [], []>} : vector<32x32xbf16>, vector<32x64xbf16>, vector<32x64xf32> -> vector<32x64xf32>
    %152 = arith.addf %146, %151 : vector<32x64xf32>
    %153 = vector.extract_strided_slice %41 {offsets = [96, 0], sizes = [1, 64], strides = [1, 1]} : vector<128x64xbf16> to vector<1x64xbf16>
    %154 = vector.broadcast %153 : vector<1x64xbf16> to vector<32x64xbf16>
    %155 = arith.mulf %57, %154 : vector<32x64xbf16>
    %156 = vector.extract_strided_slice %133 {offsets = [96, 0], sizes = [32, 32], strides = [1, 1]} : vector<128x32xbf16> to vector<32x32xbf16>
    %cst_58 = arith.constant dense<0.000000e+00> : vector<32x64xf32>
    %157 = tpu.matmul %156, %155, %cst_58 {dimension_numbers = #tpu.dot_dimension_numbers<[1], [0], [0], [1], [0, 0, 1, 1], [], []>} : vector<32x32xbf16>, vector<32x64xbf16>, vector<32x64xf32> -> vector<32x64xf32>
    %158 = arith.addf %152, %157 : vector<32x64xf32>
    %159 = arith.truncf %158 : vector<32x64xf32> to vector<32x64xbf16>
    %c0_59 = arith.constant 0 : index
    %c0_60 = arith.constant 0 : index
    %c0_61 = arith.constant 0 : index
    %160 = vector.load %arg16[%c0_59, %c0_60, %c0_61] : memref<1x64x64xbf16, #tpu.memory_space<vmem>>, vector<1x64x64xbf16>
    %161 = vector.shape_cast %160 : vector<1x64x64xbf16> to vector<64x64xbf16>
    %cst_62 = arith.constant dense<0.000000e+00> : vector<32x64xf32>
    %162 = tpu.matmul %159, %161, %cst_62 {dimension_numbers = #tpu.dot_dimension_numbers<[1], [0], [0], [1], [0, 0, 1, 1], [], []>} : vector<32x64xbf16>, vector<64x64xbf16>, vector<32x64xf32> -> vector<32x64xf32>
    %c0_63 = arith.constant 0 : index
    %c0_64 = arith.constant 0 : index
    %c0_65 = arith.constant 0 : index
    %163 = vector.load %arg17[%c0_63, %c0_64, %c0_65] : memref<1x1x64xf32, #tpu.memory_space<vmem>>, vector<1x1x64xf32>
    %164 = vector.shape_cast %163 : vector<1x1x64xf32> to vector<1x64xf32>
    %165 = vector.broadcast %164 : vector<1x64xf32> to vector<32x64xf32>
    %166 = arith.addf %162, %165 : vector<32x64xf32>
    %167 = arith.addf %166, %3 : vector<32x64xf32>
    %c0_66 = arith.constant 0 : index
    %c0_67 = arith.constant 0 : index
    %168 = vector.load %arg21[%c0_66, %c0_67] : memref<32x64xf32, #tpu.memory_space<vmem>>, vector<32x64xf32>
    tpu.vector_store %arg21[%c0_66, %c0_67], %167 {strides = array<i32>} : memref<32x64xf32, #tpu.memory_space<vmem>>, vector<32x64xf32>,
    %c1_i32 = arith.constant 1 : i32
    %169 = arith.cmpi eq, %arg1, %c1_i32 : i32
    %170 = arith.extui %169 : i1 to i32
    %c0_i32_68 = arith.constant 0 : i32
    %171 = arith.cmpi ne, %170, %c0_i32_68 : i32
    scf.if %171 {
      %cst_69 = arith.constant dense<0.000000e+00> : vector<32xf32>
      %172 = vector.multi_reduction <add>, %167, %cst_69 [1] : vector<32x64xf32> to vector<32xf32>
      %173 = vector.shape_cast %172 : vector<32xf32> to vector<32x1xf32>
      %cst_70 = arith.constant 6.400000e+01 : f32
      %174 = vector.broadcast %cst_70 : f32 to vector<32x1xf32>
      %175 = arith.divf %173, %174 : vector<32x1xf32>
      %176 = vector.broadcast %175 : vector<32x1xf32> to vector<32x64xf32>
      %177 = arith.subf %167, %176 : vector<32x64xf32>
      %178 = arith.mulf %177, %177 : vector<32x64xf32>
      %cst_71 = arith.constant dense<0.000000e+00> : vector<32xf32>
      %179 = vector.multi_reduction <add>, %178, %cst_71 [1] : vector<32x64xf32> to vector<32xf32>
      %180 = vector.shape_cast %179 : vector<32xf32> to vector<32x1xf32>
      %cst_72 = arith.constant 6.400000e+01 : f32
      %181 = vector.broadcast %cst_72 : f32 to vector<32x1xf32>
      %182 = arith.divf %180, %181 : vector<32x1xf32>
      %183 = vector.broadcast %175 : vector<32x1xf32> to vector<32x64xf32>
      %184 = arith.subf %167, %183 : vector<32x64xf32>
      %cst_73 = arith.constant 9.99999974E-6 : f32
      %185 = vector.broadcast %cst_73 : f32 to vector<32x1xf32>
      %186 = arith.addf %182, %185 : vector<32x1xf32>
      %187 = math.rsqrt %186 : vector<32x1xf32>
      %188 = vector.broadcast %187 : vector<32x1xf32> to vector<32x64xf32>
      %189 = arith.mulf %184, %188 : vector<32x64xf32>
      %c0_74 = arith.constant 0 : index
      %c0_75 = arith.constant 0 : index
      %190 = vector.load %arg18[%c0_74, %c0_75] : memref<1x64xf32, #tpu.memory_space<vmem>>, vector<1x64xf32>
      %191 = vector.broadcast %190 : vector<1x64xf32> to vector<32x64xf32>
      %192 = arith.mulf %189, %191 : vector<32x64xf32>
      %c0_76 = arith.constant 0 : index
      %c0_77 = arith.constant 0 : index
      %193 = vector.load %arg19[%c0_76, %c0_77] : memref<1x64xf32, #tpu.memory_space<vmem>>, vector<1x64xf32>
      %194 = vector.broadcast %193 : vector<1x64xf32> to vector<32x64xf32>
      %195 = arith.addf %192, %194 : vector<32x64xf32>
      %c0_78 = arith.constant 0 : index
      %c0_79 = arith.constant 0 : index
      %c0_80 = arith.constant 0 : index
      %196 = vector.load %arg20[%c0_78, %c0_79, %c0_80] : memref<1x32x64xf32, #tpu.memory_space<vmem>>, vector<1x32x64xf32>
      %197 = vector.shape_cast %196 : vector<1x32x64xf32> to vector<32x64xf32>
      %198 = vector.shape_cast %195 : vector<32x64xf32> to vector<1x32x64xf32>
      tpu.vector_store %arg20[%c0_78, %c0_79, %c0_80], %198 {strides = array<i32>} : memref<1x32x64xf32, #tpu.memory_space<vmem>>, vector<1x32x64xf32>,
    } else {
    }
    return
  }
  func.func @transform_0(%arg0: i32, %arg1: i32) -> (i32, i32, i32) {
    %c0_i32 = arith.constant 0 : i32
    %c0_i32_0 = arith.constant 0 : i32
    %c0_i32_1 = arith.constant 0 : i32
    return %arg0, %c0_i32, %c0_i32_0 : i32, i32, i32
  }
  func.func @transform_1(%arg0: i32, %arg1: i32) -> (i32, i32) {
    %c0_i32 = arith.constant 0 : i32
    %c0_i32_0 = arith.constant 0 : i32
    %c0_i32_1 = arith.constant 0 : i32
    return %c0_i32, %c0_i32_0 : i32, i32
  }
  func.func @transform_2(%arg0: i32, %arg1: i32) -> (i32, i32) {
    %c0_i32 = arith.constant 0 : i32
    %c0_i32_0 = arith.constant 0 : i32
    %c0_i32_1 = arith.constant 0 : i32
    return %c0_i32, %c0_i32_0 : i32, i32
  }
  func.func @transform_3(%arg0: i32, %arg1: i32) -> (i32, i32) {
    %c0_i32 = arith.constant 0 : i32
    %c0_i32_0 = arith.constant 0 : i32
    %c0_i32_1 = arith.constant 0 : i32
    return %c0_i32, %c0_i32_0 : i32, i32
  }
  func.func @transform_4(%arg0: i32, %arg1: i32) -> (i32, i32) {
    %c0_i32 = arith.constant 0 : i32
    %c0_i32_0 = arith.constant 0 : i32
    %c0_i32_1 = arith.constant 0 : i32
    return %c0_i32, %c0_i32_0 : i32, i32
  }
  func.func @transform_5(%arg0: i32, %arg1: i32) -> (i32, i32) {
    %c0_i32 = arith.constant 0 : i32
    %c0_i32_0 = arith.constant 0 : i32
    %c0_i32_1 = arith.constant 0 : i32
    return %c0_i32, %c0_i32_0 : i32, i32
  }
  func.func @transform_6(%arg0: i32, %arg1: i32) -> (i32, i32, i32) {
    %c0_i32 = arith.constant 0 : i32
    %c0_i32_0 = arith.constant 0 : i32
    %c0_i32_1 = arith.constant 0 : i32
    %c0_i32_2 = arith.constant 0 : i32
    return %c0_i32, %c0_i32_0, %c0_i32_1 : i32, i32, i32
  }
  func.func @transform_7(%arg0: i32, %arg1: i32) -> (i32, i32, i32) {
    %c0_i32 = arith.constant 0 : i32
    %c0_i32_0 = arith.constant 0 : i32
    %c0_i32_1 = arith.constant 0 : i32
    return %arg1, %c0_i32, %c0_i32_0 : i32, i32, i32
  }
  func.func @transform_8(%arg0: i32, %arg1: i32) -> (i32, i32, i32) {
    %c0_i32 = arith.constant 0 : i32
    %c0_i32_0 = arith.constant 0 : i32
    %c0_i32_1 = arith.constant 0 : i32
    return %arg1, %c0_i32, %c0_i32_0 : i32, i32, i32
  }
  func.func @transform_9(%arg0: i32, %arg1: i32) -> (i32, i32, i32) {
    %c0_i32 = arith.constant 0 : i32
    %c0_i32_0 = arith.constant 0 : i32
    %c0_i32_1 = arith.constant 0 : i32
    return %arg1, %c0_i32, %c0_i32_0 : i32, i32, i32
  }
  func.func @transform_10(%arg0: i32, %arg1: i32) -> (i32, i32, i32) {
    %c0_i32 = arith.constant 0 : i32
    %c0_i32_0 = arith.constant 0 : i32
    %c0_i32_1 = arith.constant 0 : i32
    return %arg1, %c0_i32, %c0_i32_0 : i32, i32, i32
  }
  func.func @transform_11(%arg0: i32, %arg1: i32) -> (i32, i32, i32) {
    %c0_i32 = arith.constant 0 : i32
    %c0_i32_0 = arith.constant 0 : i32
    %c0_i32_1 = arith.constant 0 : i32
    return %arg1, %c0_i32, %c0_i32_0 : i32, i32, i32
  }
  func.func @transform_12(%arg0: i32, %arg1: i32) -> (i32, i32, i32) {
    %c0_i32 = arith.constant 0 : i32
    %c0_i32_0 = arith.constant 0 : i32
    %c0_i32_1 = arith.constant 0 : i32
    return %arg1, %c0_i32, %c0_i32_0 : i32, i32, i32
  }
  func.func @transform_13(%arg0: i32, %arg1: i32) -> (i32, i32, i32) {
    %c0_i32 = arith.constant 0 : i32
    %c0_i32_0 = arith.constant 0 : i32
    %c0_i32_1 = arith.constant 0 : i32
    return %arg1, %c0_i32, %c0_i32_0 : i32, i32, i32
  }
  func.func @transform_14(%arg0: i32, %arg1: i32) -> (i32, i32, i32) {
    %c0_i32 = arith.constant 0 : i32
    %c0_i32_0 = arith.constant 0 : i32
    %c0_i32_1 = arith.constant 0 : i32
    return %arg1, %c0_i32, %c0_i32_0 : i32, i32, i32
  }
  func.func @transform_15(%arg0: i32, %arg1: i32) -> (i32, i32, i32) {
    %c0_i32 = arith.constant 0 : i32
    %c0_i32_0 = arith.constant 0 : i32
    %c0_i32_1 = arith.constant 0 : i32
    return %arg1, %c0_i32, %c0_i32_0 : i32, i32, i32
  }
  func.func @transform_16(%arg0: i32, %arg1: i32) -> (i32, i32) {
    %c0_i32 = arith.constant 0 : i32
    %c0_i32_0 = arith.constant 0 : i32
    %c0_i32_1 = arith.constant 0 : i32
    return %c0_i32, %c0_i32_0 : i32, i32
  }
  func.func @transform_17(%arg0: i32, %arg1: i32) -> (i32, i32) {
    %c0_i32 = arith.constant 0 : i32
    %c0_i32_0 = arith.constant 0 : i32
    %c0_i32_1 = arith.constant 0 : i32
    return %c0_i32, %c0_i32_0 : i32, i32
  }
  func.func @transform_18(%arg0: i32, %arg1: i32) -> (i32, i32, i32) {
    %c0_i32 = arith.constant 0 : i32
    %c0_i32_0 = arith.constant 0 : i32
    %c0_i32_1 = arith.constant 0 : i32
    return %arg0, %c0_i32, %c0_i32_0 : i32, i32, i32
  }
}

module attributes {stable_mosaic.version = 11 : i64} {
  func.func @conv_stage_kernel(%arg0: i32, %arg1: memref<25x930xbf16, #tpu.memory_space<vmem>>, %arg2: memref<16x25xbf16, #tpu.memory_space<vmem>>, %arg3: memref<16x1xf32, #tpu.memory_space<vmem>>, %arg4: memref<16x930xf32, #tpu.memory_space<vmem>>) attributes {dimension_semantics = [#tpu.dimension_semantics<arbitrary>], iteration_bounds = array<i64: 1>, scalar_prefetch = 0 : i64, scratch_operands = 0 : i64, tpu.core_type = #tpu.core_type<tc>, window_params = [{pipeline_mode = #tpu.pipeline_mode<synchronous>, transform_indices = @transform_0, window_bounds = array<i64: 25, 930>}, {pipeline_mode = #tpu.pipeline_mode<synchronous>, transform_indices = @transform_1, window_bounds = array<i64: 16, 25>}, {pipeline_mode = #tpu.pipeline_mode<synchronous>, transform_indices = @transform_2, window_bounds = array<i64: 16, 1>}, {pipeline_mode = #tpu.pipeline_mode<synchronous>, transform_indices = @transform_3, window_bounds = array<i64: 16, 930>}]} {
    %c0 = arith.constant 0 : index
    %c0_0 = arith.constant 0 : index
    %0 = vector.load %arg2[%c0, %c0_0] : memref<16x25xbf16, #tpu.memory_space<vmem>>, vector<16x25xbf16>
    %c0_1 = arith.constant 0 : index
    %c0_2 = arith.constant 0 : index
    %1 = vector.load %arg1[%c0_1, %c0_2] : memref<25x930xbf16, #tpu.memory_space<vmem>>, vector<25x930xbf16>
    %cst = arith.constant dense<0.000000e+00> : vector<16x930xf32>
    %2 = tpu.matmul %0, %1, %cst {dimension_numbers = #tpu.dot_dimension_numbers<[1], [0], [0], [1], [0, 0, 1, 1], [], []>} : vector<16x25xbf16>, vector<25x930xbf16>, vector<16x930xf32> -> vector<16x930xf32>
    %c0_3 = arith.constant 0 : index
    %c0_4 = arith.constant 0 : index
    %3 = vector.load %arg3[%c0_3, %c0_4] : memref<16x1xf32, #tpu.memory_space<vmem>>, vector<16x1xf32>
    %4 = vector.broadcast %3 : vector<16x1xf32> to vector<16x930xf32>
    %5 = arith.addf %2, %4 : vector<16x930xf32>
    %c0_5 = arith.constant 0 : index
    %c0_6 = arith.constant 0 : index
    %6 = vector.load %arg4[%c0_5, %c0_6] : memref<16x930xf32, #tpu.memory_space<vmem>>, vector<16x930xf32>
    tpu.vector_store %arg4[%c0_5, %c0_6], %5 {strides = array<i32>} : memref<16x930xf32, #tpu.memory_space<vmem>>, vector<16x930xf32>,
    return
  }
  func.func @transform_0(%arg0: i32) -> (i32, i32) {
    %c0_i32 = arith.constant 0 : i32
    %c0_i32_0 = arith.constant 0 : i32
    %c0_i32_1 = arith.constant 0 : i32
    return %c0_i32, %c0_i32_0 : i32, i32
  }
  func.func @transform_1(%arg0: i32) -> (i32, i32) {
    %c0_i32 = arith.constant 0 : i32
    %c0_i32_0 = arith.constant 0 : i32
    %c0_i32_1 = arith.constant 0 : i32
    return %c0_i32, %c0_i32_0 : i32, i32
  }
  func.func @transform_2(%arg0: i32) -> (i32, i32) {
    %c0_i32 = arith.constant 0 : i32
    %c0_i32_0 = arith.constant 0 : i32
    %c0_i32_1 = arith.constant 0 : i32
    return %c0_i32, %c0_i32_0 : i32, i32
  }
  func.func @transform_3(%arg0: i32) -> (i32, i32) {
    %c0_i32 = arith.constant 0 : i32
    %c0_i32_0 = arith.constant 0 : i32
    %c0_i32_1 = arith.constant 0 : i32
    return %c0_i32, %c0_i32_0 : i32, i32
  }
}

module attributes {stable_mosaic.version = 11 : i64} {
  func.func @conv_stage_kernel(%arg0: i32, %arg1: memref<400x168xbf16, #tpu.memory_space<vmem>>, %arg2: memref<16x400xbf16, #tpu.memory_space<vmem>>, %arg3: memref<16x1xf32, #tpu.memory_space<vmem>>, %arg4: memref<16x168xf32, #tpu.memory_space<vmem>>) attributes {dimension_semantics = [#tpu.dimension_semantics<arbitrary>], iteration_bounds = array<i64: 1>, scalar_prefetch = 0 : i64, scratch_operands = 0 : i64, tpu.core_type = #tpu.core_type<tc>, window_params = [{pipeline_mode = #tpu.pipeline_mode<synchronous>, transform_indices = @transform_0, window_bounds = array<i64: 400, 168>}, {pipeline_mode = #tpu.pipeline_mode<synchronous>, transform_indices = @transform_1, window_bounds = array<i64: 16, 400>}, {pipeline_mode = #tpu.pipeline_mode<synchronous>, transform_indices = @transform_2, window_bounds = array<i64: 16, 1>}, {pipeline_mode = #tpu.pipeline_mode<synchronous>, transform_indices = @transform_3, window_bounds = array<i64: 16, 168>}]} {
    %c0 = arith.constant 0 : index
    %c0_0 = arith.constant 0 : index
    %0 = vector.load %arg2[%c0, %c0_0] : memref<16x400xbf16, #tpu.memory_space<vmem>>, vector<16x400xbf16>
    %c0_1 = arith.constant 0 : index
    %c0_2 = arith.constant 0 : index
    %1 = vector.load %arg1[%c0_1, %c0_2] : memref<400x168xbf16, #tpu.memory_space<vmem>>, vector<400x168xbf16>
    %cst = arith.constant dense<0.000000e+00> : vector<16x168xf32>
    %2 = tpu.matmul %0, %1, %cst {dimension_numbers = #tpu.dot_dimension_numbers<[1], [0], [0], [1], [0, 0, 1, 1], [], []>} : vector<16x400xbf16>, vector<400x168xbf16>, vector<16x168xf32> -> vector<16x168xf32>
    %c0_3 = arith.constant 0 : index
    %c0_4 = arith.constant 0 : index
    %3 = vector.load %arg3[%c0_3, %c0_4] : memref<16x1xf32, #tpu.memory_space<vmem>>, vector<16x1xf32>
    %4 = vector.broadcast %3 : vector<16x1xf32> to vector<16x168xf32>
    %5 = arith.addf %2, %4 : vector<16x168xf32>
    %c0_5 = arith.constant 0 : index
    %c0_6 = arith.constant 0 : index
    %6 = vector.load %arg4[%c0_5, %c0_6] : memref<16x168xf32, #tpu.memory_space<vmem>>, vector<16x168xf32>
    tpu.vector_store %arg4[%c0_5, %c0_6], %5 {strides = array<i32>} : memref<16x168xf32, #tpu.memory_space<vmem>>, vector<16x168xf32>,
    return
  }
  func.func @transform_0(%arg0: i32) -> (i32, i32) {
    %c0_i32 = arith.constant 0 : i32
    %c0_i32_0 = arith.constant 0 : i32
    %c0_i32_1 = arith.constant 0 : i32
    return %c0_i32, %c0_i32_0 : i32, i32
  }
  func.func @transform_1(%arg0: i32) -> (i32, i32) {
    %c0_i32 = arith.constant 0 : i32
    %c0_i32_0 = arith.constant 0 : i32
    %c0_i32_1 = arith.constant 0 : i32
    return %c0_i32, %c0_i32_0 : i32, i32
  }
  func.func @transform_2(%arg0: i32) -> (i32, i32) {
    %c0_i32 = arith.constant 0 : i32
    %c0_i32_0 = arith.constant 0 : i32
    %c0_i32_1 = arith.constant 0 : i32
    return %c0_i32, %c0_i32_0 : i32, i32
  }
  func.func @transform_3(%arg0: i32) -> (i32, i32) {
    %c0_i32 = arith.constant 0 : i32
    %c0_i32_0 = arith.constant 0 : i32
    %c0_i32_1 = arith.constant 0 : i32
    return %c0_i32, %c0_i32_0 : i32, i32
  }
}

module attributes {stable_mosaic.version = 11 : i64} {
  func.func @conv_head_kernel(%arg0: i32, %arg1: memref<400x24xbf16, #tpu.memory_space<vmem>>, %arg2: memref<1x400xbf16, #tpu.memory_space<vmem>>, %arg3: memref<1x1xf32, #tpu.memory_space<vmem>>, %arg4: memref<12x64xbf16, #tpu.memory_space<vmem>>, %arg5: memref<1x64xf32, #tpu.memory_space<vmem>>, %arg6: memref<64x32xbf16, #tpu.memory_space<vmem>>, %arg7: memref<1x32xf32, #tpu.memory_space<vmem>>, %arg8: memref<32x4xbf16, #tpu.memory_space<vmem>>, %arg9: memref<1x4xf32, #tpu.memory_space<vmem>>, %arg10: memref<2x4xf32, #tpu.memory_space<vmem>>) attributes {dimension_semantics = [#tpu.dimension_semantics<arbitrary>], iteration_bounds = array<i64: 1>, scalar_prefetch = 0 : i64, scratch_operands = 0 : i64, tpu.core_type = #tpu.core_type<tc>, window_params = [{pipeline_mode = #tpu.pipeline_mode<synchronous>, transform_indices = @transform_0, window_bounds = array<i64: 400, 24>}, {pipeline_mode = #tpu.pipeline_mode<synchronous>, transform_indices = @transform_1, window_bounds = array<i64: 1, 400>}, {pipeline_mode = #tpu.pipeline_mode<synchronous>, transform_indices = @transform_2, window_bounds = array<i64: 1, 1>}, {pipeline_mode = #tpu.pipeline_mode<synchronous>, transform_indices = @transform_3, window_bounds = array<i64: 12, 64>}, {pipeline_mode = #tpu.pipeline_mode<synchronous>, transform_indices = @transform_4, window_bounds = array<i64: 1, 64>}, {pipeline_mode = #tpu.pipeline_mode<synchronous>, transform_indices = @transform_5, window_bounds = array<i64: 64, 32>}, {pipeline_mode = #tpu.pipeline_mode<synchronous>, transform_indices = @transform_6, window_bounds = array<i64: 1, 32>}, {pipeline_mode = #tpu.pipeline_mode<synchronous>, transform_indices = @transform_7, window_bounds = array<i64: 32, 4>}, {pipeline_mode = #tpu.pipeline_mode<synchronous>, transform_indices = @transform_8, window_bounds = array<i64: 1, 4>}, {pipeline_mode = #tpu.pipeline_mode<synchronous>, transform_indices = @transform_9, window_bounds = array<i64: 2, 4>}]} {
    %c0 = arith.constant 0 : index
    %c0_0 = arith.constant 0 : index
    %0 = vector.load %arg2[%c0, %c0_0] : memref<1x400xbf16, #tpu.memory_space<vmem>>, vector<1x400xbf16>
    %c0_1 = arith.constant 0 : index
    %c0_2 = arith.constant 0 : index
    %1 = vector.load %arg1[%c0_1, %c0_2] : memref<400x24xbf16, #tpu.memory_space<vmem>>, vector<400x24xbf16>
    %cst = arith.constant dense<0.000000e+00> : vector<1x24xf32>
    %2 = tpu.matmul %0, %1, %cst {dimension_numbers = #tpu.dot_dimension_numbers<[1], [0], [0], [1], [0, 0, 1, 1], [], []>} : vector<1x400xbf16>, vector<400x24xbf16>, vector<1x24xf32> -> vector<1x24xf32>
    %c0_3 = arith.constant 0 : index
    %c0_4 = arith.constant 0 : index
    %3 = vector.load %arg3[%c0_3, %c0_4] : memref<1x1xf32, #tpu.memory_space<vmem>>, vector<1x1xf32>
    %4 = vector.broadcast %3 : vector<1x1xf32> to vector<1x24xf32>
    %5 = arith.addf %2, %4 : vector<1x24xf32>
    %6 = vector.extract_strided_slice %5 {offsets = [0, 0], sizes = [1, 12], strides = [1, 1]} : vector<1x24xf32> to vector<1x12xf32>
    %7 = vector.extract_strided_slice %5 {offsets = [0, 12], sizes = [1, 12], strides = [1, 1]} : vector<1x24xf32> to vector<1x12xf32>
    %8 = tpu.concatenate %6, %7 in 0 : vector<1x12xf32>, vector<1x12xf32> -> vector<2x12xf32>
    %9 = arith.truncf %8 : vector<2x12xf32> to vector<2x12xbf16>
    %c0_5 = arith.constant 0 : index
    %c0_6 = arith.constant 0 : index
    %10 = vector.load %arg4[%c0_5, %c0_6] : memref<12x64xbf16, #tpu.memory_space<vmem>>, vector<12x64xbf16>
    %cst_7 = arith.constant dense<0.000000e+00> : vector<2x64xf32>
    %11 = tpu.matmul %9, %10, %cst_7 {dimension_numbers = #tpu.dot_dimension_numbers<[1], [0], [0], [1], [0, 0, 1, 1], [], []>} : vector<2x12xbf16>, vector<12x64xbf16>, vector<2x64xf32> -> vector<2x64xf32>
    %c0_8 = arith.constant 0 : index
    %c0_9 = arith.constant 0 : index
    %12 = vector.load %arg5[%c0_8, %c0_9] : memref<1x64xf32, #tpu.memory_space<vmem>>, vector<1x64xf32>
    %13 = vector.broadcast %12 : vector<1x64xf32> to vector<2x64xf32>
    %14 = arith.addf %11, %13 : vector<2x64xf32>
    %cst_10 = arith.constant 0.000000e+00 : f32
    %15 = vector.broadcast %cst_10 : f32 to vector<2x64xf32>
    %16 = arith.cmpf ogt, %14, %15 : vector<2x64xf32>
    %cst_11 = arith.constant 1.000000e-01 : f32
    %17 = vector.broadcast %cst_11 : f32 to vector<2x64xf32>
    %18 = arith.mulf %17, %14 : vector<2x64xf32>
    %19 = arith.select %16, %14, %18 : vector<2x64xi1>, vector<2x64xf32>
    %20 = arith.truncf %19 : vector<2x64xf32> to vector<2x64xbf16>
    %c0_12 = arith.constant 0 : index
    %c0_13 = arith.constant 0 : index
    %21 = vector.load %arg6[%c0_12, %c0_13] : memref<64x32xbf16, #tpu.memory_space<vmem>>, vector<64x32xbf16>
    %cst_14 = arith.constant dense<0.000000e+00> : vector<2x32xf32>
    %22 = tpu.matmul %20, %21, %cst_14 {dimension_numbers = #tpu.dot_dimension_numbers<[1], [0], [0], [1], [0, 0, 1, 1], [], []>} : vector<2x64xbf16>, vector<64x32xbf16>, vector<2x32xf32> -> vector<2x32xf32>
    %c0_15 = arith.constant 0 : index
    %c0_16 = arith.constant 0 : index
    %23 = vector.load %arg7[%c0_15, %c0_16] : memref<1x32xf32, #tpu.memory_space<vmem>>, vector<1x32xf32>
    %24 = vector.broadcast %23 : vector<1x32xf32> to vector<2x32xf32>
    %25 = arith.addf %22, %24 : vector<2x32xf32>
    %cst_17 = arith.constant 0.000000e+00 : f32
    %26 = vector.broadcast %cst_17 : f32 to vector<2x32xf32>
    %27 = arith.cmpf ogt, %25, %26 : vector<2x32xf32>
    %cst_18 = arith.constant 1.000000e-01 : f32
    %28 = vector.broadcast %cst_18 : f32 to vector<2x32xf32>
    %29 = arith.mulf %28, %25 : vector<2x32xf32>
    %30 = arith.select %27, %25, %29 : vector<2x32xi1>, vector<2x32xf32>
    %31 = arith.truncf %30 : vector<2x32xf32> to vector<2x32xbf16>
    %c0_19 = arith.constant 0 : index
    %c0_20 = arith.constant 0 : index
    %32 = vector.load %arg8[%c0_19, %c0_20] : memref<32x4xbf16, #tpu.memory_space<vmem>>, vector<32x4xbf16>
    %cst_21 = arith.constant dense<0.000000e+00> : vector<2x4xf32>
    %33 = tpu.matmul %31, %32, %cst_21 {dimension_numbers = #tpu.dot_dimension_numbers<[1], [0], [0], [1], [0, 0, 1, 1], [], []>} : vector<2x32xbf16>, vector<32x4xbf16>, vector<2x4xf32> -> vector<2x4xf32>
    %c0_22 = arith.constant 0 : index
    %c0_23 = arith.constant 0 : index
    %34 = vector.load %arg9[%c0_22, %c0_23] : memref<1x4xf32, #tpu.memory_space<vmem>>, vector<1x4xf32>
    %35 = vector.broadcast %34 : vector<1x4xf32> to vector<2x4xf32>
    %36 = arith.addf %33, %35 : vector<2x4xf32>
    %c0_24 = arith.constant 0 : index
    %c0_25 = arith.constant 0 : index
    %37 = vector.load %arg10[%c0_24, %c0_25] : memref<2x4xf32, #tpu.memory_space<vmem>>, vector<2x4xf32>
    tpu.vector_store %arg10[%c0_24, %c0_25], %36 {strides = array<i32>} : memref<2x4xf32, #tpu.memory_space<vmem>>, vector<2x4xf32>,
    return
  }
  func.func @transform_0(%arg0: i32) -> (i32, i32) {
    %c0_i32 = arith.constant 0 : i32
    %c0_i32_0 = arith.constant 0 : i32
    %c0_i32_1 = arith.constant 0 : i32
    return %c0_i32, %c0_i32_0 : i32, i32
  }
  func.func @transform_1(%arg0: i32) -> (i32, i32) {
    %c0_i32 = arith.constant 0 : i32
    %c0_i32_0 = arith.constant 0 : i32
    %c0_i32_1 = arith.constant 0 : i32
    return %c0_i32, %c0_i32_0 : i32, i32
  }
  func.func @transform_2(%arg0: i32) -> (i32, i32) {
    %c0_i32 = arith.constant 0 : i32
    %c0_i32_0 = arith.constant 0 : i32
    %c0_i32_1 = arith.constant 0 : i32
    return %c0_i32, %c0_i32_0 : i32, i32
  }
  func.func @transform_3(%arg0: i32) -> (i32, i32) {
    %c0_i32 = arith.constant 0 : i32
    %c0_i32_0 = arith.constant 0 : i32
    %c0_i32_1 = arith.constant 0 : i32
    return %c0_i32, %c0_i32_0 : i32, i32
  }
  func.func @transform_4(%arg0: i32) -> (i32, i32) {
    %c0_i32 = arith.constant 0 : i32
    %c0_i32_0 = arith.constant 0 : i32
    %c0_i32_1 = arith.constant 0 : i32
    return %c0_i32, %c0_i32_0 : i32, i32
  }
  func.func @transform_5(%arg0: i32) -> (i32, i32) {
    %c0_i32 = arith.constant 0 : i32
    %c0_i32_0 = arith.constant 0 : i32
    %c0_i32_1 = arith.constant 0 : i32
    return %c0_i32, %c0_i32_0 : i32, i32
  }
  func.func @transform_6(%arg0: i32) -> (i32, i32) {
    %c0_i32 = arith.constant 0 : i32
    %c0_i32_0 = arith.constant 0 : i32
    %c0_i32_1 = arith.constant 0 : i32
    return %c0_i32, %c0_i32_0 : i32, i32
  }
  func.func @transform_7(%arg0: i32) -> (i32, i32) {
    %c0_i32 = arith.constant 0 : i32
    %c0_i32_0 = arith.constant 0 : i32
    %c0_i32_1 = arith.constant 0 : i32
    return %c0_i32, %c0_i32_0 : i32, i32
  }
  func.func @transform_8(%arg0: i32) -> (i32, i32) {
    %c0_i32 = arith.constant 0 : i32
    %c0_i32_0 = arith.constant 0 : i32
    %c0_i32_1 = arith.constant 0 : i32
    return %c0_i32, %c0_i32_0 : i32, i32
  }
  func.func @transform_9(%arg0: i32) -> (i32, i32) {
    %c0_i32 = arith.constant 0 : i32
    %c0_i32_0 = arith.constant 0 : i32
    %c0_i32_1 = arith.constant 0 : i32
    return %c0_i32, %c0_i32_0 : i32, i32
  }
}

</mosaic_0001>

<llo_original>
// kernel: forward.4
$region0: #{forward.4}
  #allocation0 [shape = 'u32[]', space=smem, size = 0x4, offset = 0x4, fixed_abs, tag = 'smem constant byte address 0x4 - core index']
  #allocation1 [shape = 'u32[144,128]{1,0:T(1,128)}', space=vmem, size = 0x12000, scoped, tag = 'internal scratch']
  #allocation2 [shape = 'f32[32,64]{1,0:T(8,128)}', space=vmem, size = 0x4000, scoped, tag = 'scratch operand']
  %s0 = inlined_call_operand.hbm [shape: f32[2,32,32], index: 0, kind: input, shape index: {}]
  %s1 = inlined_call_operand.hbm [shape: bf16[32,128], index: 1, kind: input, shape index: {}]
  %s2 = inlined_call_operand.hbm [shape: f32[1,128], index: 2, kind: input, shape index: {}]
  %s3 = inlined_call_operand.vmem [shape: bf16[128,64], index: 3, kind: input, shape index: {}]
  %s4 = inlined_call_operand.hbm [shape: f32[1,64], index: 4, kind: input, shape index: {}]
  %s5 = inlined_call_operand.vmem [shape: bf16[128,64], index: 5, kind: input, shape index: {}]
  %s6 = inlined_call_operand.vmem [shape: f32[5,128,1], index: 6, kind: input, shape index: {}]
  %s7 = inlined_call_operand.hbm [shape: f32[2,1,64], index: 7, kind: input, shape index: {}]
  %s8 = inlined_call_operand.hbm [shape: f32[2,1,64], index: 8, kind: input, shape index: {}]
  %s9 = inlined_call_operand.hbm [shape: bf16[2,64,384], index: 9, kind: input, shape index: {}]
  %s10 = inlined_call_operand.hbm [shape: f32[2,1,384], index: 10, kind: input, shape index: {}]
  %s11 = inlined_call_operand.hbm [shape: f32[2,1,64], index: 11, kind: input, shape index: {}]
  %s12 = inlined_call_operand.hbm [shape: f32[2,1,64], index: 12, kind: input, shape index: {}]
  %s13 = inlined_call_operand.hbm [shape: bf16[2,32,64], index: 13, kind: input, shape index: {}]
  %s14 = inlined_call_operand.hbm [shape: bf16[2,64,64], index: 14, kind: input, shape index: {}]
  %s15 = inlined_call_operand.hbm [shape: f32[2,1,64], index: 15, kind: input, shape index: {}]
  %s16 = inlined_call_operand.hbm [shape: f32[1,64], index: 16, kind: input, shape index: {}]
  %s17 = inlined_call_operand.hbm [shape: f32[1,64], index: 17, kind: input, shape index: {}]
  %s18 = inlined_call_operand.vmem [shape: f32[2,32,64], index: 18, kind: output, shape index: {}]
  %s19 = sld [smem:[#allocation0]]
  $region173: #{forward.4} parent=0
    _
  %s21 = ssub.s32 1, %s19
  %s22 = scalar_select 0, %s21, %s19
  $region1: #{forward.4} parent=0
    #allocation3 [shape = 'u8[32768]{0}', space=vmem, size = 0x8000, scoped, tag = 'input window, operand 0']
    #allocation4 [shape = 's32[2]{0}', space=sflag, size = 0x8, scoped, tag = 'scoped memory for forward.4']
    #allocation5 [shape = 'u8[8192]{0}', space=vmem, size = 0x2000, scoped, tag = 'input window, operand 1, single buffered']
    #allocation6 [shape = 's32[1]{0}', space=sflag, size = 0x4, scoped, tag = 'scoped memory for forward.4']
    #allocation7 [shape = 'u8[512]{0}', space=vmem, size = 0x400, scoped, tag = 'input window, operand 2, single buffered']
    #allocation8 [shape = 'u8[512]{0}', space=vmem, size = 0x400, scoped, tag = 'input window, operand 4, single buffered']
    #allocation9 [shape = 's32[1]{0}', space=sflag, size = 0x4, scoped, tag = 'scoped memory for forward.4']
    #allocation10 [shape = 'u8[1024]{0}', space=vmem, size = 0x400, scoped, tag = 'input window, operand 7']
    #allocation11 [shape = 'u8[1024]{0}', space=vmem, size = 0x400, scoped, tag = 'input window, operand 8']
    #allocation12 [shape = 'u8[98304]{0}', space=vmem, size = 0x18000, scoped, tag = 'input window, operand 9']
    #allocation13 [shape = 'u8[3072]{0}', space=vmem, size = 0xc00, scoped, tag = 'input window, operand 10']
    #allocation14 [shape = 'u8[1024]{0}', space=vmem, size = 0x400, scoped, tag = 'input window, operand 11']
    #allocation15 [shape = 'u8[1024]{0}', space=vmem, size = 0x400, scoped, tag = 'input window, operand 12']
    #allocation16 [shape = 'u8[16384]{0}', space=vmem, size = 0x4000, scoped, tag = 'input window, operand 13']
    #allocation17 [shape = 'u8[32768]{0}', space=vmem, size = 0x8000, scoped, tag = 'input window, operand 14']
    #allocation18 [shape = 'u8[1024]{0}', space=vmem, size = 0x400, scoped, tag = 'input window, operand 15']
    #allocation19 [shape = 'u8[512]{0}', space=vmem, size = 0x400, scoped, tag = 'input window, operand 16, single buffered']
    #allocation20 [shape = 'u8[512]{0}', space=vmem, size = 0x400, scoped, tag = 'input window, operand 17, single buffered']
    %23 = vsyncpa [#allocation4], 0
    %s24 = scalar_lea.sflag [#allocation4], 1
    %25 = vsyncpa %s24, 0
    %26 = vsyncpa [#allocation6], 0
    %27 = vsyncpa [#allocation9], 0
    loop: start=0, step=1, limit=6
    $region2: #{forward.4} parent=1 // loop_pre_header
      _
    $region3: #{forward.4} parent=1 // loop_header
      %s29 = sphi 0, %s33
      %p30 = scmp.ge.s32.totalorder %s29, 6
      %s36 = sphi 0, %s48
      %s37 = sphi 0, %s44
      %s38 = sphi 0, %s36
      %s39 = sphi 0, %s37
      %s40 = sphi 0, %s38
      %s41 = sphi 0, %s39
      %s51 = sphi 0, %s53
      %s54 = sphi 0, %s51
      %s55 = sphi 0, %s54
      %s71 = sphi 0, %s55
      %s75 = sphi 0, %s75
      %s77 = sphi 0, %s75
      %s78 = sphi 0, %s77
      %s92 = sphi 0, %s78
      %s96 = sphi 0, %s96
      %s98 = sphi 0, %s96
      %s99 = sphi 0, %s98
      %s113 = sphi 0, %s99
      %s117 = sphi 0, %s117
      %s119 = sphi 0, %s117
      %s120 = sphi 0, %s119
      %s134 = sphi 0, %s120
      %s138 = sphi 0, %s138
      %s140 = sphi 0, %s138
      %s141 = sphi 0, %s140
      %s155 = sphi 0, %s141
      %s159 = sphi 0, %s159
      %s161 = sphi 0, %s159
      %s162 = sphi 0, %s161
      %s176 = sphi 0, %s162
      %s180 = sphi 0, %s180
      %s182 = sphi 0, %s180
      %s183 = sphi 0, %s182
      %s197 = sphi 0, %s183
      %s203 = sphi 0, %s205
      %s206 = sphi 0, %s203
      %s207 = sphi 0, %s206
      %s223 = sphi 0, %s207
      %s229 = sphi 0, %s231
      %s232 = sphi 0, %s229
      %s233 = sphi 0, %s232
      %s249 = sphi 0, %s233
      %s255 = sphi 0, %s257
      %s258 = sphi 0, %s255
      %s259 = sphi 0, %s258
      %s275 = sphi 0, %s259
      %s281 = sphi 0, %s283
      %s284 = sphi 0, %s281
      %s285 = sphi 0, %s284
      %s301 = sphi 0, %s285
      %s307 = sphi 0, %s309
      %s310 = sphi 0, %s307
      %s311 = sphi 0, %s310
      %s327 = sphi 0, %s311
      %s333 = sphi 0, %s335
      %s336 = sphi 0, %s333
      %s337 = sphi 0, %s336
      %s353 = sphi 0, %s337
      %s359 = sphi 0, %s361
      %s362 = sphi 0, %s359
      %s363 = sphi 0, %s362
      %s379 = sphi 0, %s363
      %s385 = sphi 0, %s387
      %s388 = sphi 0, %s385
      %s389 = sphi 0, %s388
      %s405 = sphi 0, %s389
      %s411 = sphi 0, %s413
      %s414 = sphi 0, %s411
      %s415 = sphi 0, %s414
      %s431 = sphi 0, %s415
      %s435 = sphi 0, %s435
      %s437 = sphi 0, %s435
      %s438 = sphi 0, %s437
      %s452 = sphi 0, %s438
      %s456 = sphi 0, %s456
      %s458 = sphi 0, %s456
      %s459 = sphi 0, %s458
      %s473 = sphi 0, %s459
      %s479 = sphi 0, %s481
      %s482 = sphi 0, %s479
      %s483 = sphi 0, %s482
      %s499 = sphi 0, %s483
    $region4: #{forward.4} parent=1 // loop_header_branch
      %32 = sbr.rel (%p30) target = $region8
    $region5: #{forward.4} parent=1 // loop_body
      %s34 = ssub.s32 %s29, 1
      %s35 = ssub.s32 %s29, 2
      %s42 = sadd.s32 1, %s37
      %p43 = scmp.ge.s32.totalorder %s42, 2
      %s44 = scalar_select %p43, 0, %s42
      %s45 = sadd.s32 1, %s36
      %s46 = scalar_select %p43, %s45, %s36
      %p47 = scmp.ge.s32.totalorder %s46, 2
      %s48 = scalar_select %p47, 0, %s46
      %s49 = ssub.s32 %s36, %s48
      %p50 = scmp.eq.s32.totalorder %s49, 0
      %s52 = sadd.s32 %s51, 1
      %s53 = scalar_select %p50, %s51, %s52
      %p56 = pneg %p50
      %p57 = scmp.eq.s32.totalorder %s29, 3
      %p58 = por %p56, %p57
      %p59 = scmp.ne.s32.totalorder %s51, %s54
      %p60 = scmp.eq.s32.totalorder %s29, 0
      %p61 = por %p59, %p60
      %p62 = scmp.ne.s32.totalorder %s51, %s54
      %p63 = scmp.eq.s32.totalorder %s34, 3
      %p64 = por %p62, %p63
      %p65 = scmp.ne.s32.totalorder %s54, %s55
      %p66 = scmp.eq.s32.totalorder %s34, 0
      %p67 = por %p65, %p66
      %p68 = scmp.ne.s32.totalorder %s54, %s55
      %p69 = scmp.eq.s32.totalorder %s35, 3
      %p70 = por %p68, %p69
      %p72 = scmp.ne.s32.totalorder %s55, %s71
      %p73 = scmp.eq.s32.totalorder %s35, 0
      %p74 = por %p72, %p73
      %s76 = sadd.s32 %s75, 1
      %p79 = scmp.eq.s32.totalorder %s29, 3
      %p80 = scmp.ne.s32.totalorder %s75, %s77
      %p81 = scmp.eq.s32.totalorder %s29, 0
      %p82 = por %p80, %p81
      %p83 = scmp.ne.s32.totalorder %s75, %s77
      %p84 = scmp.eq.s32.totalorder %s34, 3
      %p85 = por %p83, %p84
      %p86 = scmp.ne.s32.totalorder %s77, %s78
      %p87 = scmp.eq.s32.totalorder %s34, 0
      %p88 = por %p86, %p87
      %p89 = scmp.ne.s32.totalorder %s77, %s78
      %p90 = scmp.eq.s32.totalorder %s35, 3
      %p91 = por %p89, %p90
      %p93 = scmp.ne.s32.totalorder %s78, %s92
      %p94 = scmp.eq.s32.totalorder %s35, 0
      %p95 = por %p93, %p94
      %s97 = sadd.s32 %s96, 1
      %p100 = scmp.eq.s32.totalorder %s29, 3
      %p101 = scmp.ne.s32.totalorder %s96, %s98
      %p102 = scmp.eq.s32.totalorder %s29, 0
      %p103 = por %p101, %p102
      %p104 = scmp.ne.s32.totalorder %s96, %s98
      %p105 = scmp.eq.s32.totalorder %s34, 3
      %p106 = por %p104, %p105
      %p107 = scmp.ne.s32.totalorder %s98, %s99
      %p108 = scmp.eq.s32.totalorder %s34, 0
      %p109 = por %p107, %p108
      %p110 = scmp.ne.s32.totalorder %s98, %s99
      %p111 = scmp.eq.s32.totalorder %s35, 3
      %p112 = por %p110, %p111
      %p114 = scmp.ne.s32.totalorder %s99, %s113
      %p115 = scmp.eq.s32.totalorder %s35, 0
      %p116 = por %p114, %p115
      %s118 = sadd.s32 %s117, 1
      %p121 = scmp.eq.s32.totalorder %s29, 3
      %p122 = scmp.ne.s32.totalorder %s117, %s119
      %p123 = scmp.eq.s32.totalorder %s29, 0
      %p124 = por %p122, %p123
      %p125 = scmp.ne.s32.totalorder %s117, %s119
      %p126 = scmp.eq.s32.totalorder %s34, 3
      %p127 = por %p125, %p126
      %p128 = scmp.ne.s32.totalorder %s119, %s120
      %p129 = scmp.eq.s32.totalorder %s34, 0
      %p130 = por %p128, %p129
      %p131 = scmp.ne.s32.totalorder %s119, %s120
      %p132 = scmp.eq.s32.totalorder %s35, 3
      %p133 = por %p131, %p132
      %p135 = scmp.ne.s32.totalorder %s120, %s134
      %p136 = scmp.eq.s32.totalorder %s35, 0
      %p137 = por %p135, %p136
      %s139 = sadd.s32 %s138, 1
      %p142 = scmp.eq.s32.totalorder %s29, 3
      %p143 = scmp.ne.s32.totalorder %s138, %s140
      %p144 = scmp.eq.s32.totalorder %s29, 0
      %p145 = por %p143, %p144
      %p146 = scmp.ne.s32.totalorder %s138, %s140
      %p147 = scmp.eq.s32.totalorder %s34, 3
      %p148 = por %p146, %p147
      %p149 = scmp.ne.s32.totalorder %s140, %s141
      %p150 = scmp.eq.s32.totalorder %s34, 0
      %p151 = por %p149, %p150
      %p152 = scmp.ne.s32.totalorder %s140, %s141
      %p153 = scmp.eq.s32.totalorder %s35, 3
      %p154 = por %p152, %p153
      %p156 = scmp.ne.s32.totalorder %s141, %s155
      %p157 = scmp.eq.s32.totalorder %s35, 0
      %p158 = por %p156, %p157
      %s160 = sadd.s32 %s159, 1
      %p163 = scmp.eq.s32.totalorder %s29, 3
      %p164 = scmp.ne.s32.totalorder %s159, %s161
      %p165 = scmp.eq.s32.totalorder %s29, 0
      %p166 = por %p164, %p165
      %p167 = scmp.ne.s32.totalorder %s159, %s161
      %p168 = scmp.eq.s32.totalorder %s34, 3
      %p169 = por %p167, %p168
      %p170 = scmp.ne.s32.totalorder %s161, %s162
      %p171 = scmp.eq.s32.totalorder %s34, 0
      %p172 = por %p170, %p171
      %p173 = scmp.ne.s32.totalorder %s161, %s162
      %p174 = scmp.eq.s32.totalorder %s35, 3
      %p175 = por %p173, %p174
      %p177 = scmp.ne.s32.totalorder %s162, %s176
      %p178 = scmp.eq.s32.totalorder %s35, 0
      %p179 = por %p177, %p178
      %s181 = sadd.s32 %s180, 1
      %p184 = scmp.eq.s32.totalorder %s29, 3
      %p185 = scmp.ne.s32.totalorder %s180, %s182
      %p186 = scmp.eq.s32.totalorder %s29, 0
      %p187 = por %p185, %p186
      %p188 = scmp.ne.s32.totalorder %s180, %s182
      %p189 = scmp.eq.s32.totalorder %s34, 3
      %p190 = por %p188, %p189
      %p191 = scmp.ne.s32.totalorder %s182, %s183
      %p192 = scmp.eq.s32.totalorder %s34, 0
      %p193 = por %p191, %p192
      %p194 = scmp.ne.s32.totalorder %s182, %s183
      %p195 = scmp.eq.s32.totalorder %s35, 3
      %p196 = por %p194, %p195
      %p198 = scmp.ne.s32.totalorder %s183, %s197
      %p199 = scmp.eq.s32.totalorder %s35, 0
      %p200 = por %p198, %p199
      %s201 = ssub.s32 %s37, %s44
      %p202 = scmp.eq.s32.totalorder %s201, 0
      %s204 = sadd.s32 %s203, 1
      %s205 = scalar_select %p202, %s203, %s204
      %p208 = pneg %p202
      %p209 = scmp.eq.s32.totalorder %s29, 3
      %p210 = por %p208, %p209
      %p211 = scmp.ne.s32.totalorder %s203, %s206
      %p212 = scmp.eq.s32.totalorder %s29, 0
      %p213 = por %p211, %p212
      %p214 = scmp.ne.s32.totalorder %s203, %s206
      %p215 = scmp.eq.s32.totalorder %s34, 3
      %p216 = por %p214, %p215
      %p217 = scmp.ne.s32.totalorder %s206, %s207
      %p218 = scmp.eq.s32.totalorder %s34, 0
      %p219 = por %p217, %p218
      %p220 = scmp.ne.s32.totalorder %s206, %s207
      %p221 = scmp.eq.s32.totalorder %s35, 3
      %p222 = por %p220, %p221
      %p224 = scmp.ne.s32.totalorder %s207, %s223
      %p225 = scmp.eq.s32.totalorder %s35, 0
      %p226 = por %p224, %p225
      %s227 = ssub.s32 %s37, %s44
      %p228 = scmp.eq.s32.totalorder %s227, 0
      %s230 = sadd.s32 %s229, 1
      %s231 = scalar_select %p228, %s229, %s230
      %p234 = pneg %p228
      %p235 = scmp.eq.s32.totalorder %s29, 3
      %p236 = por %p234, %p235
      %p237 = scmp.ne.s32.totalorder %s229, %s232
      %p238 = scmp.eq.s32.totalorder %s29, 0
      %p239 = por %p237, %p238
      %p240 = scmp.ne.s32.totalorder %s229, %s232
      %p241 = scmp.eq.s32.totalorder %s34, 3
      %p242 = por %p240, %p241
      %p243 = scmp.ne.s32.totalorder %s232, %s233
      %p244 = scmp.eq.s32.totalorder %s34, 0
      %p245 = por %p243, %p244
      %p246 = scmp.ne.s32.totalorder %s232, %s233
      %p247 = scmp.eq.s32.totalorder %s35, 3
      %p248 = por %p246, %p247
      %p250 = scmp.ne.s32.totalorder %s233, %s249
      %p251 = scmp.eq.s32.totalorder %s35, 0
      %p252 = por %p250, %p251
      %s253 = ssub.s32 %s37, %s44
      %p254 = scmp.eq.s32.totalorder %s253, 0
      %s256 = sadd.s32 %s255, 1
      %s257 = scalar_select %p254, %s255, %s256
      %p260 = pneg %p254
      %p261 = scmp.eq.s32.totalorder %s29, 3
      %p262 = por %p260, %p261
      %p263 = scmp.ne.s32.totalorder %s255, %s258
      %p264 = scmp.eq.s32.totalorder %s29, 0
      %p265 = por %p263, %p264
      %p266 = scmp.ne.s32.totalorder %s255, %s258
      %p267 = scmp.eq.s32.totalorder %s34, 3
      %p268 = por %p266, %p267
      %p269 = scmp.ne.s32.totalorder %s258, %s259
      %p270 = scmp.eq.s32.totalorder %s34, 0
      %p271 = por %p269, %p270
      %p272 = scmp.ne.s32.totalorder %s258, %s259
      %p273 = scmp.eq.s32.totalorder %s35, 3
      %p274 = por %p272, %p273
      %p276 = scmp.ne.s32.totalorder %s259, %s275
      %p277 = scmp.eq.s32.totalorder %s35, 0
      %p278 = por %p276, %p277
      %s279 = ssub.s32 %s37, %s44
      %p280 = scmp.eq.s32.totalorder %s279, 0
      %s282 = sadd.s32 %s281, 1
      %s283 = scalar_select %p280, %s281, %s282
      %p286 = pneg %p280
      %p287 = scmp.eq.s32.totalorder %s29, 3
      %p288 = por %p286, %p287
      %p289 = scmp.ne.s32.totalorder %s281, %s284
      %p290 = scmp.eq.s32.totalorder %s29, 0
      %p291 = por %p289, %p290
      %p292 = scmp.ne.s32.totalorder %s281, %s284
      %p293 = scmp.eq.s32.totalorder %s34, 3
      %p294 = por %p292, %p293
      %p295 = scmp.ne.s32.totalorder %s284, %s285
      %p296 = scmp.eq.s32.totalorder %s34, 0
      %p297 = por %p295, %p296
      %p298 = scmp.ne.s32.totalorder %s284, %s285
      %p299 = scmp.eq.s32.totalorder %s35, 3
      %p300 = por %p298, %p299
      %p302 = scmp.ne.s32.totalorder %s285, %s301
      %p303 = scmp.eq.s32.totalorder %s35, 0
      %p304 = por %p302, %p303
      %s305 = ssub.s32 %s37, %s44
      %p306 = scmp.eq.s32.totalorder %s305, 0
      %s308 = sadd.s32 %s307, 1
      %s309 = scalar_select %p306, %s307, %s308
      %p312 = pneg %p306
      %p313 = scmp.eq.s32.totalorder %s29, 3
      %p314 = por %p312, %p313
      %p315 = scmp.ne.s32.totalorder %s307, %s310
      %p316 = scmp.eq.s32.totalorder %s29, 0
      %p317 = por %p315, %p316
      %p318 = scmp.ne.s32.totalorder %s307, %s310
      %p319 = scmp.eq.s32.totalorder %s34, 3
      %p320 = por %p318, %p319
      %p321 = scmp.ne.s32.totalorder %s310, %s311
      %p322 = scmp.eq.s32.totalorder %s34, 0
      %p323 = por %p321, %p322
      %p324 = scmp.ne.s32.totalorder %s310, %s311
      %p325 = scmp.eq.s32.totalorder %s35, 3
      %p326 = por %p324, %p325
      %p328 = scmp.ne.s32.totalorder %s311, %s327
      %p329 = scmp.eq.s32.totalorder %s35, 0
      %p330 = por %p328, %p329
      %s331 = ssub.s32 %s37, %s44
      %p332 = scmp.eq.s32.totalorder %s331, 0
      %s334 = sadd.s32 %s333, 1
      %s335 = scalar_select %p332, %s333, %s334
      %p338 = pneg %p332
      %p339 = scmp.eq.s32.totalorder %s29, 3
      %p340 = por %p338, %p339
      %p341 = scmp.ne.s32.totalorder %s333, %s336
      %p342 = scmp.eq.s32.totalorder %s29, 0
      %p343 = por %p341, %p342
      %p344 = scmp.ne.s32.totalorder %s333, %s336
      %p345 = scmp.eq.s32.totalorder %s34, 3
      %p346 = por %p344, %p345
      %p347 = scmp.ne.s32.totalorder %s336, %s337
      %p348 = scmp.eq.s32.totalorder %s34, 0
      %p349 = por %p347, %p348
      %p350 = scmp.ne.s32.totalorder %s336, %s337
      %p351 = scmp.eq.s32.totalorder %s35, 3
      %p352 = por %p350, %p351
      %p354 = scmp.ne.s32.totalorder %s337, %s353
      %p355 = scmp.eq.s32.totalorder %s35, 0
      %p356 = por %p354, %p355
      %s357 = ssub.s32 %s37, %s44
      %p358 = scmp.eq.s32.totalorder %s357, 0
      %s360 = sadd.s32 %s359, 1
      %s361 = scalar_select %p358, %s359, %s360
      %p364 = pneg %p358
      %p365 = scmp.eq.s32.totalorder %s29, 3
      %p366 = por %p364, %p365
      %p367 = scmp.ne.s32.totalorder %s359, %s362
      %p368 = scmp.eq.s32.totalorder %s29, 0
      %p369 = por %p367, %p368
      %p370 = scmp.ne.s32.totalorder %s359, %s362
      %p371 = scmp.eq.s32.totalorder %s34, 3
      %p372 = por %p370, %p371
      %p373 = scmp.ne.s32.totalorder %s362, %s363
      %p374 = scmp.eq.s32.totalorder %s34, 0
      %p375 = por %p373, %p374
      %p376 = scmp.ne.s32.totalorder %s362, %s363
      %p377 = scmp.eq.s32.totalorder %s35, 3
      %p378 = por %p376, %p377
      %p380 = scmp.ne.s32.totalorder %s363, %s379
      %p381 = scmp.eq.s32.totalorder %s35, 0
      %p382 = por %p380, %p381
      %s383 = ssub.s32 %s37, %s44
      %p384 = scmp.eq.s32.totalorder %s383, 0
      %s386 = sadd.s32 %s385, 1
      %s387 = scalar_select %p384, %s385, %s386
      %p390 = pneg %p384
      %p391 = scmp.eq.s32.totalorder %s29, 3
      %p392 = por %p390, %p391
      %p393 = scmp.ne.s32.totalorder %s385, %s388
      %p394 = scmp.eq.s32.totalorder %s29, 0
      %p395 = por %p393, %p394
      %p396 = scmp.ne.s32.totalorder %s385, %s388
      %p397 = scmp.eq.s32.totalorder %s34, 3
      %p398 = por %p396, %p397
      %p399 = scmp.ne.s32.totalorder %s388, %s389
      %p400 = scmp.eq.s32.totalorder %s34, 0
      %p401 = por %p399, %p400
      %p402 = scmp.ne.s32.totalorder %s388, %s389
      %p403 = scmp.eq.s32.totalorder %s35, 3
      %p404 = por %p402, %p403
      %p406 = scmp.ne.s32.totalorder %s389, %s405
      %p407 = scmp.eq.s32.totalorder %s35, 0
      %p408 = por %p406, %p407
      %s409 = ssub.s32 %s37, %s44
      %p410 = scmp.eq.s32.totalorder %s409, 0
      %s412 = sadd.s32 %s411, 1
      %s413 = scalar_select %p410, %s411, %s412
      %p416 = pneg %p410
      %p417 = scmp.eq.s32.totalorder %s29, 3
      %p418 = por %p416, %p417
      %p419 = scmp.ne.s32.totalorder %s411, %s414
      %p420 = scmp.eq.s32.totalorder %s29, 0
      %p421 = por %p419, %p420
      %p422 = scmp.ne.s32.totalorder %s411, %s414
      %p423 = scmp.eq.s32.totalorder %s34, 3
      %p424 = por %p422, %p423
      %p425 = scmp.ne.s32.totalorder %s414, %s415
      %p426 = scmp.eq.s32.totalorder %s34, 0
      %p427 = por %p425, %p426
      %p428 = scmp.ne.s32.totalorder %s414, %s415
      %p429 = scmp.eq.s32.totalorder %s35, 3
      %p430 = por %p428, %p429
      %p432 = scmp.ne.s32.totalorder %s415, %s431
      %p433 = scmp.eq.s32.totalorder %s35, 0
      %p434 = por %p432, %p433
      %s436 = sadd.s32 %s435, 1
      %p439 = scmp.eq.s32.totalorder %s29, 3
      %p440 = scmp.ne.s32.totalorder %s435, %s437
      %p441 = scmp.eq.s32.totalorder %s29, 0
      %p442 = por %p440, %p441
      %p443 = scmp.ne.s32.totalorder %s435, %s437
      %p444 = scmp.eq.s32.totalorder %s34, 3
      %p445 = por %p443, %p444
      %p446 = scmp.ne.s32.totalorder %s437, %s438
      %p447 = scmp.eq.s32.totalorder %s34, 0
      %p448 = por %p446, %p447
      %p449 = scmp.ne.s32.totalorder %s437, %s438
      %p450 = scmp.eq.s32.totalorder %s35, 3
      %p451 = por %p449, %p450
      %p453 = scmp.ne.s32.totalorder %s438, %s452
      %p454 = scmp.eq.s32.totalorder %s35, 0
      %p455 = por %p453, %p454
      %s457 = sadd.s32 %s456, 1
      %p460 = scmp.eq.s32.totalorder %s29, 3
      %p461 = scmp.ne.s32.totalorder %s456, %s458
      %p462 = scmp.eq.s32.totalorder %s29, 0
      %p463 = por %p461, %p462
      %p464 = scmp.ne.s32.totalorder %s456, %s458
      %p465 = scmp.eq.s32.totalorder %s34, 3
      %p466 = por %p464, %p465
      %p467 = scmp.ne.s32.totalorder %s458, %s459
      %p468 = scmp.eq.s32.totalorder %s34, 0
      %p469 = por %p467, %p468
      %p470 = scmp.ne.s32.totalorder %s458, %s459
      %p471 = scmp.eq.s32.totalorder %s35, 3
      %p472 = por %p470, %p471
      %p474 = scmp.ne.s32.totalorder %s459, %s473
      %p475 = scmp.eq.s32.totalorder %s35, 0
      %p476 = por %p474, %p475
      %s477 = ssub.s32 %s36, %s48
      %p478 = scmp.eq.s32.totalorder %s477, 0
      %s480 = sadd.s32 %s479, 1
      %s481 = scalar_select %p478, %s479, %s480
      %p484 = pneg %p478
      %p485 = scmp.eq.s32.totalorder %s29, 3
      %p486 = por %p484, %p485
      %p487 = scmp.ne.s32.totalorder %s479, %s482
      %p488 = scmp.eq.s32.totalorder %s29, 0
      %p489 = por %p487, %p488
      %p490 = scmp.ne.s32.totalorder %s479, %s482
      %p491 = scmp.eq.s32.totalorder %s34, 3
      %p492 = por %p490, %p491
      %p493 = scmp.ne.s32.totalorder %s482, %s483
      %p494 = scmp.eq.s32.totalorder %s34, 0
      %p495 = por %p493, %p494
      %p496 = scmp.ne.s32.totalorder %s482, %s483
      %p497 = scmp.eq.s32.totalorder %s35, 3
      %p498 = por %p496, %p497
      %p500 = scmp.ne.s32.totalorder %s483, %s499
      %p501 = scmp.eq.s32.totalorder %s35, 0
      %p502 = por %p500, %p501
      %p503 = scmp.le.s32.totalorder 1, %s29
      %p504 = scmp.lt.s32.totalorder %s29, 5
      %p505 = pnand %p503, %p504
      %p506 = pneg %p505
      // Predicated region
      $region9: #{forward.4} parent=5 // pred_check
        _
      $region10: #{forward.4} parent=5 // pred_check_branch
        %508 = sbr.rel (%p505) target = $region12
      $region11: #{forward.4} parent=5 // pred_region
        %s509 = ssub.s32 %s29, 1
        // Predicated region
        $region13: #{forward.4} parent=11 // pred_check
          %p510 = pneg %p88
        $region14: #{forward.4} parent=11 // pred_check_branch
          %512 = sbr.rel (%p510) target = $region16
        $region15: #{forward.4} parent=11 // pred_region
          %s514 = ssub.s32 256, 256
          %515 = vsyncadd [#allocation6], %s514
          %s516 = sshll.u32 [#allocation5], 4
          %s517 = int_to_ptr.vmem [resolvable:$true] %s516
          %522 = dma.hbm_to_vmem [thread:$0]  %s1, 256, %s517, [#allocation6], 64, 64, 4
        $region16: #{forward.4} parent=11 // pred_fallthru
          _
        // Predicated region
        $region17: #{forward.4} parent=11 // pred_check
          %p523 = pneg %p109
        $region18: #{forward.4} parent=11 // pred_check_branch
          %525 = sbr.rel (%p523) target = $region20
        $region19: #{forward.4} parent=11 // pred_region
          %s527 = ssub.s32 16, 16
          %528 = vsyncadd [#allocation6], %s527
          %s530 = sshll.u32 [#allocation7], 4
          %s531 = int_to_ptr.vmem [resolvable:$true] %s530
          %533 = dma.hbm_to_vmem [thread:$0]  %s2, 16, %s531, [#allocation6]
        $region20: #{forward.4} parent=11 // pred_fallthru
          _
        // Predicated region
        $region21: #{forward.4} parent=11 // pred_check
          %p534 = pneg %p130
        $region22: #{forward.4} parent=11 // pred_check_branch
          %536 = sbr.rel (%p534) target = $region24
        $region23: #{forward.4} parent=11 // pred_region
          _
        $region24: #{forward.4} parent=11 // pred_fallthru
          _
        // Predicated region
        $region25: #{forward.4} parent=11 // pred_check
          %p537 = pneg %p151
        $region26: #{forward.4} parent=11 // pred_check_branch
          %539 = sbr.rel (%p537) target = $region28
        $region27: #{forward.4} parent=11 // pred_region
          %s541 = ssub.s32 16, 16
          %542 = vsyncadd [#allocation9], %s541
          %s544 = sshll.u32 [#allocation8], 4
          %s545 = int_to_ptr.vmem [resolvable:$true] %s544
          %547 = dma.hbm_to_vmem [thread:$0]  %s4, 16, %s545, [#allocation9]
        $region28: #{forward.4} parent=11 // pred_fallthru
          _
        // Predicated region
        $region29: #{forward.4} parent=11 // pred_check
          %p548 = pneg %p172
        $region30: #{forward.4} parent=11 // pred_check_branch
          %550 = sbr.rel (%p548) target = $region32
        $region31: #{forward.4} parent=11 // pred_region
          _
        $region32: #{forward.4} parent=11 // pred_fallthru
          _
        // Predicated region
        $region33: #{forward.4} parent=11 // pred_check
          %p551 = pneg %p193
        $region34: #{forward.4} parent=11 // pred_check_branch
          %553 = sbr.rel (%p551) target = $region36
        $region35: #{forward.4} parent=11 // pred_region
          _
        $region36: #{forward.4} parent=11 // pred_fallthru
          _
        // Predicated region
        $region37: #{forward.4} parent=11 // pred_check
          %p554 = pneg %p448
        $region38: #{forward.4} parent=11 // pred_check_branch
          %556 = sbr.rel (%p554) target = $region40
        $region39: #{forward.4} parent=11 // pred_region
          %s558 = ssub.s32 16, 16
          %559 = vsyncadd [#allocation6], %s558
          %s561 = sshll.u32 [#allocation19], 4
          %s562 = int_to_ptr.vmem [resolvable:$true] %s561
          %564 = dma.hbm_to_vmem [thread:$0]  %s16, 16, %s562, [#allocation6]
        $region40: #{forward.4} parent=11 // pred_fallthru
          _
        // Predicated region
        $region41: #{forward.4} parent=11 // pred_check
          %p565 = pneg %p469
        $region42: #{forward.4} parent=11 // pred_check_branch
          %567 = sbr.rel (%p565) target = $region44
        $region43: #{forward.4} parent=11 // pred_region
          %s569 = ssub.s32 16, 16
          %570 = vsyncadd [#allocation9], %s569
          %s572 = sshll.u32 [#allocation20], 4
          %s573 = int_to_ptr.vmem [resolvable:$true] %s572
          %575 = dma.hbm_to_vmem [thread:$0]  %s17, 16, %s573, [#allocation9]
        $region44: #{forward.4} parent=11 // pred_fallthru
          _
      $region12: #{forward.4} parent=5 // pred_fallthru
        _
      %p576 = scmp.lt.s32.totalorder %s29, 4
      // Predicated region
      $region45: #{forward.4} parent=5 // pred_check
        %p577 = pneg %p576
      $region46: #{forward.4} parent=5 // pred_check_branch
        %579 = sbr.rel (%p577) target = $region48
      $region47: #{forward.4} parent=5 // pred_region
        // Predicated region
        $region49: #{forward.4} parent=47 // pred_check
          %p580 = pneg %p61
        $region50: #{forward.4} parent=47 // pred_check_branch
          %582 = sbr.rel (%p580) target = $region52
        $region51: #{forward.4} parent=47 // pred_region
          %s583 = sand.u32 %s29, 1
          %s584 = scalar_lea.sflag [#allocation4], %s583
          %s585 = sand.u32 %s51, 1
          %s586 = smul.addr %s585, 32
          %s587 = scalar_lea.vmem [#allocation3], %s586
          %s589 = ssub.s32 512, 512
          %590 = vsyncadd %s584, %s589
          %s591 = smul.addr %s36, 4
          %s592 = smul.addr %s591, 128
          %s593 = scalar_lea.hbm %s0, %s592
          %s594 = sshll.u32 %s587, 4
          %s595 = int_to_ptr.vmem [resolvable:$true] %s594
          %600 = dma.hbm_to_vmem [thread:$0]  %s593, 512, %s595, %s584, 128, 128, 8
        $region52: #{forward.4} parent=47 // pred_fallthru
          _
        // Predicated region
        $region53: #{forward.4} parent=47 // pred_check
          %p601 = pneg %p213
        $region54: #{forward.4} parent=47 // pred_check_branch
          %603 = sbr.rel (%p601) target = $region56
        $region55: #{forward.4} parent=47 // pred_region
          %s604 = sand.u32 %s29, 1
          %s605 = scalar_lea.sflag [#allocation4], %s604
          %s606 = sand.u32 %s203, 1
          %s607 = scalar_lea.vmem [#allocation10], %s606
          %s609 = ssub.s32 16, 16
          %610 = vsyncadd %s605, %s609
          %s611 = smul.addr %s37, 16
          %s612 = scalar_lea.hbm %s7, %s611
          %s614 = sshll.u32 %s607, 4
          %s615 = int_to_ptr.vmem [resolvable:$true] %s614
          %617 = dma.hbm_to_vmem [thread:$0]  %s612, 16, %s615, %s605
        $region56: #{forward.4} parent=47 // pred_fallthru
          _
        // Predicated region
        $region57: #{forward.4} parent=47 // pred_check
          %p618 = pneg %p239
        $region58: #{forward.4} parent=47 // pred_check_branch
          %620 = sbr.rel (%p618) target = $region60
        $region59: #{forward.4} parent=47 // pred_region
          %s621 = sand.u32 %s29, 1
          %s622 = scalar_lea.sflag [#allocation4], %s621
          %s623 = sand.u32 %s229, 1
          %s624 = scalar_lea.vmem [#allocation11], %s623
          %s626 = ssub.s32 16, 16
          %627 = vsyncadd %s622, %s626
          %s628 = smul.addr %s37, 16
          %s629 = scalar_lea.hbm %s8, %s628
          %s631 = sshll.u32 %s624, 4
          %s632 = int_to_ptr.vmem [resolvable:$true] %s631
          %634 = dma.hbm_to_vmem [thread:$0]  %s629, 16, %s632, %s622
        $region60: #{forward.4} parent=47 // pred_fallthru
          _
        // Predicated region
        $region61: #{forward.4} parent=47 // pred_check
          %p635 = pneg %p265
        $region62: #{forward.4} parent=47 // pred_check_branch
          %637 = sbr.rel (%p635) target = $region64
        $region63: #{forward.4} parent=47 // pred_region
          %s638 = sand.u32 %s29, 1
          %s639 = scalar_lea.sflag [#allocation4], %s638
          %s640 = sand.u32 %s255, 1
          %s641 = smul.addr %s640, 96
          %s642 = scalar_lea.vmem [#allocation12], %s641
          %s644 = ssub.s32 1536, 1536
          %645 = vsyncadd %s639, %s644
          %s646 = smul.addr %s37, 24
          %s647 = smul.addr %s646, 64
          %s648 = scalar_lea.hbm %s9, %s647
          %s649 = sshll.u32 %s642, 4
          %s650 = int_to_ptr.vmem [resolvable:$true] %s649
          %655 = dma.hbm_to_vmem [thread:$0]  %s648, 1536, %s650, %s639, 192, 192, 12
        $region64: #{forward.4} parent=47 // pred_fallthru
          _
        // Predicated region
        $region65: #{forward.4} parent=47 // pred_check
          %p656 = pneg %p291
        $region66: #{forward.4} parent=47 // pred_check_branch
          %658 = sbr.rel (%p656) target = $region68
        $region67: #{forward.4} parent=47 // pred_region
          %s659 = sand.u32 %s29, 1
          %s660 = scalar_lea.sflag [#allocation4], %s659
          %s661 = sand.u32 %s281, 1
          %s662 = smul.addr %s661, 3
          %s663 = scalar_lea.vmem [#allocation13], %s662
          %s665 = ssub.s32 48, 48
          %666 = vsyncadd %s660, %s665
          %s667 = smul.addr %s37, 3
          %s668 = smul.addr %s667, 16
          %s669 = scalar_lea.hbm %s10, %s668
          %s671 = sshll.u32 %s663, 4
          %s672 = int_to_ptr.vmem [resolvable:$true] %s671
          %674 = dma.hbm_to_vmem [thread:$0]  %s669, 48, %s672, %s660
        $region68: #{forward.4} parent=47 // pred_fallthru
          _
        // Predicated region
        $region69: #{forward.4} parent=47 // pred_check
          %p675 = pneg %p317
        $region70: #{forward.4} parent=47 // pred_check_branch
          %677 = sbr.rel (%p675) target = $region72
        $region71: #{forward.4} parent=47 // pred_region
          %s678 = sand.u32 %s29, 1
          %s679 = scalar_lea.sflag [#allocation4], %s678
          %s680 = sand.u32 %s307, 1
          %s681 = scalar_lea.vmem [#allocation14], %s680
          %s683 = ssub.s32 16, 16
          %684 = vsyncadd %s679, %s683
          %s685 = smul.addr %s37, 16
          %s686 = scalar_lea.hbm %s11, %s685
          %s688 = sshll.u32 %s681, 4
          %s689 = int_to_ptr.vmem [resolvable:$true] %s688
          %691 = dma.hbm_to_vmem [thread:$0]  %s686, 16, %s689, %s679
        $region72: #{forward.4} parent=47 // pred_fallthru
          _
        // Predicated region
        $region73: #{forward.4} parent=47 // pred_check
          %p692 = pneg %p343
        $region74: #{forward.4} parent=47 // pred_check_branch
          %694 = sbr.rel (%p692) target = $region76
        $region75: #{forward.4} parent=47 // pred_region
          %s695 = sand.u32 %s29, 1
          %s696 = scalar_lea.sflag [#allocation4], %s695
          %s697 = sand.u32 %s333, 1
          %s698 = scalar_lea.vmem [#allocation15], %s697
          %s700 = ssub.s32 16, 16
          %701 = vsyncadd %s696, %s700
          %s702 = smul.addr %s37, 16
          %s703 = scalar_lea.hbm %s12, %s702
          %s705 = sshll.u32 %s698, 4
          %s706 = int_to_ptr.vmem [resolvable:$true] %s705
          %708 = dma.hbm_to_vmem [thread:$0]  %s703, 16, %s706, %s696
        $region76: #{forward.4} parent=47 // pred_fallthru
          _
        // Predicated region
        $region77: #{forward.4} parent=47 // pred_check
          %p709 = pneg %p369
        $region78: #{forward.4} parent=47 // pred_check_branch
          %711 = sbr.rel (%p709) target = $region80
        $region79: #{forward.4} parent=47 // pred_region
          %s712 = sand.u32 %s29, 1
          %s713 = scalar_lea.sflag [#allocation4], %s712
          %s714 = sand.u32 %s359, 1
          %s715 = smul.addr %s714, 16
          %s716 = scalar_lea.vmem [#allocation16], %s715
          %s718 = ssub.s32 256, 256
          %719 = vsyncadd %s713, %s718
          %s720 = smul.addr %s37, 4
          %s721 = smul.addr %s720, 64
          %s722 = scalar_lea.hbm %s13, %s721
          %s723 = sshll.u32 %s716, 4
          %s724 = int_to_ptr.vmem [resolvable:$true] %s723
          %729 = dma.hbm_to_vmem [thread:$0]  %s722, 256, %s724, %s713, 64, 64, 4
        $region80: #{forward.4} parent=47 // pred_fallthru
          _
        // Predicated region
        $region81: #{forward.4} parent=47 // pred_check
          %p730 = pneg %p395
        $region82: #{forward.4} parent=47 // pred_check_branch
          %732 = sbr.rel (%p730) target = $region84
        $region83: #{forward.4} parent=47 // pred_region
          %s733 = sand.u32 %s29, 1
          %s734 = scalar_lea.sflag [#allocation4], %s733
          %s735 = sand.u32 %s385, 1
          %s736 = smul.addr %s735, 32
          %s737 = scalar_lea.vmem [#allocation17], %s736
          %s739 = ssub.s32 512, 512
          %740 = vsyncadd %s734, %s739
          %s741 = smul.addr %s37, 8
          %s742 = smul.addr %s741, 64
          %s743 = scalar_lea.hbm %s14, %s742
          %s744 = sshll.u32 %s737, 4
          %s745 = int_to_ptr.vmem [resolvable:$true] %s744
          %750 = dma.hbm_to_vmem [thread:$0]  %s743, 512, %s745, %s734, 64, 64, 4
        $region84: #{forward.4} parent=47 // pred_fallthru
          _
        // Predicated region
        $region85: #{forward.4} parent=47 // pred_check
          %p751 = pneg %p421
        $region86: #{forward.4} parent=47 // pred_check_branch
          %753 = sbr.rel (%p751) target = $region88
        $region87: #{forward.4} parent=47 // pred_region
          %s754 = sand.u32 %s29, 1
          %s755 = scalar_lea.sflag [#allocation4], %s754
          %s756 = sand.u32 %s411, 1
          %s757 = scalar_lea.vmem [#allocation18], %s756
          %s759 = ssub.s32 16, 16
          %760 = vsyncadd %s755, %s759
          %s761 = smul.addr %s37, 16
          %s762 = scalar_lea.hbm %s15, %s761
          %s764 = sshll.u32 %s757, 4
          %s765 = int_to_ptr.vmem [resolvable:$true] %s764
          %767 = dma.hbm_to_vmem [thread:$0]  %s762, 16, %s765, %s755
        $region88: #{forward.4} parent=47 // pred_fallthru
          _
      $region48: #{forward.4} parent=5 // pred_fallthru
        _
      %p768 = scmp.le.s32.totalorder 1, %s29
      %p769 = scmp.lt.s32.totalorder %s29, 5
      %p770 = pnand %p768, %p769
      %p771 = pneg %p770
      // Predicated region
      $region89: #{forward.4} parent=5 // pred_check
        _
      $region90: #{forward.4} parent=5 // pred_check_branch
        %773 = sbr.rel (%p770) target = $region92
      $region91: #{forward.4} parent=5 // pred_region
        %s774 = ssub.s32 %s29, 1
        %s775 = sand.u32 %s34, 1
        %s776 = scalar_lea.sflag [#allocation4], %s775
        %s777 = sand.u32 %s54, 1
        %s778 = smul.addr %s777, 32
        %s779 = scalar_lea.vmem [#allocation3], %s778
        // Predicated region
        $region93: #{forward.4} parent=91 // pred_check
          %p780 = pneg %p67
        $region94: #{forward.4} parent=91 // pred_check_branch
          %782 = sbr.rel (%p780) target = $region96
        $region95: #{forward.4} parent=91 // pred_region
          %783 = dma.done %s776, 512
        $region96: #{forward.4} parent=91 // pred_fallthru
          _
        // Predicated region
        $region97: #{forward.4} parent=91 // pred_check
          %p784 = pneg %p88
        $region98: #{forward.4} parent=91 // pred_check_branch
          %786 = sbr.rel (%p784) target = $region100
        $region99: #{forward.4} parent=91 // pred_region
          %787 = dma.done [#allocation6], 256
        $region100: #{forward.4} parent=91 // pred_fallthru
          _
        // Predicated region
        $region101: #{forward.4} parent=91 // pred_check
          %p788 = pneg %p109
        $region102: #{forward.4} parent=91 // pred_check_branch
          %790 = sbr.rel (%p788) target = $region104
        $region103: #{forward.4} parent=91 // pred_region
          %791 = dma.done [#allocation6], 16
        $region104: #{forward.4} parent=91 // pred_fallthru
          _
        // Predicated region
        $region105: #{forward.4} parent=91 // pred_check
          %p792 = pneg %p151
        $region106: #{forward.4} parent=91 // pred_check_branch
          %794 = sbr.rel (%p792) target = $region108
        $region107: #{forward.4} parent=91 // pred_region
          %795 = dma.done [#allocation9], 16
        $region108: #{forward.4} parent=91 // pred_fallthru
          _
        %s796 = sand.u32 %s34, 1
        %s797 = scalar_lea.sflag [#allocation4], %s796
        %s798 = sand.u32 %s206, 1
        %s799 = scalar_lea.vmem [#allocation10], %s798
        // Predicated region
        $region109: #{forward.4} parent=91 // pred_check
          %p800 = pneg %p219
        $region110: #{forward.4} parent=91 // pred_check_branch
          %802 = sbr.rel (%p800) target = $region112
        $region111: #{forward.4} parent=91 // pred_region
          %803 = dma.done %s797, 16
        $region112: #{forward.4} parent=91 // pred_fallthru
          _
        %s804 = sand.u32 %s34, 1
        %s805 = scalar_lea.sflag [#allocation4], %s804
        %s806 = sand.u32 %s232, 1
        %s807 = scalar_lea.vmem [#allocation11], %s806
        // Predicated region
        $region113: #{forward.4} parent=91 // pred_check
          %p808 = pneg %p245
        $region114: #{forward.4} parent=91 // pred_check_branch
          %810 = sbr.rel (%p808) target = $region116
        $region115: #{forward.4} parent=91 // pred_region
          %811 = dma.done %s805, 16
        $region116: #{forward.4} parent=91 // pred_fallthru
          _
        %s812 = sand.u32 %s34, 1
        %s813 = scalar_lea.sflag [#allocation4], %s812
        %s814 = sand.u32 %s258, 1
        %s815 = smul.addr %s814, 96
        %s816 = scalar_lea.vmem [#allocation12], %s815
        // Predicated region
        $region117: #{forward.4} parent=91 // pred_check
          %p817 = pneg %p271
        $region118: #{forward.4} parent=91 // pred_check_branch
          %819 = sbr.rel (%p817) target = $region120
        $region119: #{forward.4} parent=91 // pred_region
          %820 = dma.done %s813, 1536
        $region120: #{forward.4} parent=91 // pred_fallthru
          _
        %s821 = sand.u32 %s34, 1
        %s822 = scalar_lea.sflag [#allocation4], %s821
        %s823 = sand.u32 %s284, 1
        %s824 = smul.addr %s823, 3
        %s825 = scalar_lea.vmem [#allocation13], %s824
        // Predicated region
        $region121: #{forward.4} parent=91 // pred_check
          %p826 = pneg %p297
        $region122: #{forward.4} parent=91 // pred_check_branch
          %828 = sbr.rel (%p826) target = $region124
        $region123: #{forward.4} parent=91 // pred_region
          %829 = dma.done %s822, 48
        $region124: #{forward.4} parent=91 // pred_fallthru
          _
        %s830 = sand.u32 %s34, 1
        %s831 = scalar_lea.sflag [#allocation4], %s830
        %s832 = sand.u32 %s310, 1
        %s833 = scalar_lea.vmem [#allocation14], %s832
        // Predicated region
        $region125: #{forward.4} parent=91 // pred_check
          %p834 = pneg %p323
        $region126: #{forward.4} parent=91 // pred_check_branch
          %836 = sbr.rel (%p834) target = $region128
        $region127: #{forward.4} parent=91 // pred_region
          %837 = dma.done %s831, 16
        $region128: #{forward.4} parent=91 // pred_fallthru
          _
        %s838 = sand.u32 %s34, 1
        %s839 = scalar_lea.sflag [#allocation4], %s838
        %s840 = sand.u32 %s336, 1
        %s841 = scalar_lea.vmem [#allocation15], %s840
        // Predicated region
        $region129: #{forward.4} parent=91 // pred_check
          %p842 = pneg %p349
        $region130: #{forward.4} parent=91 // pred_check_branch
          %844 = sbr.rel (%p842) target = $region132
        $region131: #{forward.4} parent=91 // pred_region
          %845 = dma.done %s839, 16
        $region132: #{forward.4} parent=91 // pred_fallthru
          _
        %s846 = sand.u32 %s34, 1
        %s847 = scalar_lea.sflag [#allocation4], %s846
        %s848 = sand.u32 %s362, 1
        %s849 = smul.addr %s848, 16
        %s850 = scalar_lea.vmem [#allocation16], %s849
        // Predicated region
        $region133: #{forward.4} parent=91 // pred_check
          %p851 = pneg %p375
        $region134: #{forward.4} parent=91 // pred_check_branch
          %853 = sbr.rel (%p851) target = $region136
        $region135: #{forward.4} parent=91 // pred_region
          %854 = dma.done %s847, 256
        $region136: #{forward.4} parent=91 // pred_fallthru
          _
        %s855 = sand.u32 %s34, 1
        %s856 = scalar_lea.sflag [#allocation4], %s855
        %s857 = sand.u32 %s388, 1
        %s858 = smul.addr %s857, 32
        %s859 = scalar_lea.vmem [#allocation17], %s858
        // Predicated region
        $region137: #{forward.4} parent=91 // pred_check
          %p860 = pneg %p401
        $region138: #{forward.4} parent=91 // pred_check_branch
          %862 = sbr.rel (%p860) target = $region140
        $region139: #{forward.4} parent=91 // pred_region
          %863 = dma.done %s856, 512
        $region140: #{forward.4} parent=91 // pred_fallthru
          _
        %s864 = sand.u32 %s34, 1
        %s865 = scalar_lea.sflag [#allocation4], %s864
        %s866 = sand.u32 %s414, 1
        %s867 = scalar_lea.vmem [#allocation18], %s866
        // Predicated region
        $region141: #{forward.4} parent=91 // pred_check
          %p868 = pneg %p427
        $region142: #{forward.4} parent=91 // pred_check_branch
          %870 = sbr.rel (%p868) target = $region144
        $region143: #{forward.4} parent=91 // pred_region
          %871 = dma.done %s865, 16
        $region144: #{forward.4} parent=91 // pred_fallthru
          _
        // Predicated region
        $region145: #{forward.4} parent=91 // pred_check
          %p872 = pneg %p448
        $region146: #{forward.4} parent=91 // pred_check_branch
          %874 = sbr.rel (%p872) target = $region148
        $region147: #{forward.4} parent=91 // pred_region
          %875 = dma.done [#allocation6], 16
        $region148: #{forward.4} parent=91 // pred_fallthru
          _
        // Predicated region
        $region149: #{forward.4} parent=91 // pred_check
          %p876 = pneg %p469
        $region150: #{forward.4} parent=91 // pred_check_branch
          %878 = sbr.rel (%p876) target = $region152
        $region151: #{forward.4} parent=91 // pred_region
          %879 = dma.done [#allocation9], 16
        $region152: #{forward.4} parent=91 // pred_fallthru
          _
        %s880 = sand.u32 %s34, 1
        %s881 = scalar_lea.sflag [#allocation4], %s880
        %s882 = sand.u32 %s54, 1
        %s883 = smul.addr %s882, 32
        %s884 = scalar_lea.vmem [#allocation3], %s883
        %p885 = pneg %p67
        %p886 = pneg %p64
        %p887 = pneg %p88
        %p888 = pneg %p85
        %p889 = pneg %p109
        %p890 = pneg %p106
        %p891 = pneg %p130
        %p892 = pneg %p127
        %p893 = pneg %p151
        %p894 = pneg %p148
        %p895 = pneg %p172
        %p896 = pneg %p169
        %p897 = pneg %p193
        %p898 = pneg %p190
        %s899 = sand.u32 %s34, 1
        %s900 = scalar_lea.sflag [#allocation4], %s899
        %s901 = sand.u32 %s206, 1
        %s902 = scalar_lea.vmem [#allocation10], %s901
        %p903 = pneg %p219
        %p904 = pneg %p216
        %s905 = sand.u32 %s34, 1
        %s906 = scalar_lea.sflag [#allocation4], %s905
        %s907 = sand.u32 %s232, 1
        %s908 = scalar_lea.vmem [#allocation11], %s907
        %p909 = pneg %p245
        %p910 = pneg %p242
        %s911 = sand.u32 %s34, 1
        %s912 = scalar_lea.sflag [#allocation4], %s911
        %s913 = sand.u32 %s258, 1
        %s914 = smul.addr %s913, 96
        %s915 = scalar_lea.vmem [#allocation12], %s914
        %p916 = pneg %p271
        %p917 = pneg %p268
        %s918 = sand.u32 %s34, 1
        %s919 = scalar_lea.sflag [#allocation4], %s918
        %s920 = sand.u32 %s284, 1
        %s921 = smul.addr %s920, 3
        %s922 = scalar_lea.vmem [#allocation13], %s921
        %p923 = pneg %p297
        %p924 = pneg %p294
        %s925 = sand.u32 %s34, 1
        %s926 = scalar_lea.sflag [#allocation4], %s925
        %s927 = sand.u32 %s310, 1
        %s928 = scalar_lea.vmem [#allocation14], %s927
        %p929 = pneg %p323
        %p930 = pneg %p320
        %s931 = sand.u32 %s34, 1
        %s932 = scalar_lea.sflag [#allocation4], %s931
        %s933 = sand.u32 %s336, 1
        %s934 = scalar_lea.vmem [#allocation15], %s933
        %p935 = pneg %p349
        %p936 = pneg %p346
        %s937 = sand.u32 %s34, 1
        %s938 = scalar_lea.sflag [#allocation4], %s937
        %s939 = sand.u32 %s362, 1
        %s940 = smul.addr %s939, 16
        %s941 = scalar_lea.vmem [#allocation16], %s940
        %p942 = pneg %p375
        %p943 = pneg %p372
        %s944 = sand.u32 %s34, 1
        %s945 = scalar_lea.sflag [#allocation4], %s944
        %s946 = sand.u32 %s388, 1
        %s947 = smul.addr %s946, 32
        %s948 = scalar_lea.vmem [#allocation17], %s947
        %p949 = pneg %p401
        %p950 = pneg %p398
        %s951 = sand.u32 %s34, 1
        %s952 = scalar_lea.sflag [#allocation4], %s951
        %s953 = sand.u32 %s414, 1
        %s954 = scalar_lea.vmem [#allocation18], %s953
        %p955 = pneg %p427
        %p956 = pneg %p424
        %p957 = pneg %p448
        %p958 = pneg %p445
        %p959 = pneg %p469
        %p960 = pneg %p466
        %p961 = pneg %p495
        %p962 = pneg %p492
        %p963 = scmp.lt.s32.totalorder %s38, 1
        %s964 = scalar_select %p963, %s38, 1
        %s965 = smul.addr %s964, 4
        %s966 = smul.addr %s965, 8
        %s967 = scalar_lea.vmem %s18, %s966
        %p968 = scmp.lt.s32.totalorder %s38, 1
        %s969 = scalar_select %p968, %s38, 1
        %s970 = smul.addr %s969, 4
        %s971 = smul.addr %s970, 8
        %s972 = scalar_lea.vmem %s18, %s971
        %p974 = scmp.eq.s32.totalorder %s39, 0
        // Predicated region
        $region153: #{forward.4} parent=91 // pred_check
          %p975 = pneg %p974
        $region154: #{forward.4} parent=91 // pred_check_branch
          %977 = sbr.rel (%p975) target = $region156
        $region155: #{forward.4} parent=91 // pred_region
          %v978 = vld [vmem:[%s779] sm:$0xff]
          %v979 = vld [vmem:[%s779 + $0x8] sm:$0xff]
          %v980 = vld [vmem:[%s779 + $0x10] sm:$0xff]
          %v981 = vld [vmem:[%s779 + $0x18] sm:$0xff]
          %v982 = vpack.c.bf16 %v979, %v978
          %v983 = vpack.c.bf16 %v981, %v980
          %v984 = vld [vmem:[#allocation5] sm:$0xf]
          %v985 = vld [vmem:[#allocation5 + $0x4] sm:$0xf]
          %v986 = vld [vmem:[#allocation5 + $0x8] sm:$0xf]
          %v987 = vld [vmem:[#allocation5 + $0xc] sm:$0xf]
          %v988 = vld [vmem:[#allocation7] sm:$0x1]
          %v990 = vlaneseq
          %v991 = vshrl.u32 %v990, 7
          %v992 = vsub.s32 0, %v991
          %v993 = vrot.slane %v988, %v992
          %v999 = vunpack.c.l.b16 %v984
          %v1000 = vunpack.c.l.b16 %v985
          %v1001 = vunpack.c.l.b16 %v986
          %v1002 = vunpack.c.l.b16 %v987
          %v1003 = vpack.c.b16 %v1000, %v999
          %v1004 = vpack.c.b16 %v1002, %v1001
          %vm1007 = vcmask 261120
          %v1009 = vsel %vm1007, %v982, 0
          %v1012 = vsel %vm1007, %v983, 0
          %1014 = vmatprep.subr.bf16.mxu0 0
          %1015 = vmatpush1.bf16.msra.mxu0 %v1003
          %1016 = vmatprep.subr.bf16.mxu0 0
          %1017 = vmatpush1.bf16.msra.mxu0 %v1004
          %1018 = vmatprep.subr.bf16.mxu0 0
          %1019 = vmatpush1.bf16.msra.mxu0 0
          %1020 = vmatprep.subr.bf16.mxu0 0
          %1021 = vmatpush1.bf16.msra.mxu0 0
          %1022 = vmatprep.subr.bf16.mxu0 0
          %1023 = vmatpush1.bf16.msra.mxu0 0
          %1024 = vmatprep.subr.bf16.mxu0 0
          %1025 = vmatpush1.bf16.msra.mxu0 0
          %1026 = vmatprep.subr.bf16.mxu0 0
          %1027 = vmatpush1.bf16.msra.mxu0 0
          %1028 = vmatprep.subr.bf16.mxu0 0
          %1029 = vmatpush1.bf16.msra.mxu0 0
          %1030 = vmatprep.subr.bf16.mxu0 0
          %1031 = vmatpush1.bf16.msra.mxu0 0
          %1032 = vmatprep.subr.bf16.mxu0 0
          %1033 = vmatpush1.bf16.msra.mxu0 0
          %1034 = vmatprep.subr.bf16.mxu0 0
          %1035 = vmatpush1.bf16.msra.mxu0 0
          %1036 = vmatprep.subr.bf16.mxu0 0
          %1037 = vmatpush1.bf16.msra.mxu0 0
          %1038 = vmatprep.subr.bf16.mxu0 0
          %1039 = vmatpush1.bf16.msra.mxu0 0
          %1040 = vmatprep.subr.bf16.mxu0 0
          %1041 = vmatpush1.bf16.msra.mxu0 0
          %1042 = vmatprep.subr.bf16.mxu0 0
          %1043 = vmatpush1.bf16.msra.mxu0 0
          %1044 = vmatprep.subr.bf16.mxu0 0
          %1045 = vmatpush1.bf16.msra.mxu0 0
          %1046 = vmatprep.mubr.bf16.mxu0 0
          %1047 = vmatmul.mubr.bf16.gmra.mrb[0].mxu0 %v1009
          %v1048 = vpop.f32.mrb[0].mxu0
          %v1049 = vadd.f32 %v993, %v1048
          %v1050 = vpop.f32.mrb[0].mxu0
          %v1051 = vpop.f32.mrb[0].mxu0
          %v1052 = vadd.f32 %v993, %v1051
          %v1053 = vpop.f32.mrb[0].mxu0
          %1054 = vmatprep.mubr.bf16.mxu0 0
          %1055 = vmatmul.mubr.bf16.gmra.mrb[0].mxu0 %v1012
          %v1056 = vpop.f32.mrb[0].mxu0
          %v1057 = vadd.f32 %v993, %v1056
          %v1058 = vpop.f32.mrb[0].mxu0
          %v1059 = vpop.f32.mrb[0].mxu0
          %v1060 = vadd.f32 %v993, %v1059
          %v1061 = vpop.f32.mrb[0].mxu0
          %1062 = vdwg.mxu0
          %v1063 = vsub.f32 0.0, %v1049
          %v1064 = vsub.f32 0.0, %v1052
          %v1065 = vsub.f32 0.0, %v1057
          %v1066 = vsub.f32 0.0, %v1060
          %v1067 = vmul.f32 %v1063, 1.442695
          %v1068 = vpow.pop %v1067
          %v1069 = vmul.f32 %v1064, 1.442695
          %v1070 = vpow.pop %v1069
          %v1071 = vmul.f32 %v1065, 1.442695
          %v1072 = vpow.pop %v1071
          %v1073 = vmul.f32 %v1066, 1.442695
          %v1074 = vpow.pop %v1073
          %v1075 = vadd.f32 %v1068, 1.0
          %v1076 = vadd.f32 %v1070, 1.0
          %v1077 = vadd.f32 %v1072, 1.0
          %v1078 = vadd.f32 %v1074, 1.0
          %v1079 = vrcp.pop %v1075
          %v1080 = vmul.f32 1.0, %v1079
          %v1081 = vrcp.pop %v1076
          %v1082 = vmul.f32 1.0, %v1081
          %v1083 = vrcp.pop %v1077
          %v1084 = vmul.f32 1.0, %v1083
          %v1085 = vrcp.pop %v1078
          %v1086 = vmul.f32 1.0, %v1085
          %v1087 = vmul.f32 %v1049, %v1080
          %v1088 = vmul.f32 %v1052, %v1082
          %v1089 = vmul.f32 %v1057, %v1084
          %v1090 = vmul.f32 %v1060, %v1086
          %v1091 = vpack.c.bf16 %v1088, %v1087
          %v1092 = vpack.c.bf16 %v1090, %v1089
          %v1093 = vld [vmem:[%s3] sm:$0xf]
          %v1094 = vld [vmem:[%s3 + $0x4] sm:$0xf]
          %v1095 = vld [vmem:[%s3 + $0x8] sm:$0xf]
          %v1096 = vld [vmem:[%s3 + $0xc] sm:$0xf]
          %v1097 = vld [vmem:[%s3 + $0x10] sm:$0xf]
          %v1098 = vld [vmem:[%s3 + $0x14] sm:$0xf]
          %v1099 = vld [vmem:[%s3 + $0x18] sm:$0xf]
          %v1100 = vld [vmem:[%s3 + $0x1c] sm:$0xf]
          %v1101 = vld [vmem:[%s3 + $0x20] sm:$0xf]
          %v1102 = vld [vmem:[%s3 + $0x24] sm:$0xf]
          %v1103 = vld [vmem:[%s3 + $0x28] sm:$0xf]
          %v1104 = vld [vmem:[%s3 + $0x2c] sm:$0xf]
          %v1105 = vld [vmem:[%s3 + $0x30] sm:$0xf]
          %v1106 = vld [vmem:[%s3 + $0x34] sm:$0xf]
          %v1107 = vld [vmem:[%s3 + $0x38] sm:$0xf]
          %v1108 = vld [vmem:[%s3 + $0x3c] sm:$0xf]
          %v1109 = vld [vmem:[#allocation8] sm:$0x1]
          %v1111 = vlaneseq
          %v1112 = vshrl.u32 %v1111, 7
          %v1113 = vsub.s32 0, %v1112
          %v1114 = vrot.slane %v1109, %v1113
          %v1132 = vunpack.c.l.b16 %v1093
          %v1133 = vunpack.c.l.b16 %v1094
          %v1134 = vunpack.c.l.b16 %v1095
          %v1135 = vunpack.c.l.b16 %v1096
          %v1136 = vunpack.c.l.b16 %v1097
          %v1137 = vunpack.c.l.b16 %v1098
          %v1138 = vunpack.c.l.b16 %v1099
          %v1139 = vunpack.c.l.b16 %v1100
          %v1140 = vunpack.c.l.b16 %v1101
          %v1141 = vunpack.c.l.b16 %v1102
          %v1142 = vunpack.c.l.b16 %v1103
          %v1143 = vunpack.c.l.b16 %v1104
          %v1144 = vunpack.c.l.b16 %v1105
          %v1145 = vunpack.c.l.b16 %v1106
          %v1146 = vunpack.c.l.b16 %v1107
          %v1147 = vunpack.c.l.b16 %v1108
          %v1148 = vpack.c.b16 %v1133, %v1132
          %v1149 = vpack.c.b16 %v1135, %v1134
          %v1150 = vpack.c.b16 %v1137, %v1136
          %v1151 = vpack.c.b16 %v1139, %v1138
          %v1152 = vpack.c.b16 %v1141, %v1140
          %v1153 = vpack.c.b16 %v1143, %v1142
          %v1154 = vpack.c.b16 %v1145, %v1144
          %v1155 = vpack.c.b16 %v1147, %v1146
          %1164 = vmatprep.subr.bf16.mxu0 0
          %1165 = vmatpush1.bf16.msra.mxu0 %v1148
          %1166 = vmatprep.subr.bf16.mxu0 0
          %1167 = vmatpush1.bf16.msra.mxu0 %v1149
          %1168 = vmatprep.subr.bf16.mxu0 0
          %1169 = vmatpush1.bf16.msra.mxu0 %v1150
          %1170 = vmatprep.subr.bf16.mxu0 0
          %1171 = vmatpush1.bf16.msra.mxu0 %v1151
          %1172 = vmatprep.subr.bf16.mxu0 0
          %1173 = vmatpush1.bf16.msra.mxu0 %v1152
          %1174 = vmatprep.subr.bf16.mxu0 0
          %1175 = vmatpush1.bf16.msra.mxu0 %v1153
          %1176 = vmatprep.subr.bf16.mxu0 0
          %1177 = vmatpush1.bf16.msra.mxu0 %v1154
          %1178 = vmatprep.subr.bf16.mxu0 0
          %1179 = vmatpush1.bf16.msra.mxu0 %v1155
          %1180 = vmatprep.subr.bf16.mxu0 0
          %1181 = vmatpush1.bf16.msra.mxu0 0
          %1182 = vmatprep.subr.bf16.mxu0 0
          %1183 = vmatpush1.bf16.msra.mxu0 0
          %1184 = vmatprep.subr.bf16.mxu0 0
          %1185 = vmatpush1.bf16.msra.mxu0 0
          %1186 = vmatprep.subr.bf16.mxu0 0
          %1187 = vmatpush1.bf16.msra.mxu0 0
          %1188 = vmatprep.subr.bf16.mxu0 0
          %1189 = vmatpush1.bf16.msra.mxu0 0
          %1190 = vmatprep.subr.bf16.mxu0 0
          %1191 = vmatpush1.bf16.msra.mxu0 0
          %1192 = vmatprep.subr.bf16.mxu0 0
          %1193 = vmatpush1.bf16.msra.mxu0 0
          %1194 = vmatprep.subr.bf16.mxu0 0
          %1195 = vmatpush1.bf16.msra.mxu0 0
          %1196 = vmatprep.mubr.bf16.mxu0 0
          %1197 = vmatmul.mubr.bf16.gmra.mrb[0].mxu0 %v1091
          %v1198 = vpop.f32.mrb[0].mxu0
          %v1199 = vadd.f32 %v1114, %v1198
          %v1200 = vpop.f32.mrb[0].mxu0
          %v1201 = vpop.f32.mrb[0].mxu0
          %v1202 = vadd.f32 %v1114, %v1201
          %v1203 = vpop.f32.mrb[0].mxu0
          %1204 = vmatprep.mubr.bf16.mxu0 0
          %1205 = vmatmul.mubr.bf16.gmra.mrb[0].mxu0 %v1092
          %v1206 = vpop.f32.mrb[0].mxu0
          %v1207 = vadd.f32 %v1114, %v1206
          %v1208 = vpop.f32.mrb[0].mxu0
          %v1209 = vpop.f32.mrb[0].mxu0
          %v1210 = vadd.f32 %v1114, %v1209
          %v1211 = vpop.f32.mrb[0].mxu0
          %1212 = vdwg.mxu0
          %v1213 = vsub.f32 0.0, %v1199
          %v1214 = vsub.f32 0.0, %v1202
          %v1215 = vsub.f32 0.0, %v1207
          %v1216 = vsub.f32 0.0, %v1210
          %v1217 = vmul.f32 %v1213, 1.442695
          %v1218 = vpow.pop %v1217
          %v1219 = vmul.f32 %v1214, 1.442695
          %v1220 = vpow.pop %v1219
          %v1221 = vmul.f32 %v1215, 1.442695
          %v1222 = vpow.pop %v1221
          %v1223 = vmul.f32 %v1216, 1.442695
          %v1224 = vpow.pop %v1223
          %v1225 = vadd.f32 %v1218, 1.0
          %v1226 = vadd.f32 %v1220, 1.0
          %v1227 = vadd.f32 %v1222, 1.0
          %v1228 = vadd.f32 %v1224, 1.0
          %v1229 = vrcp.pop %v1225
          %v1230 = vmul.f32 1.0, %v1229
          %v1231 = vrcp.pop %v1226
          %v1232 = vmul.f32 1.0, %v1231
          %v1233 = vrcp.pop %v1227
          %v1234 = vmul.f32 1.0, %v1233
          %v1235 = vrcp.pop %v1228
          %v1236 = vmul.f32 1.0, %v1235
          %v1237 = vmul.f32 %v1199, %v1230
          %v1238 = vmul.f32 %v1202, %v1232
          %v1239 = vmul.f32 %v1207, %v1234
          %v1240 = vmul.f32 %v1210, %v1236
          %vm1241 = vcmask 523264
          %1242 = vst.msk [vmem:[#allocation2] sm:$0xff] %vm1241, %v1237
          %1243 = vst.msk [vmem:[#allocation2 + $0x8] sm:$0xff] %vm1241, %v1238
          %1244 = vst.msk [vmem:[#allocation2 + $0x10] sm:$0xff] %vm1241, %v1239
          %1245 = vst.msk [vmem:[#allocation2 + $0x18] sm:$0xff] %vm1241, %v1240
        $region156: #{forward.4} parent=91 // pred_fallthru
          _
        %v1246 = vld [vmem:[#allocation2] sm:$0xff]
        %v1247 = vld [vmem:[#allocation2 + $0x8] sm:$0xff]
        %v1248 = vld [vmem:[#allocation2 + $0x10] sm:$0xff]
        %v1249 = vld [vmem:[#allocation2 + $0x18] sm:$0xff]
        %vm1250 = vcmask 523264
        %v1251 = vsel %vm1250, %v1246, 0.0
        %1252 = vadd.xlane.f32.xlu0 %v1251
        %v1253 = vpop.xlane.xlu0 %1252
        %v1254 = vsel %vm1250, %v1247, 0.0
        %1255 = vadd.xlane.f32.xlu0 %v1254
        %v1256 = vpop.xlane.xlu0 %1255
        %v1257 = vsel %vm1250, %v1248, 0.0
        %1258 = vadd.xlane.f32.xlu0 %v1257
        %v1259 = vpop.xlane.xlu0 %1258
        %v1260 = vsel %vm1250, %v1249, 0.0
        %1261 = vadd.xlane.f32.xlu0 %v1260
        %v1262 = vpop.xlane.xlu0 %1261
        %v1263 = vrcp.pop 64.0
        %v1264 = vmul.f32 %v1253, %v1263
        %v1265 = vmul.f32 %v1256, %v1263
        %v1266 = vmul.f32 %v1259, %v1263
        %v1267 = vmul.f32 %v1262, %v1263
        %v1268 = vsub.f32 %v1246, %v1264
        %v1269 = vsub.f32 %v1247, %v1265
        %v1270 = vsub.f32 %v1248, %v1266
        %v1271 = vsub.f32 %v1249, %v1267
        %v1272 = vmul.f32 %v1268, %v1268
        %v1273 = vmul.f32 %v1269, %v1269
        %v1274 = vmul.f32 %v1270, %v1270
        %v1275 = vmul.f32 %v1271, %v1271
        %v1276 = vsel %vm1250, %v1272, 0.0
        %1277 = vadd.xlane.f32.xlu0 %v1276
        %v1278 = vpop.xlane.xlu0 %1277
        %v1279 = vsel %vm1250, %v1273, 0.0
        %1280 = vadd.xlane.f32.xlu0 %v1279
        %v1281 = vpop.xlane.xlu0 %1280
        %v1282 = vsel %vm1250, %v1274, 0.0
        %1283 = vadd.xlane.f32.xlu0 %v1282
        %v1284 = vpop.xlane.xlu0 %1283
        %v1285 = vsel %vm1250, %v1275, 0.0
        %1286 = vadd.xlane.f32.xlu0 %v1285
        %v1287 = vpop.xlane.xlu0 %1286
        %v1288 = vmul.f32 %v1278, %v1263
        %v1289 = vmul.f32 %v1281, %v1263
        %v1290 = vmul.f32 %v1284, %v1263
        %v1291 = vmul.f32 %v1287, %v1263
        %v1292 = vadd.f32 %v1288, 1e-05
        %v1293 = vadd.f32 %v1289, 1e-05
        %v1294 = vadd.f32 %v1290, 1e-05
        %v1295 = vadd.f32 %v1291, 1e-05
        %v1296 = vrsqrt.pop %v1292
        %v1297 = vrsqrt.pop %v1293
        %v1298 = vrsqrt.pop %v1294
        %v1299 = vrsqrt.pop %v1295
        %v1300 = vmul.f32 %v1268, %v1296
        %v1301 = vmul.f32 %v1269, %v1297
        %v1302 = vmul.f32 %v1270, %v1298
        %v1303 = vmul.f32 %v1271, %v1299
        %v1304 = vld [vmem:[%s799] sm:$0x1]
        %v1306 = vlaneseq
        %v1307 = vshrl.u32 %v1306, 7
        %v1308 = vsub.s32 0, %v1307
        %v1309 = vrot.slane %v1304, %v1308
        %v1311 = vmul.f32 %v1300, %v1309
        %v1312 = vmul.f32 %v1301, %v1309
        %v1313 = vmul.f32 %v1302, %v1309
        %v1314 = vmul.f32 %v1303, %v1309
        %v1315 = vld [vmem:[%s807] sm:$0x1]
        %v1317 = vlaneseq
        %v1318 = vshrl.u32 %v1317, 7
        %v1319 = vsub.s32 0, %v1318
        %v1320 = vrot.slane %v1315, %v1319
        %v1322 = vadd.f32 %v1311, %v1320
        %v1323 = vadd.f32 %v1312, %v1320
        %v1324 = vadd.f32 %v1313, %v1320
        %v1325 = vadd.f32 %v1314, %v1320
        %v1326 = vpack.c.bf16 %v1323, %v1322
        %v1327 = vpack.c.bf16 %v1325, %v1324
        %v1328 = vld [vmem:[%s816] sm:$0xff]
        %v1329 = vld [vmem:[%s816 + $0x8] sm:$0xf]
        %v1330 = vld [vmem:[%s816 + $0xc] sm:$0xff]
        %v1331 = vld [vmem:[%s816 + $0x14] sm:$0xf]
        %v1332 = vld [vmem:[%s816 + $0x18] sm:$0xff]
        %v1333 = vld [vmem:[%s816 + $0x20] sm:$0xf]
        %v1334 = vld [vmem:[%s816 + $0x24] sm:$0xff]
        %v1335 = vld [vmem:[%s816 + $0x2c] sm:$0xf]
        %v1336 = vld [vmem:[%s816 + $0x30] sm:$0xff]
        %v1337 = vld [vmem:[%s816 + $0x38] sm:$0xf]
        %v1338 = vld [vmem:[%s816 + $0x3c] sm:$0xff]
        %v1339 = vld [vmem:[%s816 + $0x44] sm:$0xf]
        %v1340 = vld [vmem:[%s816 + $0x48] sm:$0xff]
        %v1341 = vld [vmem:[%s816 + $0x50] sm:$0xf]
        %v1342 = vld [vmem:[%s816 + $0x54] sm:$0xff]
        %v1343 = vld [vmem:[%s816 + $0x5c] sm:$0xf]
        %v1344 = vld [vmem:[%s825] sm:$0x7]
        %v1346 = vlaneseq
        %v1347 = vshrl.u32 %v1346, 7
        %v1348 = vsub.s32 0, %v1347
        %v1349 = vrot.slane %v1344, %v1348
        %v1350 = vlaneseq
        %v1351 = vshrl.u32 %v1350, 7
        %v1352 = vsub.s32 1, %v1351
        %v1353 = vrot.slane %v1344, %v1352
        %v1354 = vlaneseq
        %v1355 = vshrl.u32 %v1354, 7
        %v1356 = vsub.s32 2, %v1355
        %v1357 = vrot.slane %v1344, %v1356
        %v1377 = vunpack.c.l.b16 %v1328
        %v1378 = vunpack.c.h.b16 %v1328
        %v1379 = vunpack.c.l.b16 %v1329
        %v1380 = vunpack.c.l.b16 %v1330
        %v1381 = vunpack.c.h.b16 %v1330
        %v1382 = vunpack.c.l.b16 %v1331
        %v1383 = vunpack.c.l.b16 %v1332
        %v1384 = vunpack.c.h.b16 %v1332
        %v1385 = vunpack.c.l.b16 %v1333
        %v1386 = vunpack.c.l.b16 %v1334
        %v1387 = vunpack.c.h.b16 %v1334
        %v1388 = vunpack.c.l.b16 %v1335
        %v1389 = vunpack.c.l.b16 %v1336
        %v1390 = vunpack.c.h.b16 %v1336
        %v1391 = vunpack.c.l.b16 %v1337
        %v1392 = vunpack.c.l.b16 %v1338
        %v1393 = vunpack.c.h.b16 %v1338
        %v1394 = vunpack.c.l.b16 %v1339
        %v1395 = vunpack.c.l.b16 %v1340
        %v1396 = vunpack.c.h.b16 %v1340
        %v1397 = vunpack.c.l.b16 %v1341
        %v1398 = vunpack.c.l.b16 %v1342
        %v1399 = vunpack.c.h.b16 %v1342
        %v1400 = vunpack.c.l.b16 %v1343
        %v1401 = vpack.c.b16 %v1380, %v1377
        %v1402 = vpack.c.b16 %v1381, %v1378
        %v1403 = vpack.c.b16 %v1382, %v1379
        %v1404 = vpack.c.b16 %v1386, %v1383
        %v1405 = vpack.c.b16 %v1387, %v1384
        %v1406 = vpack.c.b16 %v1388, %v1385
        %v1407 = vpack.c.b16 %v1392, %v1389
        %v1408 = vpack.c.b16 %v1393, %v1390
        %v1409 = vpack.c.b16 %v1394, %v1391
        %v1410 = vpack.c.b16 %v1398, %v1395
        %v1411 = vpack.c.b16 %v1399, %v1396
        %v1412 = vpack.c.b16 %v1400, %v1397
        %v1426 = vsel %vm1250, %v1326, 0
        %v1429 = vsel %vm1250, %v1327, 0
        %1431 = vmatprep.subr.bf16.mxu0 %v1402
        %1432 = vmatpush1.bf16.msra.mxu0 %v1401
        %1433 = vmatprep.subr.bf16.mxu0 %v1405
        %1434 = vmatpush1.bf16.msra.mxu0 %v1404
        %1435 = vmatprep.subr.bf16.mxu0 %v1408
        %1436 = vmatpush1.bf16.msra.mxu0 %v1407
        %1437 = vmatprep.subr.bf16.mxu0 %v1411
        %1438 = vmatpush1.bf16.msra.mxu0 %v1410
        %1439 = vmatprep.subr.bf16.mxu0 0
        %1440 = vmatpush1.bf16.msra.mxu0 0
        %1441 = vmatprep.subr.bf16.mxu0 0
        %1442 = vmatpush1.bf16.msra.mxu0 0
        %1443 = vmatprep.subr.bf16.mxu0 0
        %1444 = vmatpush1.bf16.msra.mxu0 0
        %1445 = vmatprep.subr.bf16.mxu0 0
        %1446 = vmatpush1.bf16.msra.mxu0 0
        %1447 = vmatprep.subr.bf16.mxu0 0
        %1448 = vmatpush1.bf16.msra.mxu0 0
        %1449 = vmatprep.subr.bf16.mxu0 0
        %1450 = vmatpush1.bf16.msra.mxu0 0
        %1451 = vmatprep.subr.bf16.mxu0 0
        %1452 = vmatpush1.bf16.msra.mxu0 0
        %1453 = vmatprep.subr.bf16.mxu0 0
        %1454 = vmatpush1.bf16.msra.mxu0 0
        %1455 = vmatprep.subr.bf16.mxu0 0
        %1456 = vmatpush1.bf16.msra.mxu0 0
        %1457 = vmatprep.subr.bf16.mxu0 0
        %1458 = vmatpush1.bf16.msra.mxu0 0
        %1459 = vmatprep.subr.bf16.mxu0 0
        %1460 = vmatpush1.bf16.msra.mxu0 0
        %1461 = vmatprep.subr.bf16.mxu0 0
        %1462 = vmatpush1.bf16.msra.mxu0 0
        %1463 = vmatprep.mubr.bf16.mxu0 0
        %1464 = vmatmul.mubr.bf16.gmra.mrb[0].mxu0 %v1426
        %v1465 = vpop.f32.mrb[0].mxu0
        %v1466 = vadd.f32 %v1349, %v1465
        %v1467 = vpop.f32.mrb[0].mxu0
        %v1468 = vadd.f32 %v1353, %v1467
        %v1469 = vpop.f32.mrb[0].mxu0
        %v1470 = vadd.f32 %v1349, %v1469
        %v1471 = vpop.f32.mrb[0].mxu0
        %v1472 = vadd.f32 %v1353, %v1471
        %1473 = vmatprep.mubr.bf16.mxu0 0
        %1474 = vmatmul.mubr.bf16.gmra.mrb[0].mxu0 %v1429
        %v1475 = vpop.f32.mrb[0].mxu0
        %v1476 = vadd.f32 %v1349, %v1475
        %v1477 = vpop.f32.mrb[0].mxu0
        %v1478 = vadd.f32 %v1353, %v1477
        %v1479 = vpop.f32.mrb[0].mxu0
        %v1480 = vadd.f32 %v1349, %v1479
        %v1481 = vpop.f32.mrb[0].mxu0
        %v1482 = vadd.f32 %v1353, %v1481
        %1483 = vdwg.mxu0
        %1484 = vmatprep.subr.bf16.mxu0 0
        %1485 = vmatpush1.bf16.msra.mxu0 %v1403
        %1486 = vmatprep.subr.bf16.mxu0 0
        %1487 = vmatpush1.bf16.msra.mxu0 %v1406
        %1488 = vmatprep.subr.bf16.mxu0 0
        %1489 = vmatpush1.bf16.msra.mxu0 %v1409
        %1490 = vmatprep.subr.bf16.mxu0 0
        %1491 = vmatpush1.bf16.msra.mxu0 %v1412
        %1492 = vmatprep.subr.bf16.mxu0 0
        %1493 = vmatpush1.bf16.msra.mxu0 0
        %1494 = vmatprep.subr.bf16.mxu0 0
        %1495 = vmatpush1.bf16.msra.mxu0 0
        %1496 = vmatprep.subr.bf16.mxu0 0
        %1497 = vmatpush1.bf16.msra.mxu0 0
        %1498 = vmatprep.subr.bf16.mxu0 0
        %1499 = vmatpush1.bf16.msra.mxu0 0
        %1500 = vmatprep.subr.bf16.mxu0 0
        %1501 = vmatpush1.bf16.msra.mxu0 0
        %1502 = vmatprep.subr.bf16.mxu0 0
        %1503 = vmatpush1.bf16.msra.mxu0 0
        %1504 = vmatprep.subr.bf16.mxu0 0
        %1505 = vmatpush1.bf16.msra.mxu0 0
        %1506 = vmatprep.subr.bf16.mxu0 0
        %1507 = vmatpush1.bf16.msra.mxu0 0
        %1508 = vmatprep.subr.bf16.mxu0 0
        %1509 = vmatpush1.bf16.msra.mxu0 0
        %1510 = vmatprep.subr.bf16.mxu0 0
        %1511 = vmatpush1.bf16.msra.mxu0 0
        %1512 = vmatprep.subr.bf16.mxu0 0
        %1513 = vmatpush1.bf16.msra.mxu0 0
        %1514 = vmatprep.subr.bf16.mxu0 0
        %1515 = vmatpush1.bf16.msra.mxu0 0
        %1516 = vmatprep.mubr.bf16.mxu0 0
        %1517 = vmatmul.mubr.bf16.gmra.mrb[0].mxu0 %v1426
        %v1518 = vpop.f32.mrb[0].mxu0
        %v1519 = vadd.f32 %v1357, %v1518
        %v1520 = vpop.f32.mrb[0].mxu0
        %v1521 = vpop.f32.mrb[0].mxu0
        %v1522 = vadd.f32 %v1357, %v1521
        %v1523 = vpop.f32.mrb[0].mxu0
        %1524 = vmatprep.mubr.bf16.mxu0 0
        %1525 = vmatmul.mubr.bf16.gmra.mrb[0].mxu0 %v1429
        %v1526 = vpop.f32.mrb[0].mxu0
        %v1527 = vadd.f32 %v1357, %v1526
        %v1528 = vpop.f32.mrb[0].mxu0
        %v1529 = vpop.f32.mrb[0].mxu0
        %v1530 = vadd.f32 %v1357, %v1529
        %v1531 = vpop.f32.mrb[0].mxu0
        %1532 = vdwg.mxu0
        %v1533 = vld [vmem:[%s5] sm:$0xf]
        %v1534 = vld [vmem:[%s5 + $0x4] sm:$0xf]
        %v1535 = vld [vmem:[%s5 + $0x8] sm:$0xf]
        %v1536 = vld [vmem:[%s5 + $0xc] sm:$0xf]
        %v1537 = vld [vmem:[%s5 + $0x10] sm:$0xf]
        %v1538 = vld [vmem:[%s5 + $0x14] sm:$0xf]
        %v1539 = vld [vmem:[%s5 + $0x18] sm:$0xf]
        %v1540 = vld [vmem:[%s5 + $0x1c] sm:$0xf]
        %v1541 = vld [vmem:[%s5 + $0x20] sm:$0xf]
        %v1542 = vld [vmem:[%s5 + $0x24] sm:$0xf]
        %v1543 = vld [vmem:[%s5 + $0x28] sm:$0xf]
        %v1544 = vld [vmem:[%s5 + $0x2c] sm:$0xf]
        %v1545 = vld [vmem:[%s5 + $0x30] sm:$0xf]
        %v1546 = vld [vmem:[%s5 + $0x34] sm:$0xf]
        %v1547 = vld [vmem:[%s5 + $0x38] sm:$0xf]
        %v1548 = vld [vmem:[%s5 + $0x3c] sm:$0xf]
        %v1549 = vld [vmem:[%s833] sm:$0x1]
        %v1551 = vlaneseq
        %v1552 = vshrl.u32 %v1551, 7
        %v1553 = vsub.s32 0, %v1552
        %v1554 = vrot.slane %v1549, %v1553
        %v1556 = vadd.f32 %v1466, %v1554
        %v1557 = vadd.f32 %v1470, %v1554
        %v1558 = vadd.f32 %v1476, %v1554
        %v1559 = vadd.f32 %v1480, %v1554
        %v1560 = vpack.c.bf16 %v1557, %v1556
        %v1561 = vpack.c.bf16 %v1559, %v1558
        %v1578 = vunpack.c.l.b16 %v1533
        %v1579 = vunpack.c.l.b16 %v1534
        %v1580 = vunpack.c.l.b16 %v1535
        %v1581 = vunpack.c.l.b16 %v1536
        %v1582 = vunpack.c.l.b16 %v1537
        %v1583 = vunpack.c.l.b16 %v1538
        %v1584 = vunpack.c.l.b16 %v1539
        %v1585 = vunpack.c.l.b16 %v1540
        %v1586 = vunpack.c.l.b16 %v1541
        %v1587 = vunpack.c.l.b16 %v1542
        %v1588 = vunpack.c.l.b16 %v1543
        %v1589 = vunpack.c.l.b16 %v1544
        %v1590 = vunpack.c.l.b16 %v1545
        %v1591 = vunpack.c.l.b16 %v1546
        %v1592 = vunpack.c.l.b16 %v1547
        %v1593 = vunpack.c.l.b16 %v1548
        %v1594 = vpack.c.b16 %v1579, %v1578
        %v1595 = vpack.c.b16 %v1581, %v1580
        %v1596 = vpack.c.b16 %v1583, %v1582
        %v1597 = vpack.c.b16 %v1585, %v1584
        %v1598 = vpack.c.b16 %v1587, %v1586
        %v1599 = vpack.c.b16 %v1589, %v1588
        %v1600 = vpack.c.b16 %v1591, %v1590
        %v1601 = vpack.c.b16 %v1593, %v1592
        %v1610 = vmul.bf16 %v1560, %v1594
        %v1611 = vmul.bf16 %v1561, %v1595
        %v1612 = vmul.bf16 %v1560, %v1596
        %v1613 = vmul.bf16 %v1561, %v1597
        %v1614 = vmul.bf16 %v1560, %v1598
        %v1615 = vmul.bf16 %v1561, %v1599
        %v1616 = vmul.bf16 %v1560, %v1600
        %v1617 = vmul.bf16 %v1561, %v1601
        %v1618 = vld [vmem:[%s841] sm:$0x1]
        %v1620 = vlaneseq
        %v1621 = vshrl.u32 %v1620, 7
        %v1622 = vsub.s32 0, %v1621
        %v1623 = vrot.slane %v1618, %v1622
        %v1625 = vadd.f32 %v1466, %v1623
        %v1626 = vadd.f32 %v1470, %v1623
        %v1627 = vadd.f32 %v1476, %v1623
        %v1628 = vadd.f32 %v1480, %v1623
        %v1629 = vpack.c.bf16 %v1626, %v1625
        %v1630 = vpack.c.bf16 %v1628, %v1627
        %v1631 = vmul.bf16 %v1629, %v1594
        %v1632 = vmul.bf16 %v1630, %v1595
        %v1633 = vmul.bf16 %v1629, %v1596
        %v1634 = vmul.bf16 %v1630, %v1597
        %v1635 = vmul.bf16 %v1629, %v1598
        %v1636 = vmul.bf16 %v1630, %v1599
        %v1637 = vmul.bf16 %v1629, %v1600
        %v1638 = vmul.bf16 %v1630, %v1601
        %v1639 = vpack.c.bf16 %v1472, %v1468
        %v1640 = vpack.c.bf16 %v1482, %v1478
        %v1641 = vpack.c.bf16 %v1522, %v1519
        %v1642 = vpack.c.bf16 %v1530, %v1527
        %v1643 = vld [vmem:[%s850] sm:$0xf]
        %v1644 = vld [vmem:[%s850 + $0x4] sm:$0xf]
        %v1645 = vld [vmem:[%s850 + $0x8] sm:$0xf]
        %v1646 = vld [vmem:[%s850 + $0xc] sm:$0xf]
        %v1651 = vunpack.c.l.b16 %v1643
        %v1652 = vunpack.c.l.b16 %v1644
        %v1653 = vunpack.c.l.b16 %v1645
        %v1654 = vunpack.c.l.b16 %v1646
        %v1655 = vpack.c.b16 %v1652, %v1651
        %v1656 = vpack.c.b16 %v1654, %v1653
        %v1658 = vsel %vm1250, %v1631, 0
        %v1661 = vsel %vm1250, %v1632, 0
        %v1664 = vsel %vm1250, %v1633, 0
        %v1667 = vsel %vm1250, %v1634, 0
        %v1670 = vsel %vm1250, %v1635, 0
        %v1673 = vsel %vm1250, %v1636, 0
        %v1676 = vsel %vm1250, %v1637, 0
        %v1679 = vsel %vm1250, %v1638, 0
        %v1682 = vsel %vm1250, %v1655, 0
        %v1685 = vsel %vm1250, %v1656, 0
        %1687 = vmatprep.subr.bf16.mxu0 0
        %1688 = vmatpush1.bf16.xpose.msra.mxu0 %v1682
        %1689 = vmatprep.subr.bf16.mxu0 0
        %1690 = vmatpush1.bf16.xpose.msra.mxu0 %v1685
        %1691 = vmatprep.subr.bf16.mxu0 0
        %1692 = vmatpush1.bf16.xpose.msra.mxu0 0
        %1693 = vmatprep.subr.bf16.mxu0 0
        %1694 = vmatpush1.bf16.xpose.msra.mxu0 0
        %1695 = vmatprep.subr.bf16.mxu0 0
        %1696 = vmatpush1.bf16.xpose.msra.mxu0 0
        %1697 = vmatprep.subr.bf16.mxu0 0
        %1698 = vmatpush1.bf16.xpose.msra.mxu0 0
        %1699 = vmatprep.subr.bf16.mxu0 0
        %1700 = vmatpush1.bf16.xpose.msra.mxu0 0
        %1701 = vmatprep.subr.bf16.mxu0 0
        %1702 = vmatpush1.bf16.xpose.msra.mxu0 0
        %1703 = vmatprep.subr.bf16.mxu0 0
        %1704 = vmatpush1.bf16.xpose.msra.mxu0 0
        %1705 = vmatprep.subr.bf16.mxu0 0
        %1706 = vmatpush1.bf16.xpose.msra.mxu0 0
        %1707 = vmatprep.subr.bf16.mxu0 0
        %1708 = vmatpush1.bf16.xpose.msra.mxu0 0
        %1709 = vmatprep.subr.bf16.mxu0 0
        %1710 = vmatpush1.bf16.xpose.msra.mxu0 0
        %1711 = vmatprep.subr.bf16.mxu0 0
        %1712 = vmatpush1.bf16.xpose.msra.mxu0 0
        %1713 = vmatprep.subr.bf16.mxu0 0
        %1714 = vmatpush1.bf16.xpose.msra.mxu0 0
        %1715 = vmatprep.subr.bf16.mxu0 0
        %1716 = vmatpush1.bf16.xpose.msra.mxu0 0
        %1717 = vmatprep.subr.bf16.mxu0 0
        %1718 = vmatpush1.bf16.xpose.msra.mxu0 0
        %1719 = vmatprep.mubr.bf16.mxu0 0
        %1720 = vmatmul.mubr.bf16.gmra.mrb[0].mxu0 %v1658
        %v1721 = vpop.f32.mrb[0].mxu0
        %v1722 = vadd.f32 0.0, %v1721
        %v1723 = vpop.f32.mrb[0].mxu0
        %v1724 = vpop.f32.mrb[0].mxu0
        %v1725 = vadd.f32 0.0, %v1724
        %v1726 = vpop.f32.mrb[0].mxu0
        %1727 = vmatprep.mubr.bf16.mxu0 0
        %1728 = vmatmul.mubr.bf16.gmra.mrb[0].mxu0 %v1661
        %v1729 = vpop.f32.mrb[0].mxu0
        %v1730 = vadd.f32 0.0, %v1729
        %v1731 = vpop.f32.mrb[0].mxu0
        %v1732 = vpop.f32.mrb[0].mxu0
        %v1733 = vadd.f32 0.0, %v1732
        %v1734 = vpop.f32.mrb[0].mxu0
        %1735 = vmatprep.mubr.bf16.mxu0 0
        %1736 = vmatmul.mubr.bf16.gmra.mrb[0].mxu0 %v1664
        %v1737 = vpop.f32.mrb[0].mxu0
        %v1738 = vadd.f32 0.0, %v1737
        %v1739 = vpop.f32.mrb[0].mxu0
        %v1740 = vpop.f32.mrb[0].mxu0
        %v1741 = vadd.f32 0.0, %v1740
        %v1742 = vpop.f32.mrb[0].mxu0
        %1743 = vmatprep.mubr.bf16.mxu0 0
        %1744 = vmatmul.mubr.bf16.gmra.mrb[0].mxu0 %v1667
        %v1745 = vpop.f32.mrb[0].mxu0
        %v1746 = vadd.f32 0.0, %v1745
        %v1747 = vpop.f32.mrb[0].mxu0
        %v1748 = vpop.f32.mrb[0].mxu0
        %v1749 = vadd.f32 0.0, %v1748
        %v1750 = vpop.f32.mrb[0].mxu0
        %1751 = vmatprep.mubr.bf16.mxu0 0
        %1752 = vmatmul.mubr.bf16.gmra.mrb[0].mxu0 %v1670
        %v1753 = vpop.f32.mrb[0].mxu0
        %v1754 = vadd.f32 0.0, %v1753
        %v1755 = vpop.f32.mrb[0].mxu0
        %v1756 = vpop.f32.mrb[0].mxu0
        %v1757 = vadd.f32 0.0, %v1756
        %v1758 = vpop.f32.mrb[0].mxu0
        %1759 = vmatprep.mubr.bf16.mxu0 0
        %1760 = vmatmul.mubr.bf16.gmra.mrb[0].mxu0 %v1673
        %v1761 = vpop.f32.mrb[0].mxu0
        %v1762 = vadd.f32 0.0, %v1761
        %v1763 = vpop.f32.mrb[0].mxu0
        %v1764 = vpop.f32.mrb[0].mxu0
        %v1765 = vadd.f32 0.0, %v1764
        %v1766 = vpop.f32.mrb[0].mxu0
        %1767 = vmatprep.mubr.bf16.mxu0 0
        %1768 = vmatmul.mubr.bf16.gmra.mrb[0].mxu0 %v1676
        %v1769 = vpop.f32.mrb[0].mxu0
        %v1770 = vadd.f32 0.0, %v1769
        %v1771 = vpop.f32.mrb[0].mxu0
        %v1772 = vpop.f32.mrb[0].mxu0
        %v1773 = vadd.f32 0.0, %v1772
        %v1774 = vpop.f32.mrb[0].mxu0
        %1775 = vmatprep.mubr.bf16.mxu0 0
        %1776 = vmatmul.mubr.bf16.gmra.mrb[0].mxu0 %v1679
        %v1777 = vpop.f32.mrb[0].mxu0
        %v1778 = vadd.f32 0.0, %v1777
        %v1779 = vpop.f32.mrb[0].mxu0
        %v1780 = vpop.f32.mrb[0].mxu0
        %v1781 = vadd.f32 0.0, %v1780
        %v1782 = vpop.f32.mrb[0].mxu0
        %1783 = vdwg.mxu0
        %vm1800 = vcmask 1046528
        %v1801 = vrot.slane %v1722, 1
        %v1802 = vrot.slane %v1725, 1
        %v1803 = vsel %vm1800, %v1801, %v1802
        %v1804 = vrot.slane %v1730, 1
        %v1805 = vsel %vm1800, %v1802, %v1804
        %v1806 = vrot.slane %v1733, 1
        %v1807 = vsel %vm1800, %v1804, %v1806
        %v1808 = vrot.slane %v1738, 1
        %v1809 = vsel %vm1800, %v1806, %v1808
        %v1810 = vrot.slane %v1741, 1
        %v1811 = vsel %vm1800, %v1808, %v1810
        %v1812 = vrot.slane %v1746, 1
        %v1813 = vsel %vm1800, %v1810, %v1812
        %v1814 = vrot.slane %v1749, 1
        %v1815 = vsel %vm1800, %v1812, %v1814
        %v1816 = vrot.slane %v1754, 1
        %v1817 = vsel %vm1800, %v1814, %v1816
        %v1818 = vrot.slane %v1757, 1
        %v1819 = vsel %vm1800, %v1816, %v1818
        %v1820 = vrot.slane %v1762, 1
        %v1821 = vsel %vm1800, %v1818, %v1820
        %v1822 = vrot.slane %v1765, 1
        %v1823 = vsel %vm1800, %v1820, %v1822
        %v1824 = vrot.slane %v1770, 1
        %v1825 = vsel %vm1800, %v1822, %v1824
        %v1826 = vrot.slane %v1773, 1
        %v1827 = vsel %vm1800, %v1824, %v1826
        %v1828 = vrot.slane %v1778, 1
        %v1829 = vsel %vm1800, %v1826, %v1828
        %v1830 = vrot.slane %v1781, 1
        %v1831 = vsel %vm1800, %v1828, %v1830
        %v1833 = vsel %vm1800, %v1830, 0.0
        %1835 = vrot.lane.b32.xlu0 %v1803, 33
        %v1836 = vpop.permute.xlu0 %1835
        %1837 = vrot.lane.b32.xlu0 %v1805, 33
        %v1838 = vpop.permute.xlu0 %1837
        %1839 = vrot.lane.b32.xlu0 %v1807, 33
        %v1840 = vpop.permute.xlu0 %1839
        %1841 = vrot.lane.b32.xlu0 %v1809, 33
        %v1842 = vpop.permute.xlu0 %1841
        %1843 = vrot.lane.b32.xlu0 %v1811, 33
        %v1844 = vpop.permute.xlu0 %1843
        %1845 = vrot.lane.b32.xlu0 %v1813, 33
        %v1846 = vpop.permute.xlu0 %1845
        %1847 = vrot.lane.b32.xlu0 %v1815, 33
        %v1848 = vpop.permute.xlu0 %1847
        %1849 = vrot.lane.b32.xlu0 %v1817, 33
        %v1850 = vpop.permute.xlu0 %1849
        %1851 = vrot.lane.b32.xlu0 %v1819, 33
        %v1852 = vpop.permute.xlu0 %1851
        %1853 = vrot.lane.b32.xlu0 %v1821, 33
        %v1854 = vpop.permute.xlu0 %1853
        %1855 = vrot.lane.b32.xlu0 %v1823, 33
        %v1856 = vpop.permute.xlu0 %1855
        %1857 = vrot.lane.b32.xlu0 %v1825, 33
        %v1858 = vpop.permute.xlu0 %1857
        %1859 = vrot.lane.b32.xlu0 %v1827, 33
        %v1860 = vpop.permute.xlu0 %1859
        %1861 = vrot.lane.b32.xlu0 %v1829, 33
        %v1862 = vpop.permute.xlu0 %1861
        %1863 = vrot.lane.b32.xlu0 %v1831, 33
        %v1864 = vpop.permute.xlu0 %1863
        %1865 = vrot.lane.b32.xlu0 %v1833, 33
        %v1866 = vpop.permute.xlu0 %1865
        %vm1883 = vcmask 261120
        %v1884 = vsel %vm1883, %v1722, 0.0
        %v1885 = vsel %vm1883, %v1725, 0.0
        %v1886 = vsel %vm1883, %v1730, 0.0
        %v1887 = vsel %vm1883, %v1733, 0.0
        %v1888 = vsel %vm1883, %v1738, 0.0
        %v1889 = vsel %vm1883, %v1741, 0.0
        %v1890 = vsel %vm1883, %v1746, 0.0
        %v1891 = vsel %vm1883, %v1749, 0.0
        %v1892 = vsel %vm1883, %v1754, 0.0
        %v1893 = vsel %vm1883, %v1757, 0.0
        %v1894 = vsel %vm1883, %v1762, 0.0
        %v1895 = vsel %vm1883, %v1765, 0.0
        %v1896 = vsel %vm1883, %v1770, 0.0
        %v1897 = vsel %vm1883, %v1773, 0.0
        %v1898 = vsel %vm1883, %v1778, 0.0
        %v1899 = vsel %vm1883, %v1781, 0.0
        %vm1900 = vcmask 269312
        %v1901 = vsel %vm1900, %v1884, %v1836
        %v1902 = vsel %vm1900, %v1885, %v1838
        %v1903 = vsel %vm1900, %v1886, %v1840
        %v1904 = vsel %vm1900, %v1887, %v1842
        %v1905 = vsel %vm1900, %v1888, %v1844
        %v1906 = vsel %vm1900, %v1889, %v1846
        %v1907 = vsel %vm1900, %v1890, %v1848
        %v1908 = vsel %vm1900, %v1891, %v1850
        %v1909 = vsel %vm1900, %v1892, %v1852
        %v1910 = vsel %vm1900, %v1893, %v1854
        %v1911 = vsel %vm1900, %v1894, %v1856
        %v1912 = vsel %vm1900, %v1895, %v1858
        %v1913 = vsel %vm1900, %v1896, %v1860
        %v1914 = vsel %vm1900, %v1897, %v1862
        %v1915 = vsel %vm1900, %v1898, %v1864
        %v1916 = vsel %vm1900, %v1899, %v1866
        %vm1917 = vcmask 515072
        %v1918 = vsel %vm1917, %v1901, 0.0
        %v1919 = vsel %vm1917, %v1902, 0.0
        %v1920 = vsel %vm1917, %v1903, 0.0
        %v1921 = vsel %vm1917, %v1904, 0.0
        %v1922 = vsel %vm1917, %v1905, 0.0
        %v1923 = vsel %vm1917, %v1906, 0.0
        %v1924 = vsel %vm1917, %v1907, 0.0
        %v1925 = vsel %vm1917, %v1908, 0.0
        %v1926 = vsel %vm1917, %v1909, 0.0
        %v1927 = vsel %vm1917, %v1910, 0.0
        %v1928 = vsel %vm1917, %v1911, 0.0
        %v1929 = vsel %vm1917, %v1912, 0.0
        %v1930 = vsel %vm1917, %v1913, 0.0
        %v1931 = vsel %vm1917, %v1914, 0.0
        %v1932 = vsel %vm1917, %v1915, 0.0
        %v1933 = vsel %vm1917, %v1916, 0.0
        %1950 = vrot.lane.b32.xlu0 %v1918, 127
        %v1951 = vpop.permute.xlu0 %1950
        %1952 = vrot.lane.b32.xlu0 %v1919, 127
        %v1953 = vpop.permute.xlu0 %1952
        %1954 = vrot.lane.b32.xlu0 %v1920, 127
        %v1955 = vpop.permute.xlu0 %1954
        %1956 = vrot.lane.b32.xlu0 %v1921, 127
        %v1957 = vpop.permute.xlu0 %1956
        %1958 = vrot.lane.b32.xlu0 %v1922, 127
        %v1959 = vpop.permute.xlu0 %1958
        %1960 = vrot.lane.b32.xlu0 %v1923, 127
        %v1961 = vpop.permute.xlu0 %1960
        %1962 = vrot.lane.b32.xlu0 %v1924, 127
        %v1963 = vpop.permute.xlu0 %1962
        %1964 = vrot.lane.b32.xlu0 %v1925, 127
        %v1965 = vpop.permute.xlu0 %1964
        %1966 = vrot.lane.b32.xlu0 %v1926, 127
        %v1967 = vpop.permute.xlu0 %1966
        %1968 = vrot.lane.b32.xlu0 %v1927, 127
        %v1969 = vpop.permute.xlu0 %1968
        %1970 = vrot.lane.b32.xlu0 %v1928, 127
        %v1971 = vpop.permute.xlu0 %1970
        %1972 = vrot.lane.b32.xlu0 %v1929, 127
        %v1973 = vpop.permute.xlu0 %1972
        %1974 = vrot.lane.b32.xlu0 %v1930, 127
        %v1975 = vpop.permute.xlu0 %1974
        %1976 = vrot.lane.b32.xlu0 %v1931, 127
        %v1977 = vpop.permute.xlu0 %1976
        %1978 = vrot.lane.b32.xlu0 %v1932, 127
        %v1979 = vpop.permute.xlu0 %1978
        %1980 = vrot.lane.b32.xlu0 %v1933, 127
        %v1981 = vpop.permute.xlu0 %1980
        %1998 = vrot.lane.b32.xlu0 %v1918, 63
        %v1999 = vpop.permute.xlu0 %1998
        %2000 = vrot.lane.b32.xlu0 %v1919, 63
        %v2001 = vpop.permute.xlu0 %2000
        %2002 = vrot.lane.b32.xlu0 %v1920, 63
        %v2003 = vpop.permute.xlu0 %2002
        %2004 = vrot.lane.b32.xlu0 %v1921, 63
        %v2005 = vpop.permute.xlu0 %2004
        %2006 = vrot.lane.b32.xlu0 %v1922, 63
        %v2007 = vpop.permute.xlu0 %2006
        %2008 = vrot.lane.b32.xlu0 %v1923, 63
        %v2009 = vpop.permute.xlu0 %2008
        %2010 = vrot.lane.b32.xlu0 %v1924, 63
        %v2011 = vpop.permute.xlu0 %2010
        %2012 = vrot.lane.b32.xlu0 %v1925, 63
        %v2013 = vpop.permute.xlu0 %2012
        %2014 = vrot.lane.b32.xlu0 %v1926, 63
        %v2015 = vpop.permute.xlu0 %2014
        %2016 = vrot.lane.b32.xlu0 %v1927, 63
        %v2017 = vpop.permute.xlu0 %2016
        %2018 = vrot.lane.b32.xlu0 %v1928, 63
        %v2019 = vpop.permute.xlu0 %2018
        %2020 = vrot.lane.b32.xlu0 %v1929, 63
        %v2021 = vpop.permute.xlu0 %2020
        %2022 = vrot.lane.b32.xlu0 %v1930, 63
        %v2023 = vpop.permute.xlu0 %2022
        %2024 = vrot.lane.b32.xlu0 %v1931, 63
        %v2025 = vpop.permute.xlu0 %2024
        %2026 = vrot.lane.b32.xlu0 %v1932, 63
        %v2027 = vpop.permute.xlu0 %2026
        %2028 = vrot.lane.b32.xlu0 %v1933, 63
        %v2029 = vpop.permute.xlu0 %2028
        %v2046 = vsel %vm1917, %v1951, %v1999
        %v2047 = vsel %vm1917, %v1953, %v2001
        %v2048 = vsel %vm1917, %v1955, %v2003
        %v2049 = vsel %vm1917, %v1957, %v2005
        %v2050 = vsel %vm1917, %v1959, %v2007
        %v2051 = vsel %vm1917, %v1961, %v2009
        %v2052 = vsel %vm1917, %v1963, %v2011
        %v2053 = vsel %vm1917, %v1965, %v2013
        %v2054 = vsel %vm1917, %v1967, %v2015
        %v2055 = vsel %vm1917, %v1969, %v2017
        %v2056 = vsel %vm1917, %v1971, %v2019
        %v2057 = vsel %vm1917, %v1973, %v2021
        %v2058 = vsel %vm1917, %v1975, %v2023
        %v2059 = vsel %vm1917, %v1977, %v2025
        %v2060 = vsel %vm1917, %v1979, %v2027
        %v2061 = vsel %vm1917, %v1981, %v2029
        %v2062 = vld [vmem:[%s6] sm:$0xff]
        %v2063 = vld [vmem:[%s6 + $0x8] sm:$0xff]
        %v2064 = vld [vmem:[%s6 + $0x10] sm:$0xff]
        %v2065 = vld [vmem:[%s6 + $0x18] sm:$0xff]
        %v2066 = vld [vmem:[%s6 + $0x20] sm:$0xff]
        %v2067 = vld [vmem:[%s6 + $0x28] sm:$0xff]
        %v2068 = vld [vmem:[%s6 + $0x30] sm:$0xff]
        %v2069 = vld [vmem:[%s6 + $0x38] sm:$0xff]
        %v2070 = vld [vmem:[%s6 + $0x40] sm:$0xff]
        %v2071 = vld [vmem:[%s6 + $0x48] sm:$0xff]
        %v2072 = vld [vmem:[%s6 + $0x50] sm:$0xff]
        %v2073 = vld [vmem:[%s6 + $0x58] sm:$0xff]
        %v2074 = vld [vmem:[%s6 + $0x60] sm:$0xff]
        %v2075 = vld [vmem:[%s6 + $0x68] sm:$0xff]
        %v2076 = vld [vmem:[%s6 + $0x70] sm:$0xff]
        %v2077 = vld [vmem:[%s6 + $0x78] sm:$0xff]
        %vm2078 = vcmp.gt.f32.partialorder %v2062, 0.0
        %vm2079 = vcmp.gt.f32.partialorder %v2063, 0.0
        %vm2080 = vcmp.gt.f32.partialorder %v2064, 0.0
        %vm2081 = vcmp.gt.f32.partialorder %v2065, 0.0
        %vm2082 = vcmp.gt.f32.partialorder %v2066, 0.0
        %vm2083 = vcmp.gt.f32.partialorder %v2067, 0.0
        %vm2084 = vcmp.gt.f32.partialorder %v2068, 0.0
        %vm2085 = vcmp.gt.f32.partialorder %v2069, 0.0
        %vm2086 = vcmp.gt.f32.partialorder %v2070, 0.0
        %vm2087 = vcmp.gt.f32.partialorder %v2071, 0.0
        %vm2088 = vcmp.gt.f32.partialorder %v2072, 0.0
        %vm2089 = vcmp.gt.f32.partialorder %v2073, 0.0
        %vm2090 = vcmp.gt.f32.partialorder %v2074, 0.0
        %vm2091 = vcmp.gt.f32.partialorder %v2075, 0.0
        %vm2092 = vcmp.gt.f32.partialorder %v2076, 0.0
        %vm2093 = vcmp.gt.f32.partialorder %v2077, 0.0
        %v2094 = vsel %vm2078, 1, 0
        %v2095 = vsel %vm2079, 1, 0
        %v2096 = vsel %vm2080, 1, 0
        %v2097 = vsel %vm2081, 1, 0
        %v2098 = vsel %vm2082, 1, 0
        %v2099 = vsel %vm2083, 1, 0
        %v2100 = vsel %vm2084, 1, 0
        %v2101 = vsel %vm2085, 1, 0
        %v2102 = vsel %vm2086, 1, 0
        %v2103 = vsel %vm2087, 1, 0
        %v2104 = vsel %vm2088, 1, 0
        %v2105 = vsel %vm2089, 1, 0
        %v2106 = vsel %vm2090, 1, 0
        %v2107 = vsel %vm2091, 1, 0
        %v2108 = vsel %vm2092, 1, 0
        %v2109 = vsel %vm2093, 1, 0
        %2110 = vset.pattern.permute.xlu0 0
        %2111 = vperm.xlu0 %2110, %v2094
        %v2112 = vpop.permute.xlu0 %2111
        %2113 = vset.pattern.permute.xlu0 0
        %2114 = vperm.xlu0 %2113, %v2095
        %v2115 = vpop.permute.xlu0 %2114
        %2116 = vset.pattern.permute.xlu0 0
        %2117 = vperm.xlu0 %2116, %v2096
        %v2118 = vpop.permute.xlu0 %2117
        %2119 = vset.pattern.permute.xlu0 0
        %2120 = vperm.xlu0 %2119, %v2097
        %v2121 = vpop.permute.xlu0 %2120
        %2122 = vset.pattern.permute.xlu0 0
        %2123 = vperm.xlu0 %2122, %v2098
        %v2124 = vpop.permute.xlu0 %2123
        %2125 = vset.pattern.permute.xlu0 0
        %2126 = vperm.xlu0 %2125, %v2099
        %v2127 = vpop.permute.xlu0 %2126
        %2128 = vset.pattern.permute.xlu0 0
        %2129 = vperm.xlu0 %2128, %v2100
        %v2130 = vpop.permute.xlu0 %2129
        %2131 = vset.pattern.permute.xlu0 0
        %2132 = vperm.xlu0 %2131, %v2101
        %v2133 = vpop.permute.xlu0 %2132
        %2134 = vset.pattern.permute.xlu0 0
        %2135 = vperm.xlu0 %2134, %v2102
        %v2136 = vpop.permute.xlu0 %2135
        %2137 = vset.pattern.permute.xlu0 0
        %2138 = vperm.xlu0 %2137, %v2103
        %v2139 = vpop.permute.xlu0 %2138
        %2140 = vset.pattern.permute.xlu0 0
        %2141 = vperm.xlu0 %2140, %v2104
        %v2142 = vpop.permute.xlu0 %2141
        %2143 = vset.pattern.permute.xlu0 0
        %2144 = vperm.xlu0 %2143, %v2105
        %v2145 = vpop.permute.xlu0 %2144
        %2146 = vset.pattern.permute.xlu0 0
        %2147 = vperm.xlu0 %2146, %v2106
        %v2148 = vpop.permute.xlu0 %2147
        %2149 = vset.pattern.permute.xlu0 0
        %2150 = vperm.xlu0 %2149, %v2107
        %v2151 = vpop.permute.xlu0 %2150
        %2152 = vset.pattern.permute.xlu0 0
        %2153 = vperm.xlu0 %2152, %v2108
        %v2154 = vpop.permute.xlu0 %2153
        %2155 = vset.pattern.permute.xlu0 0
        %2156 = vperm.xlu0 %2155, %v2109
        %v2157 = vpop.permute.xlu0 %2156
        %vm2158 = vcmp.eq.s32.totalorder %v2112, 1
        %vm2159 = vcmp.eq.s32.totalorder %v2115, 1
        %vm2160 = vcmp.eq.s32.totalorder %v2118, 1
        %vm2161 = vcmp.eq.s32.totalorder %v2121, 1
        %vm2162 = vcmp.eq.s32.totalorder %v2124, 1
        %vm2163 = vcmp.eq.s32.totalorder %v2127, 1
        %vm2164 = vcmp.eq.s32.totalorder %v2130, 1
        %vm2165 = vcmp.eq.s32.totalorder %v2133, 1
        %vm2166 = vcmp.eq.s32.totalorder %v2136, 1
        %vm2167 = vcmp.eq.s32.totalorder %v2139, 1
        %vm2168 = vcmp.eq.s32.totalorder %v2142, 1
        %vm2169 = vcmp.eq.s32.totalorder %v2145, 1
        %vm2170 = vcmp.eq.s32.totalorder %v2148, 1
        %vm2171 = vcmp.eq.s32.totalorder %v2151, 1
        %vm2172 = vcmp.eq.s32.totalorder %v2154, 1
        %vm2173 = vcmp.eq.s32.totalorder %v2157, 1
        %v2174 = vsel %vm2158, %v2046, %v1918
        %v2175 = vsel %vm2159, %v2047, %v1919
        %v2176 = vsel %vm2160, %v2048, %v1920
        %v2177 = vsel %vm2161, %v2049, %v1921
        %v2178 = vsel %vm2162, %v2050, %v1922
        %v2179 = vsel %vm2163, %v2051, %v1923
        %v2180 = vsel %vm2164, %v2052, %v1924
        %v2181 = vsel %vm2165, %v2053, %v1925
        %v2182 = vsel %vm2166, %v2054, %v1926
        %v2183 = vsel %vm2167, %v2055, %v1927
        %v2184 = vsel %vm2168, %v2056, %v1928
        %v2185 = vsel %vm2169, %v2057, %v1929
        %v2186 = vsel %vm2170, %v2058, %v1930
        %v2187 = vsel %vm2171, %v2059, %v1931
        %v2188 = vsel %vm2172, %v2060, %v1932
        %v2189 = vsel %vm2173, %v2061, %v1933
        %2206 = vrot.lane.b32.xlu0 %v2174, 126
        %v2207 = vpop.permute.xlu0 %2206
        %2208 = vrot.lane.b32.xlu0 %v2175, 126
        %v2209 = vpop.permute.xlu0 %2208
        %2210 = vrot.lane.b32.xlu0 %v2176, 126
        %v2211 = vpop.permute.xlu0 %2210
        %2212 = vrot.lane.b32.xlu0 %v2177, 126
        %v2213 = vpop.permute.xlu0 %2212
        %2214 = vrot.lane.b32.xlu0 %v2178, 126
        %v2215 = vpop.permute.xlu0 %2214
        %2216 = vrot.lane.b32.xlu0 %v2179, 126
        %v2217 = vpop.permute.xlu0 %2216
        %2218 = vrot.lane.b32.xlu0 %v2180, 126
        %v2219 = vpop.permute.xlu0 %2218
        %2220 = vrot.lane.b32.xlu0 %v2181, 126
        %v2221 = vpop.permute.xlu0 %2220
        %2222 = vrot.lane.b32.xlu0 %v2182, 126
        %v2223 = vpop.permute.xlu0 %2222
        %2224 = vrot.lane.b32.xlu0 %v2183, 126
        %v2225 = vpop.permute.xlu0 %2224
        %2226 = vrot.lane.b32.xlu0 %v2184, 126
        %v2227 = vpop.permute.xlu0 %2226
        %2228 = vrot.lane.b32.xlu0 %v2185, 126
        %v2229 = vpop.permute.xlu0 %2228
        %2230 = vrot.lane.b32.xlu0 %v2186, 126
        %v2231 = vpop.permute.xlu0 %2230
        %2232 = vrot.lane.b32.xlu0 %v2187, 126
        %v2233 = vpop.permute.xlu0 %2232
        %2234 = vrot.lane.b32.xlu0 %v2188, 126
        %v2235 = vpop.permute.xlu0 %2234
        %2236 = vrot.lane.b32.xlu0 %v2189, 126
        %v2237 = vpop.permute.xlu0 %2236
        %2254 = vrot.lane.b32.xlu0 %v2174, 62
        %v2255 = vpop.permute.xlu0 %2254
        %2256 = vrot.lane.b32.xlu0 %v2175, 62
        %v2257 = vpop.permute.xlu0 %2256
        %2258 = vrot.lane.b32.xlu0 %v2176, 62
        %v2259 = vpop.permute.xlu0 %2258
        %2260 = vrot.lane.b32.xlu0 %v2177, 62
        %v2261 = vpop.permute.xlu0 %2260
        %2262 = vrot.lane.b32.xlu0 %v2178, 62
        %v2263 = vpop.permute.xlu0 %2262
        %2264 = vrot.lane.b32.xlu0 %v2179, 62
        %v2265 = vpop.permute.xlu0 %2264
        %2266 = vrot.lane.b32.xlu0 %v2180, 62
        %v2267 = vpop.permute.xlu0 %2266
        %2268 = vrot.lane.b32.xlu0 %v2181, 62
        %v2269 = vpop.permute.xlu0 %2268
        %2270 = vrot.lane.b32.xlu0 %v2182, 62
        %v2271 = vpop.permute.xlu0 %2270
        %2272 = vrot.lane.b32.xlu0 %v2183, 62
        %v2273 = vpop.permute.xlu0 %2272
        %2274 = vrot.lane.b32.xlu0 %v2184, 62
        %v2275 = vpop.permute.xlu0 %2274
        %2276 = vrot.lane.b32.xlu0 %v2185, 62
        %v2277 = vpop.permute.xlu0 %2276
        %2278 = vrot.lane.b32.xlu0 %v2186, 62
        %v2279 = vpop.permute.xlu0 %2278
        %2280 = vrot.lane.b32.xlu0 %v2187, 62
        %v2281 = vpop.permute.xlu0 %2280
        %2282 = vrot.lane.b32.xlu0 %v2188, 62
        %v2283 = vpop.permute.xlu0 %2282
        %2284 = vrot.lane.b32.xlu0 %v2189, 62
        %v2285 = vpop.permute.xlu0 %2284
        %vm2302 = vcmask 506880
        %v2303 = vsel %vm2302, %v2207, %v2255
        %v2304 = vsel %vm2302, %v2209, %v2257
        %v2305 = vsel %vm2302, %v2211, %v2259
        %v2306 = vsel %vm2302, %v2213, %v2261
        %v2307 = vsel %vm2302, %v2215, %v2263
        %v2308 = vsel %vm2302, %v2217, %v2265
        %v2309 = vsel %vm2302, %v2219, %v2267
        %v2310 = vsel %vm2302, %v2221, %v2269
        %v2311 = vsel %vm2302, %v2223, %v2271
        %v2312 = vsel %vm2302, %v2225, %v2273
        %v2313 = vsel %vm2302, %v2227, %v2275
        %v2314 = vsel %vm2302, %v2229, %v2277
        %v2315 = vsel %vm2302, %v2231, %v2279
        %v2316 = vsel %vm2302, %v2233, %v2281
        %v2317 = vsel %vm2302, %v2235, %v2283
        %v2318 = vsel %vm2302, %v2237, %v2285
        %s2319 = scalar_lea.vmem %s6, 128
        %v2320 = vld [vmem:[%s2319] sm:$0xff]
        %v2321 = vld [vmem:[%s2319 + $0x8] sm:$0xff]
        %v2322 = vld [vmem:[%s2319 + $0x10] sm:$0xff]
        %v2323 = vld [vmem:[%s2319 + $0x18] sm:$0xff]
        %v2324 = vld [vmem:[%s2319 + $0x20] sm:$0xff]
        %v2325 = vld [vmem:[%s2319 + $0x28] sm:$0xff]
        %v2326 = vld [vmem:[%s2319 + $0x30] sm:$0xff]
        %v2327 = vld [vmem:[%s2319 + $0x38] sm:$0xff]
        %v2328 = vld [vmem:[%s2319 + $0x40] sm:$0xff]
        %v2329 = vld [vmem:[%s2319 + $0x48] sm:$0xff]
        %v2330 = vld [vmem:[%s2319 + $0x50] sm:$0xff]
        %v2331 = vld [vmem:[%s2319 + $0x58] sm:$0xff]
        %v2332 = vld [vmem:[%s2319 + $0x60] sm:$0xff]
        %v2333 = vld [vmem:[%s2319 + $0x68] sm:$0xff]
        %v2334 = vld [vmem:[%s2319 + $0x70] sm:$0xff]
        %v2335 = vld [vmem:[%s2319 + $0x78] sm:$0xff]
        %vm2336 = vcmp.gt.f32.partialorder %v2320, 0.0
        %vm2337 = vcmp.gt.f32.partialorder %v2321, 0.0
        %vm2338 = vcmp.gt.f32.partialorder %v2322, 0.0
        %vm2339 = vcmp.gt.f32.partialorder %v2323, 0.0
        %vm2340 = vcmp.gt.f32.partialorder %v2324, 0.0
        %vm2341 = vcmp.gt.f32.partialorder %v2325, 0.0
        %vm2342 = vcmp.gt.f32.partialorder %v2326, 0.0
        %vm2343 = vcmp.gt.f32.partialorder %v2327, 0.0
        %vm2344 = vcmp.gt.f32.partialorder %v2328, 0.0
        %vm2345 = vcmp.gt.f32.partialorder %v2329, 0.0
        %vm2346 = vcmp.gt.f32.partialorder %v2330, 0.0
        %vm2347 = vcmp.gt.f32.partialorder %v2331, 0.0
        %vm2348 = vcmp.gt.f32.partialorder %v2332, 0.0
        %vm2349 = vcmp.gt.f32.partialorder %v2333, 0.0
        %vm2350 = vcmp.gt.f32.partialorder %v2334, 0.0
        %vm2351 = vcmp.gt.f32.partialorder %v2335, 0.0
        %v2352 = vsel %vm2336, 1, 0
        %v2353 = vsel %vm2337, 1, 0
        %v2354 = vsel %vm2338, 1, 0
        %v2355 = vsel %vm2339, 1, 0
        %v2356 = vsel %vm2340, 1, 0
        %v2357 = vsel %vm2341, 1, 0
        %v2358 = vsel %vm2342, 1, 0
        %v2359 = vsel %vm2343, 1, 0
        %v2360 = vsel %vm2344, 1, 0
        %v2361 = vsel %vm2345, 1, 0
        %v2362 = vsel %vm2346, 1, 0
        %v2363 = vsel %vm2347, 1, 0
        %v2364 = vsel %vm2348, 1, 0
        %v2365 = vsel %vm2349, 1, 0
        %v2366 = vsel %vm2350, 1, 0
        %v2367 = vsel %vm2351, 1, 0
        %2368 = vset.pattern.permute.xlu0 0
        %2369 = vperm.xlu0 %2368, %v2352
        %v2370 = vpop.permute.xlu0 %2369
        %2371 = vset.pattern.permute.xlu0 0
        %2372 = vperm.xlu0 %2371, %v2353
        %v2373 = vpop.permute.xlu0 %2372
        %2374 = vset.pattern.permute.xlu0 0
        %2375 = vperm.xlu0 %2374, %v2354
        %v2376 = vpop.permute.xlu0 %2375
        %2377 = vset.pattern.permute.xlu0 0
        %2378 = vperm.xlu0 %2377, %v2355
        %v2379 = vpop.permute.xlu0 %2378
        %2380 = vset.pattern.permute.xlu0 0
        %2381 = vperm.xlu0 %2380, %v2356
        %v2382 = vpop.permute.xlu0 %2381
        %2383 = vset.pattern.permute.xlu0 0
        %2384 = vperm.xlu0 %2383, %v2357
        %v2385 = vpop.permute.xlu0 %2384
        %2386 = vset.pattern.permute.xlu0 0
        %2387 = vperm.xlu0 %2386, %v2358
        %v2388 = vpop.permute.xlu0 %2387
        %2389 = vset.pattern.permute.xlu0 0
        %2390 = vperm.xlu0 %2389, %v2359
        %v2391 = vpop.permute.xlu0 %2390
        %2392 = vset.pattern.permute.xlu0 0
        %2393 = vperm.xlu0 %2392, %v2360
        %v2394 = vpop.permute.xlu0 %2393
        %2395 = vset.pattern.permute.xlu0 0
        %2396 = vperm.xlu0 %2395, %v2361
        %v2397 = vpop.permute.xlu0 %2396
        %2398 = vset.pattern.permute.xlu0 0
        %2399 = vperm.xlu0 %2398, %v2362
        %v2400 = vpop.permute.xlu0 %2399
        %2401 = vset.pattern.permute.xlu0 0
        %2402 = vperm.xlu0 %2401, %v2363
        %v2403 = vpop.permute.xlu0 %2402
        %2404 = vset.pattern.permute.xlu0 0
        %2405 = vperm.xlu0 %2404, %v2364
        %v2406 = vpop.permute.xlu0 %2405
        %2407 = vset.pattern.permute.xlu0 0
        %2408 = vperm.xlu0 %2407, %v2365
        %v2409 = vpop.permute.xlu0 %2408
        %2410 = vset.pattern.permute.xlu0 0
        %2411 = vperm.xlu0 %2410, %v2366
        %v2412 = vpop.permute.xlu0 %2411
        %2413 = vset.pattern.permute.xlu0 0
        %2414 = vperm.xlu0 %2413, %v2367
        %v2415 = vpop.permute.xlu0 %2414
        %vm2416 = vcmp.eq.s32.totalorder %v2370, 1
        %vm2417 = vcmp.eq.s32.totalorder %v2373, 1
        %vm2418 = vcmp.eq.s32.totalorder %v2376, 1
        %vm2419 = vcmp.eq.s32.totalorder %v2379, 1
        %vm2420 = vcmp.eq.s32.totalorder %v2382, 1
        %vm2421 = vcmp.eq.s32.totalorder %v2385, 1
        %vm2422 = vcmp.eq.s32.totalorder %v2388, 1
        %vm2423 = vcmp.eq.s32.totalorder %v2391, 1
        %vm2424 = vcmp.eq.s32.totalorder %v2394, 1
        %vm2425 = vcmp.eq.s32.totalorder %v2397, 1
        %vm2426 = vcmp.eq.s32.totalorder %v2400, 1
        %vm2427 = vcmp.eq.s32.totalorder %v2403, 1
        %vm2428 = vcmp.eq.s32.totalorder %v2406, 1
        %vm2429 = vcmp.eq.s32.totalorder %v2409, 1
        %vm2430 = vcmp.eq.s32.totalorder %v2412, 1
        %vm2431 = vcmp.eq.s32.totalorder %v2415, 1
        %v2432 = vsel %vm2416, %v2303, %v2174
        %v2433 = vsel %vm2417, %v2304, %v2175
        %v2434 = vsel %vm2418, %v2305, %v2176
        %v2435 = vsel %vm2419, %v2306, %v2177
        %v2436 = vsel %vm2420, %v2307, %v2178
        %v2437 = vsel %vm2421, %v2308, %v2179
        %v2438 = vsel %vm2422, %v2309, %v2180
        %v2439 = vsel %vm2423, %v2310, %v2181
        %v2440 = vsel %vm2424, %v2311, %v2182
        %v2441 = vsel %vm2425, %v2312, %v2183
        %v2442 = vsel %vm2426, %v2313, %v2184
        %v2443 = vsel %vm2427, %v2314, %v2185
        %v2444 = vsel %vm2428, %v2315, %v2186
        %v2445 = vsel %vm2429, %v2316, %v2187
        %v2446 = vsel %vm2430, %v2317, %v2188
        %v2447 = vsel %vm2431, %v2318, %v2189
        %2464 = vrot.lane.b32.xlu0 %v2432, 124
        %v2465 = vpop.permute.xlu0 %2464
        %2466 = vrot.lane.b32.xlu0 %v2433, 124
        %v2467 = vpop.permute.xlu0 %2466
        %2468 = vrot.lane.b32.xlu0 %v2434, 124
        %v2469 = vpop.permute.xlu0 %2468
        %2470 = vrot.lane.b32.xlu0 %v2435, 124
        %v2471 = vpop.permute.xlu0 %2470
        %2472 = vrot.lane.b32.xlu0 %v2436, 124
        %v2473 = vpop.permute.xlu0 %2472
        %2474 = vrot.lane.b32.xlu0 %v2437, 124
        %v2475 = vpop.permute.xlu0 %2474
        %2476 = vrot.lane.b32.xlu0 %v2438, 124
        %v2477 = vpop.permute.xlu0 %2476
        %2478 = vrot.lane.b32.xlu0 %v2439, 124
        %v2479 = vpop.permute.xlu0 %2478
        %2480 = vrot.lane.b32.xlu0 %v2440, 124
        %v2481 = vpop.permute.xlu0 %2480
        %2482 = vrot.lane.b32.xlu0 %v2441, 124
        %v2483 = vpop.permute.xlu0 %2482
        %2484 = vrot.lane.b32.xlu0 %v2442, 124
        %v2485 = vpop.permute.xlu0 %2484
        %2486 = vrot.lane.b32.xlu0 %v2443, 124
        %v2487 = vpop.permute.xlu0 %2486
        %2488 = vrot.lane.b32.xlu0 %v2444, 124
        %v2489 = vpop.permute.xlu0 %2488
        %2490 = vrot.lane.b32.xlu0 %v2445, 124
        %v2491 = vpop.permute.xlu0 %2490
        %2492 = vrot.lane.b32.xlu0 %v2446, 124
        %v2493 = vpop.permute.xlu0 %2492
        %2494 = vrot.lane.b32.xlu0 %v2447, 124
        %v2495 = vpop.permute.xlu0 %2494
        %2512 = vrot.lane.b32.xlu0 %v2432, 60
        %v2513 = vpop.permute.xlu0 %2512
        %2514 = vrot.lane.b32.xlu0 %v2433, 60
        %v2515 = vpop.permute.xlu0 %2514
        %2516 = vrot.lane.b32.xlu0 %v2434, 60
        %v2517 = vpop.permute.xlu0 %2516
        %2518 = vrot.lane.b32.xlu0 %v2435, 60
        %v2519 = vpop.permute.xlu0 %2518
        %2520 = vrot.lane.b32.xlu0 %v2436, 60
        %v2521 = vpop.permute.xlu0 %2520
        %2522 = vrot.lane.b32.xlu0 %v2437, 60
        %v2523 = vpop.permute.xlu0 %2522
        %2524 = vrot.lane.b32.xlu0 %v2438, 60
        %v2525 = vpop.permute.xlu0 %2524
        %2526 = vrot.lane.b32.xlu0 %v2439, 60
        %v2527 = vpop.permute.xlu0 %2526
        %2528 = vrot.lane.b32.xlu0 %v2440, 60
        %v2529 = vpop.permute.xlu0 %2528
        %2530 = vrot.lane.b32.xlu0 %v2441, 60
        %v2531 = vpop.permute.xlu0 %2530
        %2532 = vrot.lane.b32.xlu0 %v2442, 60
        %v2533 = vpop.permute.xlu0 %2532
        %2534 = vrot.lane.b32.xlu0 %v2443, 60
        %v2535 = vpop.permute.xlu0 %2534
        %2536 = vrot.lane.b32.xlu0 %v2444, 60
        %v2537 = vpop.permute.xlu0 %2536
        %2538 = vrot.lane.b32.xlu0 %v2445, 60
        %v2539 = vpop.permute.xlu0 %2538
        %2540 = vrot.lane.b32.xlu0 %v2446, 60
        %v2541 = vpop.permute.xlu0 %2540
        %2542 = vrot.lane.b32.xlu0 %v2447, 60
        %v2543 = vpop.permute.xlu0 %2542
        %vm2560 = vcmask 490496
        %v2561 = vsel %vm2560, %v2465, %v2513
        %v2562 = vsel %vm2560, %v2467, %v2515
        %v2563 = vsel %vm2560, %v2469, %v2517
        %v2564 = vsel %vm2560, %v2471, %v2519
        %v2565 = vsel %vm2560, %v2473, %v2521
        %v2566 = vsel %vm2560, %v2475, %v2523
        %v2567 = vsel %vm2560, %v2477, %v2525
        %v2568 = vsel %vm2560, %v2479, %v2527
        %v2569 = vsel %vm2560, %v2481, %v2529
        %v2570 = vsel %vm2560, %v2483, %v2531
        %v2571 = vsel %vm2560, %v2485, %v2533
        %v2572 = vsel %vm2560, %v2487, %v2535
        %v2573 = vsel %vm2560, %v2489, %v2537
        %v2574 = vsel %vm2560, %v2491, %v2539
        %v2575 = vsel %vm2560, %v2493, %v2541
        %v2576 = vsel %vm2560, %v2495, %v2543
        %s2577 = scalar_lea.vmem %s6, 256
        %v2578 = vld [vmem:[%s2577] sm:$0xff]
        %v2579 = vld [vmem:[%s2577 + $0x8] sm:$0xff]
        %v2580 = vld [vmem:[%s2577 + $0x10] sm:$0xff]
        %v2581 = vld [vmem:[%s2577 + $0x18] sm:$0xff]
        %v2582 = vld [vmem:[%s2577 + $0x20] sm:$0xff]
        %v2583 = vld [vmem:[%s2577 + $0x28] sm:$0xff]
        %v2584 = vld [vmem:[%s2577 + $0x30] sm:$0xff]
        %v2585 = vld [vmem:[%s2577 + $0x38] sm:$0xff]
        %v2586 = vld [vmem:[%s2577 + $0x40] sm:$0xff]
        %v2587 = vld [vmem:[%s2577 + $0x48] sm:$0xff]
        %v2588 = vld [vmem:[%s2577 + $0x50] sm:$0xff]
        %v2589 = vld [vmem:[%s2577 + $0x58] sm:$0xff]
        %v2590 = vld [vmem:[%s2577 + $0x60] sm:$0xff]
        %v2591 = vld [vmem:[%s2577 + $0x68] sm:$0xff]
        %v2592 = vld [vmem:[%s2577 + $0x70] sm:$0xff]
        %v2593 = vld [vmem:[%s2577 + $0x78] sm:$0xff]
        %vm2594 = vcmp.gt.f32.partialorder %v2578, 0.0
        %vm2595 = vcmp.gt.f32.partialorder %v2579, 0.0
        %vm2596 = vcmp.gt.f32.partialorder %v2580, 0.0
        %vm2597 = vcmp.gt.f32.partialorder %v2581, 0.0
        %vm2598 = vcmp.gt.f32.partialorder %v2582, 0.0
        %vm2599 = vcmp.gt.f32.partialorder %v2583, 0.0
        %vm2600 = vcmp.gt.f32.partialorder %v2584, 0.0
        %vm2601 = vcmp.gt.f32.partialorder %v2585, 0.0
        %vm2602 = vcmp.gt.f32.partialorder %v2586, 0.0
        %vm2603 = vcmp.gt.f32.partialorder %v2587, 0.0
        %vm2604 = vcmp.gt.f32.partialorder %v2588, 0.0
        %vm2605 = vcmp.gt.f32.partialorder %v2589, 0.0
        %vm2606 = vcmp.gt.f32.partialorder %v2590, 0.0
        %vm2607 = vcmp.gt.f32.partialorder %v2591, 0.0
        %vm2608 = vcmp.gt.f32.partialorder %v2592, 0.0
        %vm2609 = vcmp.gt.f32.partialorder %v2593, 0.0
        %v2610 = vsel %vm2594, 1, 0
        %v2611 = vsel %vm2595, 1, 0
        %v2612 = vsel %vm2596, 1, 0
        %v2613 = vsel %vm2597, 1, 0
        %v2614 = vsel %vm2598, 1, 0
        %v2615 = vsel %vm2599, 1, 0
        %v2616 = vsel %vm2600, 1, 0
        %v2617 = vsel %vm2601, 1, 0
        %v2618 = vsel %vm2602, 1, 0
        %v2619 = vsel %vm2603, 1, 0
        %v2620 = vsel %vm2604, 1, 0
        %v2621 = vsel %vm2605, 1, 0
        %v2622 = vsel %vm2606, 1, 0
        %v2623 = vsel %vm2607, 1, 0
        %v2624 = vsel %vm2608, 1, 0
        %v2625 = vsel %vm2609, 1, 0
        %2626 = vset.pattern.permute.xlu0 0
        %2627 = vperm.xlu0 %2626, %v2610
        %v2628 = vpop.permute.xlu0 %2627
        %2629 = vset.pattern.permute.xlu0 0
        %2630 = vperm.xlu0 %2629, %v2611
        %v2631 = vpop.permute.xlu0 %2630
        %2632 = vset.pattern.permute.xlu0 0
        %2633 = vperm.xlu0 %2632, %v2612
        %v2634 = vpop.permute.xlu0 %2633
        %2635 = vset.pattern.permute.xlu0 0
        %2636 = vperm.xlu0 %2635, %v2613
        %v2637 = vpop.permute.xlu0 %2636
        %2638 = vset.pattern.permute.xlu0 0
        %2639 = vperm.xlu0 %2638, %v2614
        %v2640 = vpop.permute.xlu0 %2639
        %2641 = vset.pattern.permute.xlu0 0
        %2642 = vperm.xlu0 %2641, %v2615
        %v2643 = vpop.permute.xlu0 %2642
        %2644 = vset.pattern.permute.xlu0 0
        %2645 = vperm.xlu0 %2644, %v2616
        %v2646 = vpop.permute.xlu0 %2645
        %2647 = vset.pattern.permute.xlu0 0
        %2648 = vperm.xlu0 %2647, %v2617
        %v2649 = vpop.permute.xlu0 %2648
        %2650 = vset.pattern.permute.xlu0 0
        %2651 = vperm.xlu0 %2650, %v2618
        %v2652 = vpop.permute.xlu0 %2651
        %2653 = vset.pattern.permute.xlu0 0
        %2654 = vperm.xlu0 %2653, %v2619
        %v2655 = vpop.permute.xlu0 %2654
        %2656 = vset.pattern.permute.xlu0 0
        %2657 = vperm.xlu0 %2656, %v2620
        %v2658 = vpop.permute.xlu0 %2657
        %2659 = vset.pattern.permute.xlu0 0
        %2660 = vperm.xlu0 %2659, %v2621
        %v2661 = vpop.permute.xlu0 %2660
        %2662 = vset.pattern.permute.xlu0 0
        %2663 = vperm.xlu0 %2662, %v2622
        %v2664 = vpop.permute.xlu0 %2663
        %2665 = vset.pattern.permute.xlu0 0
        %2666 = vperm.xlu0 %2665, %v2623
        %v2667 = vpop.permute.xlu0 %2666
        %2668 = vset.pattern.permute.xlu0 0
        %2669 = vperm.xlu0 %2668, %v2624
        %v2670 = vpop.permute.xlu0 %2669
        %2671 = vset.pattern.permute.xlu0 0
        %2672 = vperm.xlu0 %2671, %v2625
        %v2673 = vpop.permute.xlu0 %2672
        %vm2674 = vcmp.eq.s32.totalorder %v2628, 1
        %vm2675 = vcmp.eq.s32.totalorder %v2631, 1
        %vm2676 = vcmp.eq.s32.totalorder %v2634, 1
        %vm2677 = vcmp.eq.s32.totalorder %v2637, 1
        %vm2678 = vcmp.eq.s32.totalorder %v2640, 1
        %vm2679 = vcmp.eq.s32.totalorder %v2643, 1
        %vm2680 = vcmp.eq.s32.totalorder %v2646, 1
        %vm2681 = vcmp.eq.s32.totalorder %v2649, 1
        %vm2682 = vcmp.eq.s32.totalorder %v2652, 1
        %vm2683 = vcmp.eq.s32.totalorder %v2655, 1
        %vm2684 = vcmp.eq.s32.totalorder %v2658, 1
        %vm2685 = vcmp.eq.s32.totalorder %v2661, 1
        %vm2686 = vcmp.eq.s32.totalorder %v2664, 1
        %vm2687 = vcmp.eq.s32.totalorder %v2667, 1
        %vm2688 = vcmp.eq.s32.totalorder %v2670, 1
        %vm2689 = vcmp.eq.s32.totalorder %v2673, 1
        %v2690 = vsel %vm2674, %v2561, %v2432
        %v2691 = vsel %vm2675, %v2562, %v2433
        %v2692 = vsel %vm2676, %v2563, %v2434
        %v2693 = vsel %vm2677, %v2564, %v2435
        %v2694 = vsel %vm2678, %v2565, %v2436
        %v2695 = vsel %vm2679, %v2566, %v2437
        %v2696 = vsel %vm2680, %v2567, %v2438
        %v2697 = vsel %vm2681, %v2568, %v2439
        %v2698 = vsel %vm2682, %v2569, %v2440
        %v2699 = vsel %vm2683, %v2570, %v2441
        %v2700 = vsel %vm2684, %v2571, %v2442
        %v2701 = vsel %vm2685, %v2572, %v2443
        %v2702 = vsel %vm2686, %v2573, %v2444
        %v2703 = vsel %vm2687, %v2574, %v2445
        %v2704 = vsel %vm2688, %v2575, %v2446
        %v2705 = vsel %vm2689, %v2576, %v2447
        %2722 = vrot.lane.b32.xlu0 %v2690, 120
        %v2723 = vpop.permute.xlu0 %2722
        %2724 = vrot.lane.b32.xlu0 %v2691, 120
        %v2725 = vpop.permute.xlu0 %2724
        %2726 = vrot.lane.b32.xlu0 %v2692, 120
        %v2727 = vpop.permute.xlu0 %2726
        %2728 = vrot.lane.b32.xlu0 %v2693, 120
        %v2729 = vpop.permute.xlu0 %2728
        %2730 = vrot.lane.b32.xlu0 %v2694, 120
        %v2731 = vpop.permute.xlu0 %2730
        %2732 = vrot.lane.b32.xlu0 %v2695, 120
        %v2733 = vpop.permute.xlu0 %2732
        %2734 = vrot.lane.b32.xlu0 %v2696, 120
        %v2735 = vpop.permute.xlu0 %2734
        %2736 = vrot.lane.b32.xlu0 %v2697, 120
        %v2737 = vpop.permute.xlu0 %2736
        %2738 = vrot.lane.b32.xlu0 %v2698, 120
        %v2739 = vpop.permute.xlu0 %2738
        %2740 = vrot.lane.b32.xlu0 %v2699, 120
        %v2741 = vpop.permute.xlu0 %2740
        %2742 = vrot.lane.b32.xlu0 %v2700, 120
        %v2743 = vpop.permute.xlu0 %2742
        %2744 = vrot.lane.b32.xlu0 %v2701, 120
        %v2745 = vpop.permute.xlu0 %2744
        %2746 = vrot.lane.b32.xlu0 %v2702, 120
        %v2747 = vpop.permute.xlu0 %2746
        %2748 = vrot.lane.b32.xlu0 %v2703, 120
        %v2749 = vpop.permute.xlu0 %2748
        %2750 = vrot.lane.b32.xlu0 %v2704, 120
        %v2751 = vpop.permute.xlu0 %2750
        %2752 = vrot.lane.b32.xlu0 %v2705, 120
        %v2753 = vpop.permute.xlu0 %2752
        %2770 = vrot.lane.b32.xlu0 %v2690, 56
        %v2771 = vpop.permute.xlu0 %2770
        %2772 = vrot.lane.b32.xlu0 %v2691, 56
        %v2773 = vpop.permute.xlu0 %2772
        %2774 = vrot.lane.b32.xlu0 %v2692, 56
        %v2775 = vpop.permute.xlu0 %2774
        %2776 = vrot.lane.b32.xlu0 %v2693, 56
        %v2777 = vpop.permute.xlu0 %2776
        %2778 = vrot.lane.b32.xlu0 %v2694, 56
        %v2779 = vpop.permute.xlu0 %2778
        %2780 = vrot.lane.b32.xlu0 %v2695, 56
        %v2781 = vpop.permute.xlu0 %2780
        %2782 = vrot.lane.b32.xlu0 %v2696, 56
        %v2783 = vpop.permute.xlu0 %2782
        %2784 = vrot.lane.b32.xlu0 %v2697, 56
        %v2785 = vpop.permute.xlu0 %2784
        %2786 = vrot.lane.b32.xlu0 %v2698, 56
        %v2787 = vpop.permute.xlu0 %2786
        %2788 = vrot.lane.b32.xlu0 %v2699, 56
        %v2789 = vpop.permute.xlu0 %2788
        %2790 = vrot.lane.b32.xlu0 %v2700, 56
        %v2791 = vpop.permute.xlu0 %2790
        %2792 = vrot.lane.b32.xlu0 %v2701, 56
        %v2793 = vpop.permute.xlu0 %2792
        %2794 = vrot.lane.b32.xlu0 %v2702, 56
        %v2795 = vpop.permute.xlu0 %2794
        %2796 = vrot.lane.b32.xlu0 %v2703, 56
        %v2797 = vpop.permute.xlu0 %2796
        %2798 = vrot.lane.b32.xlu0 %v2704, 56
        %v2799 = vpop.permute.xlu0 %2798
        %2800 = vrot.lane.b32.xlu0 %v2705, 56
        %v2801 = vpop.permute.xlu0 %2800
        %vm2818 = vcmask 457728
        %v2819 = vsel %vm2818, %v2723, %v2771
        %v2820 = vsel %vm2818, %v2725, %v2773
        %v2821 = vsel %vm2818, %v2727, %v2775
        %v2822 = vsel %vm2818, %v2729, %v2777
        %v2823 = vsel %vm2818, %v2731, %v2779
        %v2824 = vsel %vm2818, %v2733, %v2781
        %v2825 = vsel %vm2818, %v2735, %v2783
        %v2826 = vsel %vm2818, %v2737, %v2785
        %v2827 = vsel %vm2818, %v2739, %v2787
        %v2828 = vsel %vm2818, %v2741, %v2789
        %v2829 = vsel %vm2818, %v2743, %v2791
        %v2830 = vsel %vm2818, %v2745, %v2793
        %v2831 = vsel %vm2818, %v2747, %v2795
        %v2832 = vsel %vm2818, %v2749, %v2797
        %v2833 = vsel %vm2818, %v2751, %v2799
        %v2834 = vsel %vm2818, %v2753, %v2801
        %s2835 = scalar_lea.vmem %s6, 384
        %v2836 = vld [vmem:[%s2835] sm:$0xff]
        %v2837 = vld [vmem:[%s2835 + $0x8] sm:$0xff]
        %v2838 = vld [vmem:[%s2835 + $0x10] sm:$0xff]
        %v2839 = vld [vmem:[%s2835 + $0x18] sm:$0xff]
        %v2840 = vld [vmem:[%s2835 + $0x20] sm:$0xff]
        %v2841 = vld [vmem:[%s2835 + $0x28] sm:$0xff]
        %v2842 = vld [vmem:[%s2835 + $0x30] sm:$0xff]
        %v2843 = vld [vmem:[%s2835 + $0x38] sm:$0xff]
        %v2844 = vld [vmem:[%s2835 + $0x40] sm:$0xff]
        %v2845 = vld [vmem:[%s2835 + $0x48] sm:$0xff]
        %v2846 = vld [vmem:[%s2835 + $0x50] sm:$0xff]
        %v2847 = vld [vmem:[%s2835 + $0x58] sm:$0xff]
        %v2848 = vld [vmem:[%s2835 + $0x60] sm:$0xff]
        %v2849 = vld [vmem:[%s2835 + $0x68] sm:$0xff]
        %v2850 = vld [vmem:[%s2835 + $0x70] sm:$0xff]
        %v2851 = vld [vmem:[%s2835 + $0x78] sm:$0xff]
        %vm2852 = vcmp.gt.f32.partialorder %v2836, 0.0
        %vm2853 = vcmp.gt.f32.partialorder %v2837, 0.0
        %vm2854 = vcmp.gt.f32.partialorder %v2838, 0.0
        %vm2855 = vcmp.gt.f32.partialorder %v2839, 0.0
        %vm2856 = vcmp.gt.f32.partialorder %v2840, 0.0
        %vm2857 = vcmp.gt.f32.partialorder %v2841, 0.0
        %vm2858 = vcmp.gt.f32.partialorder %v2842, 0.0
        %vm2859 = vcmp.gt.f32.partialorder %v2843, 0.0
        %vm2860 = vcmp.gt.f32.partialorder %v2844, 0.0
        %vm2861 = vcmp.gt.f32.partialorder %v2845, 0.0
        %vm2862 = vcmp.gt.f32.partialorder %v2846, 0.0
        %vm2863 = vcmp.gt.f32.partialorder %v2847, 0.0
        %vm2864 = vcmp.gt.f32.partialorder %v2848, 0.0
        %vm2865 = vcmp.gt.f32.partialorder %v2849, 0.0
        %vm2866 = vcmp.gt.f32.partialorder %v2850, 0.0
        %vm2867 = vcmp.gt.f32.partialorder %v2851, 0.0
        %v2868 = vsel %vm2852, 1, 0
        %v2869 = vsel %vm2853, 1, 0
        %v2870 = vsel %vm2854, 1, 0
        %v2871 = vsel %vm2855, 1, 0
        %v2872 = vsel %vm2856, 1, 0
        %v2873 = vsel %vm2857, 1, 0
        %v2874 = vsel %vm2858, 1, 0
        %v2875 = vsel %vm2859, 1, 0
        %v2876 = vsel %vm2860, 1, 0
        %v2877 = vsel %vm2861, 1, 0
        %v2878 = vsel %vm2862, 1, 0
        %v2879 = vsel %vm2863, 1, 0
        %v2880 = vsel %vm2864, 1, 0
        %v2881 = vsel %vm2865, 1, 0
        %v2882 = vsel %vm2866, 1, 0
        %v2883 = vsel %vm2867, 1, 0
        %2884 = vset.pattern.permute.xlu0 0
        %2885 = vperm.xlu0 %2884, %v2868
        %v2886 = vpop.permute.xlu0 %2885
        %2887 = vset.pattern.permute.xlu0 0
        %2888 = vperm.xlu0 %2887, %v2869
        %v2889 = vpop.permute.xlu0 %2888
        %2890 = vset.pattern.permute.xlu0 0
        %2891 = vperm.xlu0 %2890, %v2870
        %v2892 = vpop.permute.xlu0 %2891
        %2893 = vset.pattern.permute.xlu0 0
        %2894 = vperm.xlu0 %2893, %v2871
        %v2895 = vpop.permute.xlu0 %2894
        %2896 = vset.pattern.permute.xlu0 0
        %2897 = vperm.xlu0 %2896, %v2872
        %v2898 = vpop.permute.xlu0 %2897
        %2899 = vset.pattern.permute.xlu0 0
        %2900 = vperm.xlu0 %2899, %v2873
        %v2901 = vpop.permute.xlu0 %2900
        %2902 = vset.pattern.permute.xlu0 0
        %2903 = vperm.xlu0 %2902, %v2874
        %v2904 = vpop.permute.xlu0 %2903
        %2905 = vset.pattern.permute.xlu0 0
        %2906 = vperm.xlu0 %2905, %v2875
        %v2907 = vpop.permute.xlu0 %2906
        %2908 = vset.pattern.permute.xlu0 0
        %2909 = vperm.xlu0 %2908, %v2876
        %v2910 = vpop.permute.xlu0 %2909
        %2911 = vset.pattern.permute.xlu0 0
        %2912 = vperm.xlu0 %2911, %v2877
        %v2913 = vpop.permute.xlu0 %2912
        %2914 = vset.pattern.permute.xlu0 0
        %2915 = vperm.xlu0 %2914, %v2878
        %v2916 = vpop.permute.xlu0 %2915
        %2917 = vset.pattern.permute.xlu0 0
        %2918 = vperm.xlu0 %2917, %v2879
        %v2919 = vpop.permute.xlu0 %2918
        %2920 = vset.pattern.permute.xlu0 0
        %2921 = vperm.xlu0 %2920, %v2880
        %v2922 = vpop.permute.xlu0 %2921
        %2923 = vset.pattern.permute.xlu0 0
        %2924 = vperm.xlu0 %2923, %v2881
        %v2925 = vpop.permute.xlu0 %2924
        %2926 = vset.pattern.permute.xlu0 0
        %2927 = vperm.xlu0 %2926, %v2882
        %v2928 = vpop.permute.xlu0 %2927
        %2929 = vset.pattern.permute.xlu0 0
        %2930 = vperm.xlu0 %2929, %v2883
        %v2931 = vpop.permute.xlu0 %2930
        %vm2932 = vcmp.eq.s32.totalorder %v2886, 1
        %vm2933 = vcmp.eq.s32.totalorder %v2889, 1
        %vm2934 = vcmp.eq.s32.totalorder %v2892, 1
        %vm2935 = vcmp.eq.s32.totalorder %v2895, 1
        %vm2936 = vcmp.eq.s32.totalorder %v2898, 1
        %vm2937 = vcmp.eq.s32.totalorder %v2901, 1
        %vm2938 = vcmp.eq.s32.totalorder %v2904, 1
        %vm2939 = vcmp.eq.s32.totalorder %v2907, 1
        %vm2940 = vcmp.eq.s32.totalorder %v2910, 1
        %vm2941 = vcmp.eq.s32.totalorder %v2913, 1
        %vm2942 = vcmp.eq.s32.totalorder %v2916, 1
        %vm2943 = vcmp.eq.s32.totalorder %v2919, 1
        %vm2944 = vcmp.eq.s32.totalorder %v2922, 1
        %vm2945 = vcmp.eq.s32.totalorder %v2925, 1
        %vm2946 = vcmp.eq.s32.totalorder %v2928, 1
        %vm2947 = vcmp.eq.s32.totalorder %v2931, 1
        %v2948 = vsel %vm2932, %v2819, %v2690
        %v2949 = vsel %vm2933, %v2820, %v2691
        %v2950 = vsel %vm2934, %v2821, %v2692
        %v2951 = vsel %vm2935, %v2822, %v2693
        %v2952 = vsel %vm2936, %v2823, %v2694
        %v2953 = vsel %vm2937, %v2824, %v2695
        %v2954 = vsel %vm2938, %v2825, %v2696
        %v2955 = vsel %vm2939, %v2826, %v2697
        %v2956 = vsel %vm2940, %v2827, %v2698
        %v2957 = vsel %vm2941, %v2828, %v2699
        %v2958 = vsel %vm2942, %v2829, %v2700
        %v2959 = vsel %vm2943, %v2830, %v2701
        %v2960 = vsel %vm2944, %v2831, %v2702
        %v2961 = vsel %vm2945, %v2832, %v2703
        %v2962 = vsel %vm2946, %v2833, %v2704
        %v2963 = vsel %vm2947, %v2834, %v2705
        %2980 = vrot.lane.b32.xlu0 %v2948, 112
        %v2981 = vpop.permute.xlu0 %2980
        %2982 = vrot.lane.b32.xlu0 %v2949, 112
        %v2983 = vpop.permute.xlu0 %2982
        %2984 = vrot.lane.b32.xlu0 %v2950, 112
        %v2985 = vpop.permute.xlu0 %2984
        %2986 = vrot.lane.b32.xlu0 %v2951, 112
        %v2987 = vpop.permute.xlu0 %2986
        %2988 = vrot.lane.b32.xlu0 %v2952, 112
        %v2989 = vpop.permute.xlu0 %2988
        %2990 = vrot.lane.b32.xlu0 %v2953, 112
        %v2991 = vpop.permute.xlu0 %2990
        %2992 = vrot.lane.b32.xlu0 %v2954, 112
        %v2993 = vpop.permute.xlu0 %2992
        %2994 = vrot.lane.b32.xlu0 %v2955, 112
        %v2995 = vpop.permute.xlu0 %2994
        %2996 = vrot.lane.b32.xlu0 %v2956, 112
        %v2997 = vpop.permute.xlu0 %2996
        %2998 = vrot.lane.b32.xlu0 %v2957, 112
        %v2999 = vpop.permute.xlu0 %2998
        %3000 = vrot.lane.b32.xlu0 %v2958, 112
        %v3001 = vpop.permute.xlu0 %3000
        %3002 = vrot.lane.b32.xlu0 %v2959, 112
        %v3003 = vpop.permute.xlu0 %3002
        %3004 = vrot.lane.b32.xlu0 %v2960, 112
        %v3005 = vpop.permute.xlu0 %3004
        %3006 = vrot.lane.b32.xlu0 %v2961, 112
        %v3007 = vpop.permute.xlu0 %3006
        %3008 = vrot.lane.b32.xlu0 %v2962, 112
        %v3009 = vpop.permute.xlu0 %3008
        %3010 = vrot.lane.b32.xlu0 %v2963, 112
        %v3011 = vpop.permute.xlu0 %3010
        %3028 = vrot.lane.b32.xlu0 %v2948, 48
        %v3029 = vpop.permute.xlu0 %3028
        %3030 = vrot.lane.b32.xlu0 %v2949, 48
        %v3031 = vpop.permute.xlu0 %3030
        %3032 = vrot.lane.b32.xlu0 %v2950, 48
        %v3033 = vpop.permute.xlu0 %3032
        %3034 = vrot.lane.b32.xlu0 %v2951, 48
        %v3035 = vpop.permute.xlu0 %3034
        %3036 = vrot.lane.b32.xlu0 %v2952, 48
        %v3037 = vpop.permute.xlu0 %3036
        %3038 = vrot.lane.b32.xlu0 %v2953, 48
        %v3039 = vpop.permute.xlu0 %3038
        %3040 = vrot.lane.b32.xlu0 %v2954, 48
        %v3041 = vpop.permute.xlu0 %3040
        %3042 = vrot.lane.b32.xlu0 %v2955, 48
        %v3043 = vpop.permute.xlu0 %3042
        %3044 = vrot.lane.b32.xlu0 %v2956, 48
        %v3045 = vpop.permute.xlu0 %3044
        %3046 = vrot.lane.b32.xlu0 %v2957, 48
        %v3047 = vpop.permute.xlu0 %3046
        %3048 = vrot.lane.b32.xlu0 %v2958, 48
        %v3049 = vpop.permute.xlu0 %3048
        %3050 = vrot.lane.b32.xlu0 %v2959, 48
        %v3051 = vpop.permute.xlu0 %3050
        %3052 = vrot.lane.b32.xlu0 %v2960, 48
        %v3053 = vpop.permute.xlu0 %3052
        %3054 = vrot.lane.b32.xlu0 %v2961, 48
        %v3055 = vpop.permute.xlu0 %3054
        %3056 = vrot.lane.b32.xlu0 %v2962, 48
        %v3057 = vpop.permute.xlu0 %3056
        %3058 = vrot.lane.b32.xlu0 %v2963, 48
        %v3059 = vpop.permute.xlu0 %3058
        %vm3076 = vcmask 392192
        %v3077 = vsel %vm3076, %v2981, %v3029
        %v3078 = vsel %vm3076, %v2983, %v3031
        %v3079 = vsel %vm3076, %v2985, %v3033
        %v3080 = vsel %vm3076, %v2987, %v3035
        %v3081 = vsel %vm3076, %v2989, %v3037
        %v3082 = vsel %vm3076, %v2991, %v3039
        %v3083 = vsel %vm3076, %v2993, %v3041
        %v3084 = vsel %vm3076, %v2995, %v3043
        %v3085 = vsel %vm3076, %v2997, %v3045
        %v3086 = vsel %vm3076, %v2999, %v3047
        %v3087 = vsel %vm3076, %v3001, %v3049
        %v3088 = vsel %vm3076, %v3003, %v3051
        %v3089 = vsel %vm3076, %v3005, %v3053
        %v3090 = vsel %vm3076, %v3007, %v3055
        %v3091 = vsel %vm3076, %v3009, %v3057
        %v3092 = vsel %vm3076, %v3011, %v3059
        %s3093 = scalar_lea.vmem %s6, 512
        %v3094 = vld [vmem:[%s3093] sm:$0xff]
        %v3095 = vld [vmem:[%s3093 + $0x8] sm:$0xff]
        %v3096 = vld [vmem:[%s3093 + $0x10] sm:$0xff]
        %v3097 = vld [vmem:[%s3093 + $0x18] sm:$0xff]
        %v3098 = vld [vmem:[%s3093 + $0x20] sm:$0xff]
        %v3099 = vld [vmem:[%s3093 + $0x28] sm:$0xff]
        %v3100 = vld [vmem:[%s3093 + $0x30] sm:$0xff]
        %v3101 = vld [vmem:[%s3093 + $0x38] sm:$0xff]
        %v3102 = vld [vmem:[%s3093 + $0x40] sm:$0xff]
        %v3103 = vld [vmem:[%s3093 + $0x48] sm:$0xff]
        %v3104 = vld [vmem:[%s3093 + $0x50] sm:$0xff]
        %v3105 = vld [vmem:[%s3093 + $0x58] sm:$0xff]
        %v3106 = vld [vmem:[%s3093 + $0x60] sm:$0xff]
        %v3107 = vld [vmem:[%s3093 + $0x68] sm:$0xff]
        %v3108 = vld [vmem:[%s3093 + $0x70] sm:$0xff]
        %v3109 = vld [vmem:[%s3093 + $0x78] sm:$0xff]
        %vm3110 = vcmp.gt.f32.partialorder %v3094, 0.0
        %vm3111 = vcmp.gt.f32.partialorder %v3095, 0.0
        %vm3112 = vcmp.gt.f32.partialorder %v3096, 0.0
        %vm3113 = vcmp.gt.f32.partialorder %v3097, 0.0
        %vm3114 = vcmp.gt.f32.partialorder %v3098, 0.0
        %vm3115 = vcmp.gt.f32.partialorder %v3099, 0.0
        %vm3116 = vcmp.gt.f32.partialorder %v3100, 0.0
        %vm3117 = vcmp.gt.f32.partialorder %v3101, 0.0
        %vm3118 = vcmp.gt.f32.partialorder %v3102, 0.0
        %vm3119 = vcmp.gt.f32.partialorder %v3103, 0.0
        %vm3120 = vcmp.gt.f32.partialorder %v3104, 0.0
        %vm3121 = vcmp.gt.f32.partialorder %v3105, 0.0
        %vm3122 = vcmp.gt.f32.partialorder %v3106, 0.0
        %vm3123 = vcmp.gt.f32.partialorder %v3107, 0.0
        %vm3124 = vcmp.gt.f32.partialorder %v3108, 0.0
        %vm3125 = vcmp.gt.f32.partialorder %v3109, 0.0
        %v3126 = vsel %vm3110, 1, 0
        %v3127 = vsel %vm3111, 1, 0
        %v3128 = vsel %vm3112, 1, 0
        %v3129 = vsel %vm3113, 1, 0
        %v3130 = vsel %vm3114, 1, 0
        %v3131 = vsel %vm3115, 1, 0
        %v3132 = vsel %vm3116, 1, 0
        %v3133 = vsel %vm3117, 1, 0
        %v3134 = vsel %vm3118, 1, 0
        %v3135 = vsel %vm3119, 1, 0
        %v3136 = vsel %vm3120, 1, 0
        %v3137 = vsel %vm3121, 1, 0
        %v3138 = vsel %vm3122, 1, 0
        %v3139 = vsel %vm3123, 1, 0
        %v3140 = vsel %vm3124, 1, 0
        %v3141 = vsel %vm3125, 1, 0
        %3142 = vset.pattern.permute.xlu0 0
        %3143 = vperm.xlu0 %3142, %v3126
        %v3144 = vpop.permute.xlu0 %3143
        %3145 = vset.pattern.permute.xlu0 0
        %3146 = vperm.xlu0 %3145, %v3127
        %v3147 = vpop.permute.xlu0 %3146
        %3148 = vset.pattern.permute.xlu0 0
        %3149 = vperm.xlu0 %3148, %v3128
        %v3150 = vpop.permute.xlu0 %3149
        %3151 = vset.pattern.permute.xlu0 0
        %3152 = vperm.xlu0 %3151, %v3129
        %v3153 = vpop.permute.xlu0 %3152
        %3154 = vset.pattern.permute.xlu0 0
        %3155 = vperm.xlu0 %3154, %v3130
        %v3156 = vpop.permute.xlu0 %3155
        %3157 = vset.pattern.permute.xlu0 0
        %3158 = vperm.xlu0 %3157, %v3131
        %v3159 = vpop.permute.xlu0 %3158
        %3160 = vset.pattern.permute.xlu0 0
        %3161 = vperm.xlu0 %3160, %v3132
        %v3162 = vpop.permute.xlu0 %3161
        %3163 = vset.pattern.permute.xlu0 0
        %3164 = vperm.xlu0 %3163, %v3133
        %v3165 = vpop.permute.xlu0 %3164
        %3166 = vset.pattern.permute.xlu0 0
        %3167 = vperm.xlu0 %3166, %v3134
        %v3168 = vpop.permute.xlu0 %3167
        %3169 = vset.pattern.permute.xlu0 0
        %3170 = vperm.xlu0 %3169, %v3135
        %v3171 = vpop.permute.xlu0 %3170
        %3172 = vset.pattern.permute.xlu0 0
        %3173 = vperm.xlu0 %3172, %v3136
        %v3174 = vpop.permute.xlu0 %3173
        %3175 = vset.pattern.permute.xlu0 0
        %3176 = vperm.xlu0 %3175, %v3137
        %v3177 = vpop.permute.xlu0 %3176
        %3178 = vset.pattern.permute.xlu0 0
        %3179 = vperm.xlu0 %3178, %v3138
        %v3180 = vpop.permute.xlu0 %3179
        %3181 = vset.pattern.permute.xlu0 0
        %3182 = vperm.xlu0 %3181, %v3139
        %v3183 = vpop.permute.xlu0 %3182
        %3184 = vset.pattern.permute.xlu0 0
        %3185 = vperm.xlu0 %3184, %v3140
        %v3186 = vpop.permute.xlu0 %3185
        %3187 = vset.pattern.permute.xlu0 0
        %3188 = vperm.xlu0 %3187, %v3141
        %v3189 = vpop.permute.xlu0 %3188
        %vm3190 = vcmp.eq.s32.totalorder %v3144, 1
        %vm3191 = vcmp.eq.s32.totalorder %v3147, 1
        %vm3192 = vcmp.eq.s32.totalorder %v3150, 1
        %vm3193 = vcmp.eq.s32.totalorder %v3153, 1
        %vm3194 = vcmp.eq.s32.totalorder %v3156, 1
        %vm3195 = vcmp.eq.s32.totalorder %v3159, 1
        %vm3196 = vcmp.eq.s32.totalorder %v3162, 1
        %vm3197 = vcmp.eq.s32.totalorder %v3165, 1
        %vm3198 = vcmp.eq.s32.totalorder %v3168, 1
        %vm3199 = vcmp.eq.s32.totalorder %v3171, 1
        %vm3200 = vcmp.eq.s32.totalorder %v3174, 1
        %vm3201 = vcmp.eq.s32.totalorder %v3177, 1
        %vm3202 = vcmp.eq.s32.totalorder %v3180, 1
        %vm3203 = vcmp.eq.s32.totalorder %v3183, 1
        %vm3204 = vcmp.eq.s32.totalorder %v3186, 1
        %vm3205 = vcmp.eq.s32.totalorder %v3189, 1
        %v3206 = vsel %vm3190, %v3077, %v2948
        %v3207 = vsel %vm3191, %v3078, %v2949
        %v3208 = vsel %vm3192, %v3079, %v2950
        %v3209 = vsel %vm3193, %v3080, %v2951
        %v3210 = vsel %vm3194, %v3081, %v2952
        %v3211 = vsel %vm3195, %v3082, %v2953
        %v3212 = vsel %vm3196, %v3083, %v2954
        %v3213 = vsel %vm3197, %v3084, %v2955
        %v3214 = vsel %vm3198, %v3085, %v2956
        %v3215 = vsel %vm3199, %v3086, %v2957
        %v3216 = vsel %vm3200, %v3087, %v2958
        %v3217 = vsel %vm3201, %v3088, %v2959
        %v3218 = vsel %vm3202, %v3089, %v2960
        %v3219 = vsel %vm3203, %v3090, %v2961
        %v3220 = vsel %vm3204, %v3091, %v2962
        %v3221 = vsel %vm3205, %v3092, %v2963
        %v3223 = vsel %vm1250, %v1610, 0
        %v3226 = vsel %vm1250, %v1611, 0
        %v3229 = vsel %vm1250, %v1612, 0
        %v3232 = vsel %vm1250, %v1613, 0
        %v3235 = vsel %vm1250, %v1614, 0
        %v3238 = vsel %vm1250, %v1615, 0
        %v3241 = vsel %vm1250, %v1616, 0
        %v3244 = vsel %vm1250, %v1617, 0
        %v3247 = vsel %vm1250, %v1639, 0
        %v3250 = vsel %vm1250, %v1640, 0
        %3252 = vmatprep.subr.bf16.mxu0 0
        %3253 = vmatpush1.bf16.xpose.msra.mxu0 %v3247
        %3254 = vmatprep.subr.bf16.mxu0 0
        %3255 = vmatpush1.bf16.xpose.msra.mxu0 %v3250
        %3256 = vmatprep.subr.bf16.mxu0 0
        %3257 = vmatpush1.bf16.xpose.msra.mxu0 0
        %3258 = vmatprep.subr.bf16.mxu0 0
        %3259 = vmatpush1.bf16.xpose.msra.mxu0 0
        %3260 = vmatprep.subr.bf16.mxu0 0
        %3261 = vmatpush1.bf16.xpose.msra.mxu0 0
        %3262 = vmatprep.subr.bf16.mxu0 0
        %3263 = vmatpush1.bf16.xpose.msra.mxu0 0
        %3264 = vmatprep.subr.bf16.mxu0 0
        %3265 = vmatpush1.bf16.xpose.msra.mxu0 0
        %3266 = vmatprep.subr.bf16.mxu0 0
        %3267 = vmatpush1.bf16.xpose.msra.mxu0 0
        %3268 = vmatprep.subr.bf16.mxu0 0
        %3269 = vmatpush1.bf16.xpose.msra.mxu0 0
        %3270 = vmatprep.subr.bf16.mxu0 0
        %3271 = vmatpush1.bf16.xpose.msra.mxu0 0
        %3272 = vmatprep.subr.bf16.mxu0 0
        %3273 = vmatpush1.bf16.xpose.msra.mxu0 0
        %3274 = vmatprep.subr.bf16.mxu0 0
        %3275 = vmatpush1.bf16.xpose.msra.mxu0 0
        %3276 = vmatprep.subr.bf16.mxu0 0
        %3277 = vmatpush1.bf16.xpose.msra.mxu0 0
        %3278 = vmatprep.subr.bf16.mxu0 0
        %3279 = vmatpush1.bf16.xpose.msra.mxu0 0
        %3280 = vmatprep.subr.bf16.mxu0 0
        %3281 = vmatpush1.bf16.xpose.msra.mxu0 0
        %3282 = vmatprep.subr.bf16.mxu0 0
        %3283 = vmatpush1.bf16.xpose.msra.mxu0 0
        %3284 = vmatprep.mubr.bf16.mxu0 0
        %3285 = vmatmul.mubr.bf16.gmra.mrb[0].mxu0 %v3223
        %v3286 = vpop.f32.mrb[0].mxu0
        %v3287 = vadd.f32 %v3206, %v3286
        %v3288 = vpop.f32.mrb[0].mxu0
        %v3289 = vpop.f32.mrb[0].mxu0
        %v3290 = vadd.f32 %v3207, %v3289
        %v3291 = vpop.f32.mrb[0].mxu0
        %3292 = vmatprep.mubr.bf16.mxu0 0
        %3293 = vmatmul.mubr.bf16.gmra.mrb[0].mxu0 %v3226
        %v3294 = vpop.f32.mrb[0].mxu0
        %v3295 = vadd.f32 %v3208, %v3294
        %v3296 = vpop.f32.mrb[0].mxu0
        %v3297 = vpop.f32.mrb[0].mxu0
        %v3298 = vadd.f32 %v3209, %v3297
        %v3299 = vpop.f32.mrb[0].mxu0
        %3300 = vmatprep.mubr.bf16.mxu0 0
        %3301 = vmatmul.mubr.bf16.gmra.mrb[0].mxu0 %v3229
        %v3302 = vpop.f32.mrb[0].mxu0
        %v3303 = vadd.f32 %v3210, %v3302
        %v3304 = vpop.f32.mrb[0].mxu0
        %v3305 = vpop.f32.mrb[0].mxu0
        %v3306 = vadd.f32 %v3211, %v3305
        %v3307 = vpop.f32.mrb[0].mxu0
        %3308 = vmatprep.mubr.bf16.mxu0 0
        %3309 = vmatmul.mubr.bf16.gmra.mrb[0].mxu0 %v3232
        %v3310 = vpop.f32.mrb[0].mxu0
        %v3311 = vadd.f32 %v3212, %v3310
        %v3312 = vpop.f32.mrb[0].mxu0
        %v3313 = vpop.f32.mrb[0].mxu0
        %v3314 = vadd.f32 %v3213, %v3313
        %v3315 = vpop.f32.mrb[0].mxu0
        %3316 = vmatprep.mubr.bf16.mxu0 0
        %3317 = vmatmul.mubr.bf16.gmra.mrb[0].mxu0 %v3235
        %v3318 = vpop.f32.mrb[0].mxu0
        %v3319 = vadd.f32 %v3214, %v3318
        %v3320 = vpop.f32.mrb[0].mxu0
        %v3321 = vpop.f32.mrb[0].mxu0
        %v3322 = vadd.f32 %v3215, %v3321
        %v3323 = vpop.f32.mrb[0].mxu0
        %3324 = vmatprep.mubr.bf16.mxu0 0
        %3325 = vmatmul.mubr.bf16.gmra.mrb[0].mxu0 %v3238
        %v3326 = vpop.f32.mrb[0].mxu0
        %v3327 = vadd.f32 %v3216, %v3326
        %v3328 = vpop.f32.mrb[0].mxu0
        %v3329 = vpop.f32.mrb[0].mxu0
        %v3330 = vadd.f32 %v3217, %v3329
        %v3331 = vpop.f32.mrb[0].mxu0
        %3332 = vmatprep.mubr.bf16.mxu0 0
        %3333 = vmatmul.mubr.bf16.gmra.mrb[0].mxu0 %v3241
        %v3334 = vpop.f32.mrb[0].mxu0
        %v3335 = vadd.f32 %v3218, %v3334
        %v3336 = vpop.f32.mrb[0].mxu0
        %v3337 = vpop.f32.mrb[0].mxu0
        %v3338 = vadd.f32 %v3219, %v3337
        %v3339 = vpop.f32.mrb[0].mxu0
        %3340 = vmatprep.mubr.bf16.mxu0 0
        %3341 = vmatmul.mubr.bf16.gmra.mrb[0].mxu0 %v3244
        %v3342 = vpop.f32.mrb[0].mxu0
        %v3343 = vadd.f32 %v3220, %v3342
        %v3344 = vpop.f32.mrb[0].mxu0
        %v3345 = vpop.f32.mrb[0].mxu0
        %v3346 = vadd.f32 %v3221, %v3345
        %v3347 = vpop.f32.mrb[0].mxu0
        %3348 = vdwg.mxu0
        %v3349 = vmul.f32 %v3287, 0.125
        %v3350 = vmul.f32 %v3290, 0.125
        %v3351 = vmul.f32 %v3295, 0.125
        %v3352 = vmul.f32 %v3298, 0.125
        %v3353 = vmul.f32 %v3303, 0.125
        %v3354 = vmul.f32 %v3306, 0.125
        %v3355 = vmul.f32 %v3311, 0.125
        %v3356 = vmul.f32 %v3314, 0.125
        %v3357 = vmul.f32 %v3319, 0.125
        %v3358 = vmul.f32 %v3322, 0.125
        %v3359 = vmul.f32 %v3327, 0.125
        %v3360 = vmul.f32 %v3330, 0.125
        %v3361 = vmul.f32 %v3335, 0.125
        %v3362 = vmul.f32 %v3338, 0.125
        %v3363 = vmul.f32 %v3343, 0.125
        %v3364 = vmul.f32 %v3346, 0.125
        %v3365 = vsel %vm1883, %v3349, -inf
        %3366 = vmax.xlane.f32.xlu0 %v3365
        %v3367 = vpop.xlane.xlu0 %3366
        %v3368 = vsel %vm1883, %v3350, -inf
        %3369 = vmax.xlane.f32.xlu0 %v3368
        %v3370 = vpop.xlane.xlu0 %3369
        %v3371 = vsel %vm1883, %v3351, -inf
        %3372 = vmax.xlane.f32.xlu0 %v3371
        %v3373 = vpop.xlane.xlu0 %3372
        %v3374 = vsel %vm1883, %v3352, -inf
        %3375 = vmax.xlane.f32.xlu0 %v3374
        %v3376 = vpop.xlane.xlu0 %3375
        %v3377 = vsel %vm1883, %v3353, -inf
        %3378 = vmax.xlane.f32.xlu0 %v3377
        %v3379 = vpop.xlane.xlu0 %3378
        %v3380 = vsel %vm1883, %v3354, -inf
        %3381 = vmax.xlane.f32.xlu0 %v3380
        %v3382 = vpop.xlane.xlu0 %3381
        %v3383 = vsel %vm1883, %v3355, -inf
        %3384 = vmax.xlane.f32.xlu0 %v3383
        %v3385 = vpop.xlane.xlu0 %3384
        %v3386 = vsel %vm1883, %v3356, -inf
        %3387 = vmax.xlane.f32.xlu0 %v3386
        %v3388 = vpop.xlane.xlu0 %3387
        %v3389 = vsel %vm1883, %v3357, -inf
        %3390 = vmax.xlane.f32.xlu0 %v3389
        %v3391 = vpop.xlane.xlu0 %3390
        %v3392 = vsel %vm1883, %v3358, -inf
        %3393 = vmax.xlane.f32.xlu0 %v3392
        %v3394 = vpop.xlane.xlu0 %3393
        %v3395 = vsel %vm1883, %v3359, -inf
        %3396 = vmax.xlane.f32.xlu0 %v3395
        %v3397 = vpop.xlane.xlu0 %3396
        %v3398 = vsel %vm1883, %v3360, -inf
        %3399 = vmax.xlane.f32.xlu0 %v3398
        %v3400 = vpop.xlane.xlu0 %3399
        %v3401 = vsel %vm1883, %v3361, -inf
        %3402 = vmax.xlane.f32.xlu0 %v3401
        %v3403 = vpop.xlane.xlu0 %3402
        %v3404 = vsel %vm1883, %v3362, -inf
        %3405 = vmax.xlane.f32.xlu0 %v3404
        %v3406 = vpop.xlane.xlu0 %3405
        %v3407 = vsel %vm1883, %v3363, -inf
        %3408 = vmax.xlane.f32.xlu0 %v3407
        %v3409 = vpop.xlane.xlu0 %3408
        %v3410 = vsel %vm1883, %v3364, -inf
        %3411 = vmax.xlane.f32.xlu0 %v3410
        %v3412 = vpop.xlane.xlu0 %3411
        %v3413 = vsub.f32 %v3349, %v3367
        %v3414 = vsub.f32 %v3350, %v3370
        %v3415 = vsub.f32 %v3351, %v3373
        %v3416 = vsub.f32 %v3352, %v3376
        %v3417 = vsub.f32 %v3353, %v3379
        %v3418 = vsub.f32 %v3354, %v3382
        %v3419 = vsub.f32 %v3355, %v3385
        %v3420 = vsub.f32 %v3356, %v3388
        %v3421 = vsub.f32 %v3357, %v3391
        %v3422 = vsub.f32 %v3358, %v3394
        %v3423 = vsub.f32 %v3359, %v3397
        %v3424 = vsub.f32 %v3360, %v3400
        %v3425 = vsub.f32 %v3361, %v3403
        %v3426 = vsub.f32 %v3362, %v3406
        %v3427 = vsub.f32 %v3363, %v3409
        %v3428 = vsub.f32 %v3364, %v3412
        %v3429 = vmul.f32 %v3413, 1.442695
        %v3430 = vpow.pop %v3429
        %v3431 = vmul.f32 %v3414, 1.442695
        %v3432 = vpow.pop %v3431
        %v3433 = vmul.f32 %v3415, 1.442695
        %v3434 = vpow.pop %v3433
        %v3435 = vmul.f32 %v3416, 1.442695
        %v3436 = vpow.pop %v3435
        %v3437 = vmul.f32 %v3417, 1.442695
        %v3438 = vpow.pop %v3437
        %v3439 = vmul.f32 %v3418, 1.442695
        %v3440 = vpow.pop %v3439
        %v3441 = vmul.f32 %v3419, 1.442695
        %v3442 = vpow.pop %v3441
        %v3443 = vmul.f32 %v3420, 1.442695
        %v3444 = vpow.pop %v3443
        %v3445 = vmul.f32 %v3421, 1.442695
        %v3446 = vpow.pop %v3445
        %v3447 = vmul.f32 %v3422, 1.442695
        %v3448 = vpow.pop %v3447
        %v3449 = vmul.f32 %v3423, 1.442695
        %v3450 = vpow.pop %v3449
        %v3451 = vmul.f32 %v3424, 1.442695
        %v3452 = vpow.pop %v3451
        %v3453 = vmul.f32 %v3425, 1.442695
        %v3454 = vpow.pop %v3453
        %v3455 = vmul.f32 %v3426, 1.442695
        %v3456 = vpow.pop %v3455
        %v3457 = vmul.f32 %v3427, 1.442695
        %v3458 = vpow.pop %v3457
        %v3459 = vmul.f32 %v3428, 1.442695
        %v3460 = vpow.pop %v3459
        %v3461 = vsel %vm1883, %v3430, 0.0
        %3462 = vadd.xlane.f32.xlu0 %v3461
        %v3463 = vpop.xlane.xlu0 %3462
        %v3464 = vsel %vm1883, %v3432, 0.0
        %3465 = vadd.xlane.f32.xlu0 %v3464
        %v3466 = vpop.xlane.xlu0 %3465
        %v3467 = vsel %vm1883, %v3434, 0.0
        %3468 = vadd.xlane.f32.xlu0 %v3467
        %v3469 = vpop.xlane.xlu0 %3468
        %v3470 = vsel %vm1883, %v3436, 0.0
        %3471 = vadd.xlane.f32.xlu0 %v3470
        %v3472 = vpop.xlane.xlu0 %3471
        %v3473 = vsel %vm1883, %v3438, 0.0
        %3474 = vadd.xlane.f32.xlu0 %v3473
        %v3475 = vpop.xlane.xlu0 %3474
        %v3476 = vsel %vm1883, %v3440, 0.0
        %3477 = vadd.xlane.f32.xlu0 %v3476
        %v3478 = vpop.xlane.xlu0 %3477
        %v3479 = vsel %vm1883, %v3442, 0.0
        %3480 = vadd.xlane.f32.xlu0 %v3479
        %v3481 = vpop.xlane.xlu0 %3480
        %v3482 = vsel %vm1883, %v3444, 0.0
        %3483 = vadd.xlane.f32.xlu0 %v3482
        %v3484 = vpop.xlane.xlu0 %3483
        %v3485 = vsel %vm1883, %v3446, 0.0
        %3486 = vadd.xlane.f32.xlu0 %v3485
        %v3487 = vpop.xlane.xlu0 %3486
        %v3488 = vsel %vm1883, %v3448, 0.0
        %3489 = vadd.xlane.f32.xlu0 %v3488
        %v3490 = vpop.xlane.xlu0 %3489
        %v3491 = vsel %vm1883, %v3450, 0.0
        %3492 = vadd.xlane.f32.xlu0 %v3491
        %v3493 = vpop.xlane.xlu0 %3492
        %v3494 = vsel %vm1883, %v3452, 0.0
        %3495 = vadd.xlane.f32.xlu0 %v3494
        %v3496 = vpop.xlane.xlu0 %3495
        %v3497 = vsel %vm1883, %v3454, 0.0
        %3498 = vadd.xlane.f32.xlu0 %v3497
        %v3499 = vpop.xlane.xlu0 %3498
        %v3500 = vsel %vm1883, %v3456, 0.0
        %3501 = vadd.xlane.f32.xlu0 %v3500
        %v3502 = vpop.xlane.xlu0 %3501
        %v3503 = vsel %vm1883, %v3458, 0.0
        %3504 = vadd.xlane.f32.xlu0 %v3503
        %v3505 = vpop.xlane.xlu0 %3504
        %v3506 = vsel %vm1883, %v3460, 0.0
        %3507 = vadd.xlane.f32.xlu0 %v3506
        %v3508 = vpop.xlane.xlu0 %3507
        %v3509 = vrcp.pop %v3463
        %v3510 = vrcp.pop %v3466
        %v3511 = vrcp.pop %v3469
        %v3512 = vrcp.pop %v3472
        %v3513 = vrcp.pop %v3475
        %v3514 = vrcp.pop %v3478
        %v3515 = vrcp.pop %v3481
        %v3516 = vrcp.pop %v3484
        %v3517 = vrcp.pop %v3487
        %v3518 = vrcp.pop %v3490
        %v3519 = vrcp.pop %v3493
        %v3520 = vrcp.pop %v3496
        %v3521 = vrcp.pop %v3499
        %v3522 = vrcp.pop %v3502
        %v3523 = vrcp.pop %v3505
        %v3524 = vrcp.pop %v3508
        %v3525 = vmul.f32 %v3430, %v3509
        %v3526 = vmul.f32 %v3432, %v3510
        %v3527 = vmul.f32 %v3434, %v3511
        %v3528 = vmul.f32 %v3436, %v3512
        %v3529 = vmul.f32 %v3438, %v3513
        %v3530 = vmul.f32 %v3440, %v3514
        %v3531 = vmul.f32 %v3442, %v3515
        %v3532 = vmul.f32 %v3444, %v3516
        %v3533 = vmul.f32 %v3446, %v3517
        %v3534 = vmul.f32 %v3448, %v3518
        %v3535 = vmul.f32 %v3450, %v3519
        %v3536 = vmul.f32 %v3452, %v3520
        %v3537 = vmul.f32 %v3454, %v3521
        %v3538 = vmul.f32 %v3456, %v3522
        %v3539 = vmul.f32 %v3458, %v3523
        %v3540 = vmul.f32 %v3460, %v3524
        %v3541 = vpack.c.bf16 %v3526, %v3525
        %v3542 = vpack.c.bf16 %v3528, %v3527
        %v3543 = vpack.c.bf16 %v3530, %v3529
        %v3544 = vpack.c.bf16 %v3532, %v3531
        %v3545 = vpack.c.bf16 %v3534, %v3533
        %v3546 = vpack.c.bf16 %v3536, %v3535
        %v3547 = vpack.c.bf16 %v3538, %v3537
        %v3548 = vpack.c.bf16 %v3540, %v3539
        %v3550 = vpack.i.b16 %v1533, %v1533
        %v3552 = vlaneseq
        %v3553 = vshrl.u32 %v3552, 7
        %v3554 = vsub.s32 0, %v3553
        %v3555 = vrot.slane %v3550, %v3554
        %v3556 = vmul.bf16 %v1641, %v3555
        %v3557 = vmul.bf16 %v1642, %v3555
        %v3559 = vpack.i.b16 %v1537, %v1537
        %v3561 = vlaneseq
        %v3562 = vshrl.u32 %v3561, 7
        %v3563 = vsub.s32 0, %v3562
        %v3564 = vrot.slane %v3559, %v3563
        %v3565 = vmul.bf16 %v1641, %v3564
        %v3566 = vmul.bf16 %v1642, %v3564
        %v3568 = vsel %vm1883, %v3543, 0
        %v3571 = vsel %vm1883, %v3544, 0
        %3573 = vmatprep.subr.bf16.mxu0 0
        %3574 = vmatpush1.bf16.msra.mxu0 %v3565
        %3575 = vmatprep.subr.bf16.mxu0 0
        %3576 = vmatpush1.bf16.msra.mxu0 %v3566
        %3577 = vmatprep.subr.bf16.mxu0 0
        %3578 = vmatpush1.bf16.msra.mxu0 0
        %3579 = vmatprep.subr.bf16.mxu0 0
        %3580 = vmatpush1.bf16.msra.mxu0 0
        %3581 = vmatprep.subr.bf16.mxu0 0
        %3582 = vmatpush1.bf16.msra.mxu0 0
        %3583 = vmatprep.subr.bf16.mxu0 0
        %3584 = vmatpush1.bf16.msra.mxu0 0
        %3585 = vmatprep.subr.bf16.mxu0 0
        %3586 = vmatpush1.bf16.msra.mxu0 0
        %3587 = vmatprep.subr.bf16.mxu0 0
        %3588 = vmatpush1.bf16.msra.mxu0 0
        %3589 = vmatprep.subr.bf16.mxu0 0
        %3590 = vmatpush1.bf16.msra.mxu0 0
        %3591 = vmatprep.subr.bf16.mxu0 0
        %3592 = vmatpush1.bf16.msra.mxu0 0
        %3593 = vmatprep.subr.bf16.mxu0 0
        %3594 = vmatpush1.bf16.msra.mxu0 0
        %3595 = vmatprep.subr.bf16.mxu0 0
        %3596 = vmatpush1.bf16.msra.mxu0 0
        %3597 = vmatprep.subr.bf16.mxu0 0
        %3598 = vmatpush1.bf16.msra.mxu0 0
        %3599 = vmatprep.subr.bf16.mxu0 0
        %3600 = vmatpush1.bf16.msra.mxu0 0
        %3601 = vmatprep.subr.bf16.mxu0 0
        %3602 = vmatpush1.bf16.msra.mxu0 0
        %3603 = vmatprep.subr.bf16.mxu0 0
        %3604 = vmatpush1.bf16.msra.mxu0 0
        %3605 = vmatprep.mubr.bf16.mxu0 0
        %3606 = vmatmul.mubr.bf16.gmra.mrb[0].mxu0 %v3568
        %v3607 = vpop.f32.mrb[0].mxu0
        %v3608 = vadd.f32 0.0, %v3607
        %v3609 = vpop.f32.mrb[0].mxu0
        %v3610 = vpop.f32.mrb[0].mxu0
        %v3611 = vadd.f32 0.0, %v3610
        %v3612 = vpop.f32.mrb[0].mxu0
        %3613 = vmatprep.mubr.bf16.mxu0 0
        %3614 = vmatmul.mubr.bf16.gmra.mrb[0].mxu0 %v3571
        %v3615 = vpop.f32.mrb[0].mxu0
        %v3616 = vadd.f32 0.0, %v3615
        %v3617 = vpop.f32.mrb[0].mxu0
        %v3618 = vpop.f32.mrb[0].mxu0
        %v3619 = vadd.f32 0.0, %v3618
        %v3620 = vpop.f32.mrb[0].mxu0
        %3621 = vdwg.mxu0
        %v3623 = vsel %vm1883, %v3541, 0
        %v3626 = vsel %vm1883, %v3542, 0
        %3628 = vmatprep.subr.bf16.mxu0 0
        %3629 = vmatpush1.bf16.msra.mxu0 %v3556
        %3630 = vmatprep.subr.bf16.mxu0 0
        %3631 = vmatpush1.bf16.msra.mxu0 %v3557
        %3632 = vmatprep.subr.bf16.mxu0 0
        %3633 = vmatpush1.bf16.msra.mxu0 0
        %3634 = vmatprep.subr.bf16.mxu0 0
        %3635 = vmatpush1.bf16.msra.mxu0 0
        %3636 = vmatprep.subr.bf16.mxu0 0
        %3637 = vmatpush1.bf16.msra.mxu0 0
        %3638 = vmatprep.subr.bf16.mxu0 0
        %3639 = vmatpush1.bf16.msra.mxu0 0
        %3640 = vmatprep.subr.bf16.mxu0 0
        %3641 = vmatpush1.bf16.msra.mxu0 0
        %3642 = vmatprep.subr.bf16.mxu0 0
        %3643 = vmatpush1.bf16.msra.mxu0 0
        %3644 = vmatprep.subr.bf16.mxu0 0
        %3645 = vmatpush1.bf16.msra.mxu0 0
        %3646 = vmatprep.subr.bf16.mxu0 0
        %3647 = vmatpush1.bf16.msra.mxu0 0
        %3648 = vmatprep.subr.bf16.mxu0 0
        %3649 = vmatpush1.bf16.msra.mxu0 0
        %3650 = vmatprep.subr.bf16.mxu0 0
        %3651 = vmatpush1.bf16.msra.mxu0 0
        %3652 = vmatprep.subr.bf16.mxu0 0
        %3653 = vmatpush1.bf16.msra.mxu0 0
        %3654 = vmatprep.subr.bf16.mxu0 0
        %3655 = vmatpush1.bf16.msra.mxu0 0
        %3656 = vmatprep.subr.bf16.mxu0 0
        %3657 = vmatpush1.bf16.msra.mxu0 0
        %3658 = vmatprep.subr.bf16.mxu0 0
        %3659 = vmatpush1.bf16.msra.mxu0 0
        %3660 = vmatprep.mubr.bf16.mxu0 0
        %3661 = vmatmul.mubr.bf16.gmra.mrb[0].mxu0 %v3623
        %v3662 = vpop.f32.mrb[0].mxu0
        %v3663 = vadd.f32 %v3608, %v3662
        %v3664 = vpop.f32.mrb[0].mxu0
        %v3665 = vpop.f32.mrb[0].mxu0
        %v3666 = vadd.f32 %v3611, %v3665
        %v3667 = vpop.f32.mrb[0].mxu0
        %3668 = vmatprep.mubr.bf16.mxu0 0
        %3669 = vmatmul.mubr.bf16.gmra.mrb[0].mxu0 %v3626
        %v3670 = vpop.f32.mrb[0].mxu0
        %v3671 = vadd.f32 %v3616, %v3670
        %v3672 = vpop.f32.mrb[0].mxu0
        %v3673 = vpop.f32.mrb[0].mxu0
        %v3674 = vadd.f32 %v3619, %v3673
        %v3675 = vpop.f32.mrb[0].mxu0
        %3676 = vdwg.mxu0
        %v3678 = vpack.i.b16 %v1541, %v1541
        %v3680 = vlaneseq
        %v3681 = vshrl.u32 %v3680, 7
        %v3682 = vsub.s32 0, %v3681
        %v3683 = vrot.slane %v3678, %v3682
        %v3684 = vmul.bf16 %v1641, %v3683
        %v3685 = vmul.bf16 %v1642, %v3683
        %v3687 = vsel %vm1883, %v3545, 0
        %v3690 = vsel %vm1883, %v3546, 0
        %3692 = vmatprep.subr.bf16.mxu0 0
        %3693 = vmatpush1.bf16.msra.mxu0 %v3684
        %3694 = vmatprep.subr.bf16.mxu0 0
        %3695 = vmatpush1.bf16.msra.mxu0 %v3685
        %3696 = vmatprep.subr.bf16.mxu0 0
        %3697 = vmatpush1.bf16.msra.mxu0 0
        %3698 = vmatprep.subr.bf16.mxu0 0
        %3699 = vmatpush1.bf16.msra.mxu0 0
        %3700 = vmatprep.subr.bf16.mxu0 0
        %3701 = vmatpush1.bf16.msra.mxu0 0
        %3702 = vmatprep.subr.bf16.mxu0 0
        %3703 = vmatpush1.bf16.msra.mxu0 0
        %3704 = vmatprep.subr.bf16.mxu0 0
        %3705 = vmatpush1.bf16.msra.mxu0 0
        %3706 = vmatprep.subr.bf16.mxu0 0
        %3707 = vmatpush1.bf16.msra.mxu0 0
        %3708 = vmatprep.subr.bf16.mxu0 0
        %3709 = vmatpush1.bf16.msra.mxu0 0
        %3710 = vmatprep.subr.bf16.mxu0 0
        %3711 = vmatpush1.bf16.msra.mxu0 0
        %3712 = vmatprep.subr.bf16.mxu0 0
        %3713 = vmatpush1.bf16.msra.mxu0 0
        %3714 = vmatprep.subr.bf16.mxu0 0
        %3715 = vmatpush1.bf16.msra.mxu0 0
        %3716 = vmatprep.subr.bf16.mxu0 0
        %3717 = vmatpush1.bf16.msra.mxu0 0
        %3718 = vmatprep.subr.bf16.mxu0 0
        %3719 = vmatpush1.bf16.msra.mxu0 0
        %3720 = vmatprep.subr.bf16.mxu0 0
        %3721 = vmatpush1.bf16.msra.mxu0 0
        %3722 = vmatprep.subr.bf16.mxu0 0
        %3723 = vmatpush1.bf16.msra.mxu0 0
        %3724 = vmatprep.mubr.bf16.mxu0 0
        %3725 = vmatmul.mubr.bf16.gmra.mrb[0].mxu0 %v3687
        %v3726 = vpop.f32.mrb[0].mxu0
        %v3727 = vadd.f32 0.0, %v3726
        %v3728 = vpop.f32.mrb[0].mxu0
        %v3729 = vpop.f32.mrb[0].mxu0
        %v3730 = vadd.f32 0.0, %v3729
        %v3731 = vpop.f32.mrb[0].mxu0
        %3732 = vmatprep.mubr.bf16.mxu0 0
        %3733 = vmatmul.mubr.bf16.gmra.mrb[0].mxu0 %v3690
        %v3734 = vpop.f32.mrb[0].mxu0
        %v3735 = vadd.f32 0.0, %v3734
        %v3736 = vpop.f32.mrb[0].mxu0
        %v3737 = vpop.f32.mrb[0].mxu0
        %v3738 = vadd.f32 0.0, %v3737
        %v3739 = vpop.f32.mrb[0].mxu0
        %3740 = vdwg.mxu0
        %v3741 = vadd.f32 %v3663, %v3727
        %v3742 = vadd.f32 %v3666, %v3730
        %v3743 = vadd.f32 %v3671, %v3735
        %v3744 = vadd.f32 %v3674, %v3738
        %v3746 = vpack.i.b16 %v1545, %v1545
        %v3748 = vlaneseq
        %v3749 = vshrl.u32 %v3748, 7
        %v3750 = vsub.s32 0, %v3749
        %v3751 = vrot.slane %v3746, %v3750
        %v3752 = vmul.bf16 %v1641, %v3751
        %v3753 = vmul.bf16 %v1642, %v3751
        %v3755 = vsel %vm1883, %v3547, 0
        %v3758 = vsel %vm1883, %v3548, 0
        %3760 = vmatprep.subr.bf16.mxu0 0
        %3761 = vmatpush1.bf16.msra.mxu0 %v3752
        %3762 = vmatprep.subr.bf16.mxu0 0
        %3763 = vmatpush1.bf16.msra.mxu0 %v3753
        %3764 = vmatprep.subr.bf16.mxu0 0
        %3765 = vmatpush1.bf16.msra.mxu0 0
        %3766 = vmatprep.subr.bf16.mxu0 0
        %3767 = vmatpush1.bf16.msra.mxu0 0
        %3768 = vmatprep.subr.bf16.mxu0 0
        %3769 = vmatpush1.bf16.msra.mxu0 0
        %3770 = vmatprep.subr.bf16.mxu0 0
        %3771 = vmatpush1.bf16.msra.mxu0 0
        %3772 = vmatprep.subr.bf16.mxu0 0
        %3773 = vmatpush1.bf16.msra.mxu0 0
        %3774 = vmatprep.subr.bf16.mxu0 0
        %3775 = vmatpush1.bf16.msra.mxu0 0
        %3776 = vmatprep.subr.bf16.mxu0 0
        %3777 = vmatpush1.bf16.msra.mxu0 0
        %3778 = vmatprep.subr.bf16.mxu0 0
        %3779 = vmatpush1.bf16.msra.mxu0 0
        %3780 = vmatprep.subr.bf16.mxu0 0
        %3781 = vmatpush1.bf16.msra.mxu0 0
        %3782 = vmatprep.subr.bf16.mxu0 0
        %3783 = vmatpush1.bf16.msra.mxu0 0
        %3784 = vmatprep.subr.bf16.mxu0 0
        %3785 = vmatpush1.bf16.msra.mxu0 0
        %3786 = vmatprep.subr.bf16.mxu0 0
        %3787 = vmatpush1.bf16.msra.mxu0 0
        %3788 = vmatprep.subr.bf16.mxu0 0
        %3789 = vmatpush1.bf16.msra.mxu0 0
        %3790 = vmatprep.subr.bf16.mxu0 0
        %3791 = vmatpush1.bf16.msra.mxu0 0
        %3792 = vmatprep.mubr.bf16.mxu0 0
        %3793 = vmatmul.mubr.bf16.gmra.mrb[0].mxu0 %v3755
        %v3794 = vpop.f32.mrb[0].mxu0
        %v3795 = vadd.f32 0.0, %v3794
        %v3796 = vpop.f32.mrb[0].mxu0
        %v3797 = vpop.f32.mrb[0].mxu0
        %v3798 = vadd.f32 0.0, %v3797
        %v3799 = vpop.f32.mrb[0].mxu0
        %3800 = vmatprep.mubr.bf16.mxu0 0
        %3801 = vmatmul.mubr.bf16.gmra.mrb[0].mxu0 %v3758
        %v3802 = vpop.f32.mrb[0].mxu0
        %v3803 = vadd.f32 0.0, %v3802
        %v3804 = vpop.f32.mrb[0].mxu0
        %v3805 = vpop.f32.mrb[0].mxu0
        %v3806 = vadd.f32 0.0, %v3805
        %v3807 = vpop.f32.mrb[0].mxu0
        %3808 = vdwg.mxu0
        %v3809 = vadd.f32 %v3741, %v3795
        %v3810 = vadd.f32 %v3742, %v3798
        %v3811 = vadd.f32 %v3743, %v3803
        %v3812 = vadd.f32 %v3744, %v3806
        %v3813 = vpack.c.bf16 %v3810, %v3809
        %v3814 = vpack.c.bf16 %v3812, %v3811
        %v3815 = vld [vmem:[%s859] sm:$0xf]
        %v3816 = vld [vmem:[%s859 + $0x4] sm:$0xf]
        %v3817 = vld [vmem:[%s859 + $0x8] sm:$0xf]
        %v3818 = vld [vmem:[%s859 + $0xc] sm:$0xf]
        %v3819 = vld [vmem:[%s859 + $0x10] sm:$0xf]
        %v3820 = vld [vmem:[%s859 + $0x14] sm:$0xf]
        %v3821 = vld [vmem:[%s859 + $0x18] sm:$0xf]
        %v3822 = vld [vmem:[%s859 + $0x1c] sm:$0xf]
        %v3823 = vld [vmem:[%s867] sm:$0x1]
        %v3825 = vlaneseq
        %v3826 = vshrl.u32 %v3825, 7
        %v3827 = vsub.s32 0, %v3826
        %v3828 = vrot.slane %v3823, %v3827
        %v3838 = vunpack.c.l.b16 %v3815
        %v3839 = vunpack.c.l.b16 %v3816
        %v3840 = vunpack.c.l.b16 %v3817
        %v3841 = vunpack.c.l.b16 %v3818
        %v3842 = vunpack.c.l.b16 %v3819
        %v3843 = vunpack.c.l.b16 %v3820
        %v3844 = vunpack.c.l.b16 %v3821
        %v3845 = vunpack.c.l.b16 %v3822
        %v3846 = vpack.c.b16 %v3839, %v3838
        %v3847 = vpack.c.b16 %v3841, %v3840
        %v3848 = vpack.c.b16 %v3843, %v3842
        %v3849 = vpack.c.b16 %v3845, %v3844
        %v3855 = vsel %vm1250, %v3813, 0
        %v3858 = vsel %vm1250, %v3814, 0
        %3860 = vmatprep.subr.bf16.mxu0 0
        %3861 = vmatpush1.bf16.msra.mxu0 %v3846
        %3862 = vmatprep.subr.bf16.mxu0 0
        %3863 = vmatpush1.bf16.msra.mxu0 %v3847
        %3864 = vmatprep.subr.bf16.mxu0 0
        %3865 = vmatpush1.bf16.msra.mxu0 %v3848
        %3866 = vmatprep.subr.bf16.mxu0 0
        %3867 = vmatpush1.bf16.msra.mxu0 %v3849
        %3868 = vmatprep.subr.bf16.mxu0 0
        %3869 = vmatpush1.bf16.msra.mxu0 0
        %3870 = vmatprep.subr.bf16.mxu0 0
        %3871 = vmatpush1.bf16.msra.mxu0 0
        %3872 = vmatprep.subr.bf16.mxu0 0
        %3873 = vmatpush1.bf16.msra.mxu0 0
        %3874 = vmatprep.subr.bf16.mxu0 0
        %3875 = vmatpush1.bf16.msra.mxu0 0
        %3876 = vmatprep.subr.bf16.mxu0 0
        %3877 = vmatpush1.bf16.msra.mxu0 0
        %3878 = vmatprep.subr.bf16.mxu0 0
        %3879 = vmatpush1.bf16.msra.mxu0 0
        %3880 = vmatprep.subr.bf16.mxu0 0
        %3881 = vmatpush1.bf16.msra.mxu0 0
        %3882 = vmatprep.subr.bf16.mxu0 0
        %3883 = vmatpush1.bf16.msra.mxu0 0
        %3884 = vmatprep.subr.bf16.mxu0 0
        %3885 = vmatpush1.bf16.msra.mxu0 0
        %3886 = vmatprep.subr.bf16.mxu0 0
        %3887 = vmatpush1.bf16.msra.mxu0 0
        %3888 = vmatprep.subr.bf16.mxu0 0
        %3889 = vmatpush1.bf16.msra.mxu0 0
        %3890 = vmatprep.subr.bf16.mxu0 0
        %3891 = vmatpush1.bf16.msra.mxu0 0
        %3892 = vmatprep.mubr.bf16.mxu0 0
        %3893 = vmatmul.mubr.bf16.gmra.mrb[0].mxu0 %v3855
        %v3894 = vpop.f32.mrb[0].mxu0
        %v3895 = vadd.f32 %v3828, %v3894
        %v3896 = vpop.f32.mrb[0].mxu0
        %v3897 = vpop.f32.mrb[0].mxu0
        %v3898 = vadd.f32 %v3828, %v3897
        %v3899 = vpop.f32.mrb[0].mxu0
        %3900 = vmatprep.mubr.bf16.mxu0 0
        %3901 = vmatmul.mubr.bf16.gmra.mrb[0].mxu0 %v3858
        %v3902 = vpop.f32.mrb[0].mxu0
        %v3903 = vadd.f32 %v3828, %v3902
        %v3904 = vpop.f32.mrb[0].mxu0
        %v3905 = vpop.f32.mrb[0].mxu0
        %v3906 = vadd.f32 %v3828, %v3905
        %v3907 = vpop.f32.mrb[0].mxu0
        %3908 = vdwg.mxu0
        %v3909 = vadd.f32 %v3895, %v1246
        %v3910 = vadd.f32 %v3898, %v1247
        %v3911 = vadd.f32 %v3903, %v1248
        %v3912 = vadd.f32 %v3906, %v1249
        %3913 = vst.msk [vmem:[#allocation2] sm:$0xff] %vm1250, %v3909
        %3914 = vst.msk [vmem:[#allocation2 + $0x8] sm:$0xff] %vm1250, %v3910
        %3915 = vst.msk [vmem:[#allocation2 + $0x10] sm:$0xff] %vm1250, %v3911
        %3916 = vst.msk [vmem:[#allocation2 + $0x18] sm:$0xff] %vm1250, %v3912
        %p3917 = scmp.eq.s32.totalorder %s39, 1
        // Predicated region
        $region157: #{forward.4} parent=91 // pred_check
          %p3918 = pneg %p3917
        $region158: #{forward.4} parent=91 // pred_check_branch
          %3920 = sbr.rel (%p3918) target = $region160
        $region159: #{forward.4} parent=91 // pred_region
          %v3921 = vsel %vm1250, %v3909, 0.0
          %3922 = vadd.xlane.f32.xlu0 %v3921
          %v3923 = vpop.xlane.xlu0 %3922
          %v3924 = vsel %vm1250, %v3910, 0.0
          %3925 = vadd.xlane.f32.xlu0 %v3924
          %v3926 = vpop.xlane.xlu0 %3925
          %v3927 = vsel %vm1250, %v3911, 0.0
          %3928 = vadd.xlane.f32.xlu0 %v3927
          %v3929 = vpop.xlane.xlu0 %3928
          %v3930 = vsel %vm1250, %v3912, 0.0
          %3931 = vadd.xlane.f32.xlu0 %v3930
          %v3932 = vpop.xlane.xlu0 %3931
          %v3933 = vmul.f32 %v3923, %v1263
          %v3934 = vmul.f32 %v3926, %v1263
          %v3935 = vmul.f32 %v3929, %v1263
          %v3936 = vmul.f32 %v3932, %v1263
          %v3937 = vsub.f32 %v3909, %v3933
          %v3938 = vsub.f32 %v3910, %v3934
          %v3939 = vsub.f32 %v3911, %v3935
          %v3940 = vsub.f32 %v3912, %v3936
          %v3941 = vmul.f32 %v3937, %v3937
          %v3942 = vmul.f32 %v3938, %v3938
          %v3943 = vmul.f32 %v3939, %v3939
          %v3944 = vmul.f32 %v3940, %v3940
          %v3945 = vsel %vm1250, %v3941, 0.0
          %3946 = vadd.xlane.f32.xlu0 %v3945
          %v3947 = vpop.xlane.xlu0 %3946
          %v3948 = vsel %vm1250, %v3942, 0.0
          %3949 = vadd.xlane.f32.xlu0 %v3948
          %v3950 = vpop.xlane.xlu0 %3949
          %v3951 = vsel %vm1250, %v3943, 0.0
          %3952 = vadd.xlane.f32.xlu0 %v3951
          %v3953 = vpop.xlane.xlu0 %3952
          %v3954 = vsel %vm1250, %v3944, 0.0
          %3955 = vadd.xlane.f32.xlu0 %v3954
          %v3956 = vpop.xlane.xlu0 %3955
          %v3957 = vmul.f32 %v3947, %v1263
          %v3958 = vmul.f32 %v3950, %v1263
          %v3959 = vmul.f32 %v3953, %v1263
          %v3960 = vmul.f32 %v3956, %v1263
          %v3961 = vadd.f32 %v3957, 1e-05
          %v3962 = vadd.f32 %v3958, 1e-05
          %v3963 = vadd.f32 %v3959, 1e-05
          %v3964 = vadd.f32 %v3960, 1e-05
          %v3965 = vrsqrt.pop %v3961
          %v3966 = vrsqrt.pop %v3962
          %v3967 = vrsqrt.pop %v3963
          %v3968 = vrsqrt.pop %v3964
          %v3969 = vmul.f32 %v3937, %v3965
          %v3970 = vmul.f32 %v3938, %v3966
          %v3971 = vmul.f32 %v3939, %v3967
          %v3972 = vmul.f32 %v3940, %v3968
          %v3973 = vld [vmem:[#allocation19] sm:$0x1]
          %v3975 = vlaneseq
          %v3976 = vshrl.u32 %v3975, 7
          %v3977 = vsub.s32 0, %v3976
          %v3978 = vrot.slane %v3973, %v3977
          %v3980 = vmul.f32 %v3969, %v3978
          %v3981 = vmul.f32 %v3970, %v3978
          %v3982 = vmul.f32 %v3971, %v3978
          %v3983 = vmul.f32 %v3972, %v3978
          %v3984 = vld [vmem:[#allocation20] sm:$0x1]
          %v3986 = vlaneseq
          %v3987 = vshrl.u32 %v3986, 7
          %v3988 = vsub.s32 0, %v3987
          %v3989 = vrot.slane %v3984, %v3988
          %v3991 = vadd.f32 %v3980, %v3989
          %v3992 = vadd.f32 %v3981, %v3989
          %v3993 = vadd.f32 %v3982, %v3989
          %v3994 = vadd.f32 %v3983, %v3989
          %3995 = vst.msk [vmem:[%s972] sm:$0xff] %vm1250, %v3991
          %3996 = vst.msk [vmem:[%s972 + $0x8] sm:$0xff] %vm1250, %v3992
          %3997 = vst.msk [vmem:[%s972 + $0x10] sm:$0xff] %vm1250, %v3993
          %3998 = vst.msk [vmem:[%s972 + $0x18] sm:$0xff] %vm1250, %v3994
        $region160: #{forward.4} parent=91 // pred_fallthru
          _
        %p3999 = scmp.lt.s32.totalorder %s38, 1
        %s4000 = scalar_select %p3999, %s38, 1
        %s4001 = smul.addr %s4000, 4
        %s4002 = smul.addr %s4001, 8
        %s4003 = scalar_lea.vmem %s18, %s4002
        // Predicated region
        $region161: #{forward.4} parent=91 // pred_check
          %p4004 = pneg %p492
        $region162: #{forward.4} parent=91 // pred_check_branch
          %4006 = sbr.rel (%p4004) target = $region164
        $region163: #{forward.4} parent=91 // pred_region
          _
        $region164: #{forward.4} parent=91 // pred_fallthru
          _
      $region92: #{forward.4} parent=5 // pred_fallthru
        _
      %p4007 = scmp.le.s32.totalorder 2, %s29
      // Predicated region
      $region165: #{forward.4} parent=5 // pred_check
        %p4008 = pneg %p4007
      $region166: #{forward.4} parent=5 // pred_check_branch
        %4010 = sbr.rel (%p4008) target = $region168
      $region167: #{forward.4} parent=5 // pred_region
        %s4011 = ssub.s32 %s29, 2
        // Predicated region
        $region169: #{forward.4} parent=167 // pred_check
          %p4012 = pneg %p498
        $region170: #{forward.4} parent=167 // pred_check_branch
          %4014 = sbr.rel (%p4012) target = $region172
        $region171: #{forward.4} parent=167 // pred_region
          %p4015 = scmp.lt.s32.totalorder %s40, 1
          %s4016 = scalar_select %p4015, %s40, 1
          %s4017 = smul.addr %s4016, 4
          %s4018 = smul.addr %s4017, 8
          %s4019 = scalar_lea.vmem %s18, %s4018
        $region172: #{forward.4} parent=167 // pred_fallthru
          _
      $region168: #{forward.4} parent=5 // pred_fallthru
        _
    $region6: #{forward.4} parent=1 // loop_footer
      %s33 = sadd.s32 1, %s29
    $region7: #{forward.4} parent=1 // loop_footer_branch
      %28 = sbr.rel target = $region3
    $region8: #{forward.4} parent=1 // loop_exit
      _
    %4020 = vsyncpa [#allocation4], 1
    %s4021 = scalar_lea.sflag [#allocation4], 1
    %4022 = vsyncpa %s4021, 1
    %4023 = vsyncpa [#allocation6], 1
    %4024 = vsyncpa [#allocation9], 1

// kernel: forward.5
$region0: #{forward.5}
  #allocation0 [shape = 'u32[]', space=smem, size = 0x4, offset = 0x4, fixed_abs, tag = 'smem constant byte address 0x4 - core index']
  #allocation1 [shape = 'u32[144,128]{1,0:T(1,128)}', space=vmem, size = 0x12000, scoped, tag = 'internal scratch']
  %s0 = inlined_call_operand.vmem [shape: bf16[25,930], index: 0, kind: input, shape index: {}]
  %s1 = inlined_call_operand.vmem [shape: bf16[16,25], index: 1, kind: input, shape index: {}]
  %s2 = inlined_call_operand.vmem [shape: f32[16,1], index: 2, kind: input, shape index: {}]
  %s3 = inlined_call_operand.vmem [shape: f32[16,930], index: 3, kind: output, shape index: {}]
  %s4 = sld [smem:[#allocation0]]
  $region22: #{forward.5} parent=0
    _
  %s6 = ssub.s32 1, %s4
  %s7 = scalar_select 0, %s6, %s4
  // Predicated region
  $region2: #{forward.5} parent=0 // pred_check
    _
  $region3: #{forward.5} parent=0 // pred_check_branch
    %9 = sbr.rel (0) target = $region5
  $region4: #{forward.5} parent=0 // pred_region
    _
  $region5: #{forward.5} parent=0 // pred_fallthru
    _
  // Predicated region
  $region6: #{forward.5} parent=0 // pred_check
    _
  $region7: #{forward.5} parent=0 // pred_check_branch
    %11 = sbr.rel (0) target = $region9
  $region8: #{forward.5} parent=0 // pred_region
    _
  $region9: #{forward.5} parent=0 // pred_fallthru
    _
  // Predicated region
  $region10: #{forward.5} parent=0 // pred_check
    _
  $region11: #{forward.5} parent=0 // pred_check_branch
    %13 = sbr.rel (0) target = $region13
  $region12: #{forward.5} parent=0 // pred_region
    _
  $region13: #{forward.5} parent=0 // pred_fallthru
    _
  %v15 = vld [vmem:[%s1] sm:$0xf]
  %v16 = vld [vmem:[%s1 + $0x4] sm:$0xf]
  %v17 = vld [vmem:[%s0] sm:$0xff]
  %v18 = vld [vmem:[%s0 + $0x8] sm:$0xff]
  %v19 = vld [vmem:[%s0 + $0x10] sm:$0xff]
  %v20 = vld [vmem:[%s0 + $0x18] sm:$0xff]
  %v21 = vld [vmem:[%s0 + $0x20] sm:$0xff]
  %v22 = vld [vmem:[%s0 + $0x28] sm:$0xff]
  %v23 = vld [vmem:[%s0 + $0x30] sm:$0xff]
  %v24 = vld [vmem:[%s0 + $0x38] sm:$0xff]
  %v25 = vld [vmem:[%s0 + $0x40] sm:$0xff]
  %v26 = vld [vmem:[%s0 + $0x48] sm:$0xff]
  %v27 = vld [vmem:[%s0 + $0x50] sm:$0xff]
  %v28 = vld [vmem:[%s0 + $0x58] sm:$0xff]
  %v29 = vld [vmem:[%s0 + $0x60] sm:$0x11]
  %v30 = vld [vmem:[%s0 + $0x68] sm:$0x11]
  %v31 = vld [vmem:[%s0 + $0x70] sm:$0x11]
  %v32 = vld [vmem:[%s0 + $0x78] sm:$0x11]
  %v33 = vld [vmem:[%s2] sm:$0xff]
  %v34 = vld [vmem:[%s2 + $0x8] sm:$0xff]
  %36 = vset.pattern.permute.xlu0 0
  %37 = vperm.xlu0 %36, %v33
  %v38 = vpop.permute.xlu0 %37
  %41 = vset.pattern.permute.xlu0 0
  %42 = vperm.xlu0 %41, %v34
  %v43 = vpop.permute.xlu0 %42
  %v47 = vunpack.c.l.b16 %v15
  %v48 = vunpack.c.l.b16 %v16
  %v49 = vpack.c.b16 %v48, %v47
  %v66 = vunpack.c.l.b16 %v17
  %v67 = vunpack.c.h.b16 %v17
  %v68 = vunpack.c.l.b16 %v18
  %v69 = vunpack.c.h.b16 %v18
  %v70 = vunpack.c.l.b16 %v19
  %v71 = vunpack.c.h.b16 %v19
  %v72 = vunpack.c.l.b16 %v20
  %v73 = vunpack.c.h.b16 %v20
  %v74 = vunpack.c.l.b16 %v21
  %v75 = vunpack.c.h.b16 %v21
  %v76 = vunpack.c.l.b16 %v22
  %v77 = vunpack.c.h.b16 %v22
  %v78 = vunpack.c.l.b16 %v23
  %v79 = vunpack.c.h.b16 %v23
  %v80 = vunpack.c.l.b16 %v24
  %v81 = vunpack.c.h.b16 %v24
  %v82 = vunpack.c.l.b16 %v25
  %v83 = vunpack.c.h.b16 %v25
  %v84 = vunpack.c.l.b16 %v26
  %v85 = vunpack.c.h.b16 %v26
  %v86 = vunpack.c.l.b16 %v27
  %v87 = vunpack.c.h.b16 %v27
  %v88 = vunpack.c.l.b16 %v28
  %v89 = vunpack.c.h.b16 %v28
  %v90 = vunpack.c.l.b16 %v29
  %v91 = vunpack.c.h.b16 %v29
  %v92 = vunpack.c.l.b16 %v30
  %v93 = vunpack.c.h.b16 %v30
  %v94 = vunpack.c.l.b16 %v31
  %v95 = vunpack.c.h.b16 %v31
  %v96 = vunpack.c.l.b16 %v32
  %v97 = vunpack.c.h.b16 %v32
  %v98 = vpack.c.b16 %v74, %v66
  %v99 = vpack.c.b16 %v75, %v67
  %v100 = vpack.c.b16 %v76, %v68
  %v101 = vpack.c.b16 %v77, %v69
  %v102 = vpack.c.b16 %v78, %v70
  %v103 = vpack.c.b16 %v79, %v71
  %v104 = vpack.c.b16 %v80, %v72
  %v105 = vpack.c.b16 %v81, %v73
  %v106 = vpack.c.b16 %v90, %v82
  %v107 = vpack.c.b16 %v91, %v83
  %v108 = vpack.c.b16 %v92, %v84
  %v109 = vpack.c.b16 %v93, %v85
  %v110 = vpack.c.b16 %v94, %v86
  %v111 = vpack.c.b16 %v95, %v87
  %v112 = vpack.c.b16 %v96, %v88
  %v113 = vpack.c.b16 %v97, %v89
  %vm122 = vcmask 203776
  %v124 = vsel %vm122, %v49, 0
  %vm126 = vcmask 1043456
  %vm127 = vcmask 1044480
  %v128 = vsel %vm126, 4294967295, 65535
  %v129 = vsel %vm127, %v128, 0
  %v131 = vand.u32 %v106, %v129
  %v134 = vand.u32 %v107, %v129
  %v137 = vand.u32 %v108, %v129
  %v140 = vand.u32 %v109, %v129
  %v143 = vand.u32 %v110, %v129
  %v146 = vand.u32 %v111, %v129
  %v149 = vand.u32 %v112, %v129
  %v152 = vand.u32 %v113, %v129
  %154 = vmatprep.subr.bf16.mxu0 %v99
  %155 = vmatpush1.bf16.msra.mxu0 %v98
  %156 = vmatprep.subr.bf16.mxu0 %v134
  %157 = vmatpush1.bf16.msra.mxu0 %v131
  %158 = vmatprep.subr.bf16.mxu0 0
  %159 = vmatpush1.bf16.msra.mxu0 0
  %160 = vmatprep.subr.bf16.mxu0 0
  %161 = vmatpush1.bf16.msra.mxu0 0
  %162 = vmatprep.subr.bf16.mxu0 0
  %163 = vmatpush1.bf16.msra.mxu0 0
  %164 = vmatprep.subr.bf16.mxu0 0
  %165 = vmatpush1.bf16.msra.mxu0 0
  %166 = vmatprep.subr.bf16.mxu0 0
  %167 = vmatpush1.bf16.msra.mxu0 0
  %168 = vmatprep.subr.bf16.mxu0 0
  %169 = vmatpush1.bf16.msra.mxu0 0
  %170 = vmatprep.subr.bf16.mxu0 0
  %171 = vmatpush1.bf16.msra.mxu0 0
  %172 = vmatprep.subr.bf16.mxu0 0
  %173 = vmatpush1.bf16.msra.mxu0 0
  %174 = vmatprep.subr.bf16.mxu0 0
  %175 = vmatpush1.bf16.msra.mxu0 0
  %176 = vmatprep.subr.bf16.mxu0 0
  %177 = vmatpush1.bf16.msra.mxu0 0
  %178 = vmatprep.subr.bf16.mxu0 0
  %179 = vmatpush1.bf16.msra.mxu0 0
  %180 = vmatprep.subr.bf16.mxu0 0
  %181 = vmatpush1.bf16.msra.mxu0 0
  %182 = vmatprep.subr.bf16.mxu0 0
  %183 = vmatpush1.bf16.msra.mxu0 0
  %184 = vmatprep.subr.bf16.mxu0 0
  %185 = vmatpush1.bf16.msra.mxu0 0
  %186 = vmatprep.mubr.bf16.mxu0 0
  %187 = vmatmul.mubr.bf16.gmra.mrb[0].mxu0 %v124
  %v188 = vpop.f32.mrb[0].mxu0
  %v189 = vadd.f32 %v38, %v188
  %v190 = vpop.f32.mrb[0].mxu0
  %v191 = vadd.f32 %v38, %v190
  %v192 = vpop.f32.mrb[0].mxu0
  %v193 = vadd.f32 %v43, %v192
  %v194 = vpop.f32.mrb[0].mxu0
  %v195 = vadd.f32 %v43, %v194
  %196 = vdwg.mxu0
  %197 = vmatprep.subr.bf16.mxu0 %v101
  %198 = vmatpush1.bf16.msra.mxu0 %v100
  %199 = vmatprep.subr.bf16.mxu0 %v140
  %200 = vmatpush1.bf16.msra.mxu0 %v137
  %201 = vmatprep.subr.bf16.mxu0 0
  %202 = vmatpush1.bf16.msra.mxu0 0
  %203 = vmatprep.subr.bf16.mxu0 0
  %204 = vmatpush1.bf16.msra.mxu0 0
  %205 = vmatprep.subr.bf16.mxu0 0
  %206 = vmatpush1.bf16.msra.mxu0 0
  %207 = vmatprep.subr.bf16.mxu0 0
  %208 = vmatpush1.bf16.msra.mxu0 0
  %209 = vmatprep.subr.bf16.mxu0 0
  %210 = vmatpush1.bf16.msra.mxu0 0
  %211 = vmatprep.subr.bf16.mxu0 0
  %212 = vmatpush1.bf16.msra.mxu0 0
  %213 = vmatprep.subr.bf16.mxu0 0
  %214 = vmatpush1.bf16.msra.mxu0 0
  %215 = vmatprep.subr.bf16.mxu0 0
  %216 = vmatpush1.bf16.msra.mxu0 0
  %217 = vmatprep.subr.bf16.mxu0 0
  %218 = vmatpush1.bf16.msra.mxu0 0
  %219 = vmatprep.subr.bf16.mxu0 0
  %220 = vmatpush1.bf16.msra.mxu0 0
  %221 = vmatprep.subr.bf16.mxu0 0
  %222 = vmatpush1.bf16.msra.mxu0 0
  %223 = vmatprep.subr.bf16.mxu0 0
  %224 = vmatpush1.bf16.msra.mxu0 0
  %225 = vmatprep.subr.bf16.mxu0 0
  %226 = vmatpush1.bf16.msra.mxu0 0
  %227 = vmatprep.subr.bf16.mxu0 0
  %228 = vmatpush1.bf16.msra.mxu0 0
  %229 = vmatprep.mubr.bf16.mxu0 0
  %230 = vmatmul.mubr.bf16.gmra.mrb[0].mxu0 %v124
  %v231 = vpop.f32.mrb[0].mxu0
  %v232 = vadd.f32 %v38, %v231
  %v233 = vpop.f32.mrb[0].mxu0
  %v234 = vadd.f32 %v38, %v233
  %v235 = vpop.f32.mrb[0].mxu0
  %v236 = vadd.f32 %v43, %v235
  %v237 = vpop.f32.mrb[0].mxu0
  %v238 = vadd.f32 %v43, %v237
  %239 = vdwg.mxu0
  %240 = vmatprep.subr.bf16.mxu0 %v103
  %241 = vmatpush1.bf16.msra.mxu0 %v102
  %242 = vmatprep.subr.bf16.mxu0 %v146
  %243 = vmatpush1.bf16.msra.mxu0 %v143
  %244 = vmatprep.subr.bf16.mxu0 0
  %245 = vmatpush1.bf16.msra.mxu0 0
  %246 = vmatprep.subr.bf16.mxu0 0
  %247 = vmatpush1.bf16.msra.mxu0 0
  %248 = vmatprep.subr.bf16.mxu0 0
  %249 = vmatpush1.bf16.msra.mxu0 0
  %250 = vmatprep.subr.bf16.mxu0 0
  %251 = vmatpush1.bf16.msra.mxu0 0
  %252 = vmatprep.subr.bf16.mxu0 0
  %253 = vmatpush1.bf16.msra.mxu0 0
  %254 = vmatprep.subr.bf16.mxu0 0
  %255 = vmatpush1.bf16.msra.mxu0 0
  %256 = vmatprep.subr.bf16.mxu0 0
  %257 = vmatpush1.bf16.msra.mxu0 0
  %258 = vmatprep.subr.bf16.mxu0 0
  %259 = vmatpush1.bf16.msra.mxu0 0
  %260 = vmatprep.subr.bf16.mxu0 0
  %261 = vmatpush1.bf16.msra.mxu0 0
  %262 = vmatprep.subr.bf16.mxu0 0
  %263 = vmatpush1.bf16.msra.mxu0 0
  %264 = vmatprep.subr.bf16.mxu0 0
  %265 = vmatpush1.bf16.msra.mxu0 0
  %266 = vmatprep.subr.bf16.mxu0 0
  %267 = vmatpush1.bf16.msra.mxu0 0
  %268 = vmatprep.subr.bf16.mxu0 0
  %269 = vmatpush1.bf16.msra.mxu0 0
  %270 = vmatprep.subr.bf16.mxu0 0
  %271 = vmatpush1.bf16.msra.mxu0 0
  %272 = vmatprep.mubr.bf16.mxu0 0
  %273 = vmatmul.mubr.bf16.gmra.mrb[0].mxu0 %v124
  %v274 = vpop.f32.mrb[0].mxu0
  %v275 = vadd.f32 %v38, %v274
  %v276 = vpop.f32.mrb[0].mxu0
  %v277 = vadd.f32 %v38, %v276
  %v278 = vpop.f32.mrb[0].mxu0
  %v279 = vadd.f32 %v43, %v278
  %v280 = vpop.f32.mrb[0].mxu0
  %v281 = vadd.f32 %v43, %v280
  %282 = vdwg.mxu0
  %283 = vmatprep.subr.bf16.mxu0 %v105
  %284 = vmatpush1.bf16.msra.mxu0 %v104
  %285 = vmatprep.subr.bf16.mxu0 %v152
  %286 = vmatpush1.bf16.msra.mxu0 %v149
  %287 = vmatprep.subr.bf16.mxu0 0
  %288 = vmatpush1.bf16.msra.mxu0 0
  %289 = vmatprep.subr.bf16.mxu0 0
  %290 = vmatpush1.bf16.msra.mxu0 0
  %291 = vmatprep.subr.bf16.mxu0 0
  %292 = vmatpush1.bf16.msra.mxu0 0
  %293 = vmatprep.subr.bf16.mxu0 0
  %294 = vmatpush1.bf16.msra.mxu0 0
  %295 = vmatprep.subr.bf16.mxu0 0
  %296 = vmatpush1.bf16.msra.mxu0 0
  %297 = vmatprep.subr.bf16.mxu0 0
  %298 = vmatpush1.bf16.msra.mxu0 0
  %299 = vmatprep.subr.bf16.mxu0 0
  %300 = vmatpush1.bf16.msra.mxu0 0
  %301 = vmatprep.subr.bf16.mxu0 0
  %302 = vmatpush1.bf16.msra.mxu0 0
  %303 = vmatprep.subr.bf16.mxu0 0
  %304 = vmatpush1.bf16.msra.mxu0 0
  %305 = vmatprep.subr.bf16.mxu0 0
  %306 = vmatpush1.bf16.msra.mxu0 0
  %307 = vmatprep.subr.bf16.mxu0 0
  %308 = vmatpush1.bf16.msra.mxu0 0
  %309 = vmatprep.subr.bf16.mxu0 0
  %310 = vmatpush1.bf16.msra.mxu0 0
  %311 = vmatprep.subr.bf16.mxu0 0
  %312 = vmatpush1.bf16.msra.mxu0 0
  %313 = vmatprep.subr.bf16.mxu0 0
  %314 = vmatpush1.bf16.msra.mxu0 0
  %315 = vmatprep.mubr.bf16.mxu0 0
  %316 = vmatmul.mubr.bf16.gmra.mrb[0].mxu0 %v124
  %v317 = vpop.f32.mrb[0].mxu0
  %v318 = vadd.f32 %v38, %v317
  %v319 = vpop.f32.mrb[0].mxu0
  %v320 = vadd.f32 %v38, %v319
  %v321 = vpop.f32.mrb[0].mxu0
  %v322 = vadd.f32 %v43, %v321
  %v323 = vpop.f32.mrb[0].mxu0
  %v324 = vadd.f32 %v43, %v323
  %325 = vdwg.mxu0
  %326 = vst [vmem:[%s3] sm:$0xff] %v189
  %327 = vst [vmem:[%s3 + $0x8] sm:$0xff] %v191
  %328 = vst [vmem:[%s3 + $0x10] sm:$0xff] %v232
  %329 = vst [vmem:[%s3 + $0x18] sm:$0xff] %v234
  %330 = vst [vmem:[%s3 + $0x20] sm:$0xff] %v275
  %331 = vst [vmem:[%s3 + $0x28] sm:$0xff] %v277
  %332 = vst [vmem:[%s3 + $0x30] sm:$0xff] %v318
  %vm333 = vcmask 277504
  %334 = vst.msk [vmem:[%s3 + $0x38] sm:$0xff] %vm333, %v320
  %335 = vst [vmem:[%s3 + $0x40] sm:$0xff] %v193
  %336 = vst [vmem:[%s3 + $0x48] sm:$0xff] %v195
  %337 = vst [vmem:[%s3 + $0x50] sm:$0xff] %v236
  %338 = vst [vmem:[%s3 + $0x58] sm:$0xff] %v238
  %339 = vst [vmem:[%s3 + $0x60] sm:$0xff] %v279
  %340 = vst [vmem:[%s3 + $0x68] sm:$0xff] %v281
  %341 = vst [vmem:[%s3 + $0x70] sm:$0xff] %v322
  %342 = vst.msk [vmem:[%s3 + $0x78] sm:$0xff] %vm333, %v324
  // Predicated region
  $region14: #{forward.5} parent=0 // pred_check
    _
  $region15: #{forward.5} parent=0 // pred_check_branch
    %344 = sbr.rel (0) target = $region17
  $region16: #{forward.5} parent=0 // pred_region
    _
  $region17: #{forward.5} parent=0 // pred_fallthru
    _
  // Predicated region
  $region18: #{forward.5} parent=0 // pred_check
    _
  $region19: #{forward.5} parent=0 // pred_check_branch
    %346 = sbr.rel (0) target = $region21
  $region20: #{forward.5} parent=0 // pred_region
    _
  $region21: #{forward.5} parent=0 // pred_fallthru
    _

// kernel: forward.6
$region0: #{forward.6}
  #allocation0 [shape = 'u32[]', space=smem, size = 0x4, offset = 0x4, fixed_abs, tag = 'smem constant byte address 0x4 - core index']
  #allocation1 [shape = 'u32[144,128]{1,0:T(1,128)}', space=vmem, size = 0x12000, scoped, tag = 'internal scratch']
  %s0 = inlined_call_operand.vmem [shape: bf16[400,168], index: 0, kind: input, shape index: {}]
  %s1 = inlined_call_operand.vmem [shape: bf16[16,400], index: 1, kind: input, shape index: {}]
  %s2 = inlined_call_operand.vmem [shape: f32[16,1], index: 2, kind: input, shape index: {}]
  %s3 = inlined_call_operand.vmem [shape: f32[16,168], index: 3, kind: output, shape index: {}]
  %s4 = sld [smem:[#allocation0]]
  $region22: #{forward.6} parent=0
    _
  %s6 = ssub.s32 1, %s4
  %s7 = scalar_select 0, %s6, %s4
  // Predicated region
  $region2: #{forward.6} parent=0 // pred_check
    _
  $region3: #{forward.6} parent=0 // pred_check_branch
    %9 = sbr.rel (0) target = $region5
  $region4: #{forward.6} parent=0 // pred_region
    _
  $region5: #{forward.6} parent=0 // pred_fallthru
    _
  // Predicated region
  $region6: #{forward.6} parent=0 // pred_check
    _
  $region7: #{forward.6} parent=0 // pred_check_branch
    %11 = sbr.rel (0) target = $region9
  $region8: #{forward.6} parent=0 // pred_region
    _
  $region9: #{forward.6} parent=0 // pred_fallthru
    _
  // Predicated region
  $region10: #{forward.6} parent=0 // pred_check
    _
  $region11: #{forward.6} parent=0 // pred_check_branch
    %13 = sbr.rel (0) target = $region13
  $region12: #{forward.6} parent=0 // pred_region
    _
  $region13: #{forward.6} parent=0 // pred_fallthru
    _
  %v15 = vld [vmem:[%s1] sm:$0xff]
  %v16 = vld [vmem:[%s1 + $0x8] sm:$0xff]
  %v17 = vld [vmem:[%s1 + $0x10] sm:$0xff]
  %v18 = vld [vmem:[%s1 + $0x18] sm:$0xff]
  %v19 = vld [vmem:[%s0] sm:$0xff]
  %v20 = vld [vmem:[%s0 + $0x8] sm:$0xff]
  %v21 = vld [vmem:[%s0 + $0x10] sm:$0xff]
  %v22 = vld [vmem:[%s0 + $0x18] sm:$0xff]
  %v23 = vld [vmem:[%s0 + $0x20] sm:$0xff]
  %v24 = vld [vmem:[%s0 + $0x28] sm:$0xff]
  %v25 = vld [vmem:[%s0 + $0x30] sm:$0xff]
  %v26 = vld [vmem:[%s0 + $0x38] sm:$0xff]
  %v27 = vld [vmem:[%s0 + $0x40] sm:$0xff]
  %v28 = vld [vmem:[%s0 + $0x48] sm:$0xff]
  %v29 = vld [vmem:[%s0 + $0x50] sm:$0xff]
  %v30 = vld [vmem:[%s0 + $0x58] sm:$0xff]
  %v31 = vld [vmem:[%s0 + $0x60] sm:$0xff]
  %v32 = vld [vmem:[%s0 + $0x68] sm:$0xff]
  %v33 = vld [vmem:[%s0 + $0x70] sm:$0xff]
  %v34 = vld [vmem:[%s0 + $0x78] sm:$0xff]
  %v35 = vld [vmem:[%s0 + $0x80] sm:$0xff]
  %v36 = vld [vmem:[%s0 + $0x88] sm:$0xff]
  %v37 = vld [vmem:[%s0 + $0x90] sm:$0xff]
  %v38 = vld [vmem:[%s0 + $0x98] sm:$0xff]
  %v39 = vld [vmem:[%s0 + $0xa0] sm:$0xff]
  %v40 = vld [vmem:[%s0 + $0xa8] sm:$0xff]
  %v41 = vld [vmem:[%s0 + $0xb0] sm:$0xff]
  %v42 = vld [vmem:[%s0 + $0xb8] sm:$0xff]
  %v43 = vld [vmem:[%s0 + $0xc0] sm:$0xff]
  %v44 = vld [vmem:[%s0 + $0xc8] sm:$0xff]
  %v45 = vld [vmem:[%s0 + $0xd0] sm:$0xff]
  %v46 = vld [vmem:[%s0 + $0xd8] sm:$0xff]
  %v47 = vld [vmem:[%s0 + $0xe0] sm:$0xff]
  %v48 = vld [vmem:[%s0 + $0xe8] sm:$0xff]
  %v49 = vld [vmem:[%s0 + $0xf0] sm:$0xff]
  %v50 = vld [vmem:[%s0 + $0xf8] sm:$0xff]
  %v51 = vld [vmem:[%s0 + $0x100] sm:$0xff]
  %v52 = vld [vmem:[%s0 + $0x108] sm:$0xff]
  %v53 = vld [vmem:[%s0 + $0x110] sm:$0xff]
  %v54 = vld [vmem:[%s0 + $0x118] sm:$0xff]
  %v55 = vld [vmem:[%s0 + $0x120] sm:$0xff]
  %v56 = vld [vmem:[%s0 + $0x128] sm:$0xff]
  %v57 = vld [vmem:[%s0 + $0x130] sm:$0xff]
  %v58 = vld [vmem:[%s0 + $0x138] sm:$0xff]
  %v59 = vld [vmem:[%s0 + $0x140] sm:$0xff]
  %v60 = vld [vmem:[%s0 + $0x148] sm:$0xff]
  %v61 = vld [vmem:[%s0 + $0x150] sm:$0xff]
  %v62 = vld [vmem:[%s0 + $0x158] sm:$0xff]
  %v63 = vld [vmem:[%s0 + $0x160] sm:$0xff]
  %v64 = vld [vmem:[%s0 + $0x168] sm:$0xff]
  %v65 = vld [vmem:[%s0 + $0x170] sm:$0xff]
  %v66 = vld [vmem:[%s0 + $0x178] sm:$0xff]
  %v67 = vld [vmem:[%s0 + $0x180] sm:$0xff]
  %v68 = vld [vmem:[%s0 + $0x188] sm:$0xff]
  %v69 = vld [vmem:[%s2] sm:$0xff]
  %v70 = vld [vmem:[%s2 + $0x8] sm:$0xff]
  %72 = vset.pattern.permute.xlu0 0
  %73 = vperm.xlu0 %72, %v69
  %v74 = vpop.permute.xlu0 %73
  %77 = vset.pattern.permute.xlu0 0
  %78 = vperm.xlu0 %77, %v70
  %v79 = vpop.permute.xlu0 %78
  %v85 = vunpack.c.l.b16 %v15
  %v86 = vunpack.c.h.b16 %v15
  %v87 = vunpack.c.l.b16 %v16
  %v88 = vunpack.c.h.b16 %v16
  %v89 = vunpack.c.l.b16 %v17
  %v90 = vunpack.c.h.b16 %v17
  %v91 = vunpack.c.l.b16 %v18
  %v92 = vunpack.c.h.b16 %v18
  %v93 = vpack.c.b16 %v89, %v85
  %v94 = vpack.c.b16 %v90, %v86
  %v95 = vpack.c.b16 %v91, %v87
  %v96 = vpack.c.b16 %v92, %v88
  %v150 = vunpack.c.l.b16 %v19
  %v151 = vunpack.c.h.b16 %v19
  %v152 = vunpack.c.l.b16 %v20
  %v153 = vunpack.c.h.b16 %v20
  %v154 = vunpack.c.l.b16 %v21
  %v155 = vunpack.c.h.b16 %v21
  %v156 = vunpack.c.l.b16 %v22
  %v157 = vunpack.c.h.b16 %v22
  %v158 = vunpack.c.l.b16 %v23
  %v159 = vunpack.c.h.b16 %v23
  %v160 = vunpack.c.l.b16 %v24
  %v161 = vunpack.c.h.b16 %v24
  %v162 = vunpack.c.l.b16 %v25
  %v163 = vunpack.c.h.b16 %v25
  %v164 = vunpack.c.l.b16 %v26
  %v165 = vunpack.c.h.b16 %v26
  %v166 = vunpack.c.l.b16 %v27
  %v167 = vunpack.c.h.b16 %v27
  %v168 = vunpack.c.l.b16 %v28
  %v169 = vunpack.c.h.b16 %v28
  %v170 = vunpack.c.l.b16 %v29
  %v171 = vunpack.c.h.b16 %v29
  %v172 = vunpack.c.l.b16 %v30
  %v173 = vunpack.c.h.b16 %v30
  %v174 = vunpack.c.l.b16 %v31
  %v175 = vunpack.c.h.b16 %v31
  %v176 = vunpack.c.l.b16 %v32
  %v177 = vunpack.c.h.b16 %v32
  %v178 = vunpack.c.l.b16 %v33
  %v179 = vunpack.c.h.b16 %v33
  %v180 = vunpack.c.l.b16 %v34
  %v181 = vunpack.c.h.b16 %v34
  %v182 = vunpack.c.l.b16 %v35
  %v183 = vunpack.c.h.b16 %v35
  %v184 = vunpack.c.l.b16 %v36
  %v185 = vunpack.c.h.b16 %v36
  %v186 = vunpack.c.l.b16 %v37
  %v187 = vunpack.c.h.b16 %v37
  %v188 = vunpack.c.l.b16 %v38
  %v189 = vunpack.c.h.b16 %v38
  %v190 = vunpack.c.l.b16 %v39
  %v191 = vunpack.c.h.b16 %v39
  %v192 = vunpack.c.l.b16 %v40
  %v193 = vunpack.c.h.b16 %v40
  %v194 = vunpack.c.l.b16 %v41
  %v195 = vunpack.c.h.b16 %v41
  %v196 = vunpack.c.l.b16 %v42
  %v197 = vunpack.c.h.b16 %v42
  %v198 = vunpack.c.l.b16 %v43
  %v199 = vunpack.c.h.b16 %v43
  %v200 = vunpack.c.l.b16 %v44
  %v201 = vunpack.c.h.b16 %v44
  %v202 = vunpack.c.l.b16 %v45
  %v203 = vunpack.c.h.b16 %v45
  %v204 = vunpack.c.l.b16 %v46
  %v205 = vunpack.c.h.b16 %v46
  %v206 = vunpack.c.l.b16 %v47
  %v207 = vunpack.c.h.b16 %v47
  %v208 = vunpack.c.l.b16 %v48
  %v209 = vunpack.c.h.b16 %v48
  %v210 = vunpack.c.l.b16 %v49
  %v211 = vunpack.c.h.b16 %v49
  %v212 = vunpack.c.l.b16 %v50
  %v213 = vunpack.c.h.b16 %v50
  %v214 = vunpack.c.l.b16 %v51
  %v215 = vunpack.c.h.b16 %v51
  %v216 = vunpack.c.l.b16 %v52
  %v217 = vunpack.c.h.b16 %v52
  %v218 = vunpack.c.l.b16 %v53
  %v219 = vunpack.c.h.b16 %v53
  %v220 = vunpack.c.l.b16 %v54
  %v221 = vunpack.c.h.b16 %v54
  %v222 = vunpack.c.l.b16 %v55
  %v223 = vunpack.c.h.b16 %v55
  %v224 = vunpack.c.l.b16 %v56
  %v225 = vunpack.c.h.b16 %v56
  %v226 = vunpack.c.l.b16 %v57
  %v227 = vunpack.c.h.b16 %v57
  %v228 = vunpack.c.l.b16 %v58
  %v229 = vunpack.c.h.b16 %v58
  %v230 = vunpack.c.l.b16 %v59
  %v231 = vunpack.c.h.b16 %v59
  %v232 = vunpack.c.l.b16 %v60
  %v233 = vunpack.c.h.b16 %v60
  %v234 = vunpack.c.l.b16 %v61
  %v235 = vunpack.c.h.b16 %v61
  %v236 = vunpack.c.l.b16 %v62
  %v237 = vunpack.c.h.b16 %v62
  %v238 = vunpack.c.l.b16 %v63
  %v239 = vunpack.c.h.b16 %v63
  %v240 = vunpack.c.l.b16 %v64
  %v241 = vunpack.c.h.b16 %v64
  %v242 = vunpack.c.l.b16 %v65
  %v243 = vunpack.c.h.b16 %v65
  %v244 = vunpack.c.l.b16 %v66
  %v245 = vunpack.c.h.b16 %v66
  %v246 = vunpack.c.l.b16 %v67
  %v247 = vunpack.c.h.b16 %v67
  %v248 = vunpack.c.l.b16 %v68
  %v249 = vunpack.c.h.b16 %v68
  %v250 = vpack.c.b16 %v152, %v150
  %v251 = vpack.c.b16 %v153, %v151
  %v252 = vpack.c.b16 %v156, %v154
  %v253 = vpack.c.b16 %v157, %v155
  %v254 = vpack.c.b16 %v160, %v158
  %v255 = vpack.c.b16 %v161, %v159
  %v256 = vpack.c.b16 %v164, %v162
  %v257 = vpack.c.b16 %v165, %v163
  %v258 = vpack.c.b16 %v168, %v166
  %v259 = vpack.c.b16 %v169, %v167
  %v260 = vpack.c.b16 %v172, %v170
  %v261 = vpack.c.b16 %v173, %v171
  %v262 = vpack.c.b16 %v176, %v174
  %v263 = vpack.c.b16 %v177, %v175
  %v264 = vpack.c.b16 %v180, %v178
  %v265 = vpack.c.b16 %v181, %v179
  %v266 = vpack.c.b16 %v184, %v182
  %v267 = vpack.c.b16 %v185, %v183
  %v268 = vpack.c.b16 %v188, %v186
  %v269 = vpack.c.b16 %v189, %v187
  %v270 = vpack.c.b16 %v192, %v190
  %v271 = vpack.c.b16 %v193, %v191
  %v272 = vpack.c.b16 %v196, %v194
  %v273 = vpack.c.b16 %v197, %v195
  %v274 = vpack.c.b16 %v200, %v198
  %v275 = vpack.c.b16 %v201, %v199
  %v276 = vpack.c.b16 %v204, %v202
  %v277 = vpack.c.b16 %v205, %v203
  %v278 = vpack.c.b16 %v208, %v206
  %v279 = vpack.c.b16 %v209, %v207
  %v280 = vpack.c.b16 %v212, %v210
  %v281 = vpack.c.b16 %v213, %v211
  %v282 = vpack.c.b16 %v216, %v214
  %v283 = vpack.c.b16 %v217, %v215
  %v284 = vpack.c.b16 %v220, %v218
  %v285 = vpack.c.b16 %v221, %v219
  %v286 = vpack.c.b16 %v224, %v222
  %v287 = vpack.c.b16 %v225, %v223
  %v288 = vpack.c.b16 %v228, %v226
  %v289 = vpack.c.b16 %v229, %v227
  %v290 = vpack.c.b16 %v232, %v230
  %v291 = vpack.c.b16 %v233, %v231
  %v292 = vpack.c.b16 %v236, %v234
  %v293 = vpack.c.b16 %v237, %v235
  %v294 = vpack.c.b16 %v240, %v238
  %v295 = vpack.c.b16 %v241, %v239
  %v296 = vpack.c.b16 %v244, %v242
  %v297 = vpack.c.b16 %v245, %v243
  %v298 = vpack.c.b16 %v248, %v246
  %v299 = vpack.c.b16 %v249, %v247
  %vm350 = vcmask 130048
  %v352 = vsel %vm350, %v96, 0
  %354 = vmatprep.subr.bf16.mxu0 %v251
  %355 = vmatpush1.bf16.msra.mxu0 %v250
  %356 = vmatprep.subr.bf16.mxu0 %v253
  %357 = vmatpush1.bf16.msra.mxu0 %v252
  %358 = vmatprep.subr.bf16.mxu0 %v255
  %359 = vmatpush1.bf16.msra.mxu0 %v254
  %360 = vmatprep.subr.bf16.mxu0 %v257
  %361 = vmatpush1.bf16.msra.mxu0 %v256
  %362 = vmatprep.subr.bf16.mxu0 %v259
  %363 = vmatpush1.bf16.msra.mxu0 %v258
  %364 = vmatprep.subr.bf16.mxu0 %v261
  %365 = vmatpush1.bf16.msra.mxu0 %v260
  %366 = vmatprep.subr.bf16.mxu0 %v263
  %367 = vmatpush1.bf16.msra.mxu0 %v262
  %368 = vmatprep.subr.bf16.mxu0 %v265
  %369 = vmatpush1.bf16.msra.mxu0 %v264
  %370 = vmatprep.subr.bf16.mxu0 %v267
  %371 = vmatpush1.bf16.msra.mxu0 %v266
  %372 = vmatprep.subr.bf16.mxu0 %v269
  %373 = vmatpush1.bf16.msra.mxu0 %v268
  %374 = vmatprep.subr.bf16.mxu0 %v271
  %375 = vmatpush1.bf16.msra.mxu0 %v270
  %376 = vmatprep.subr.bf16.mxu0 %v273
  %377 = vmatpush1.bf16.msra.mxu0 %v272
  %378 = vmatprep.subr.bf16.mxu0 %v275
  %379 = vmatpush1.bf16.msra.mxu0 %v274
  %380 = vmatprep.subr.bf16.mxu0 %v277
  %381 = vmatpush1.bf16.msra.mxu0 %v276
  %382 = vmatprep.subr.bf16.mxu0 %v279
  %383 = vmatpush1.bf16.msra.mxu0 %v278
  %384 = vmatprep.subr.bf16.mxu0 %v281
  %385 = vmatpush1.bf16.msra.mxu0 %v280
  %386 = vmatprep.mubr.bf16.mxu0 %v94
  %387 = vmatmul.mubr.bf16.gmra.mrb[0].mxu0 %v93
  %v388 = vpop.f32.mrb[0].mxu0
  %v389 = vadd.f32 %v74, %v388
  %v390 = vpop.f32.mrb[0].mxu0
  %v391 = vadd.f32 %v74, %v390
  %v392 = vpop.f32.mrb[0].mxu0
  %v393 = vadd.f32 %v79, %v392
  %v394 = vpop.f32.mrb[0].mxu0
  %v395 = vadd.f32 %v79, %v394
  %396 = vdwg.mxu0
  %397 = vmatprep.subr.bf16.mxu0 %v283
  %398 = vmatpush1.bf16.msra.mxu0 %v282
  %399 = vmatprep.subr.bf16.mxu0 %v285
  %400 = vmatpush1.bf16.msra.mxu0 %v284
  %401 = vmatprep.subr.bf16.mxu0 %v287
  %402 = vmatpush1.bf16.msra.mxu0 %v286
  %403 = vmatprep.subr.bf16.mxu0 %v289
  %404 = vmatpush1.bf16.msra.mxu0 %v288
  %405 = vmatprep.subr.bf16.mxu0 %v291
  %406 = vmatpush1.bf16.msra.mxu0 %v290
  %407 = vmatprep.subr.bf16.mxu0 %v293
  %408 = vmatpush1.bf16.msra.mxu0 %v292
  %409 = vmatprep.subr.bf16.mxu0 %v295
  %410 = vmatpush1.bf16.msra.mxu0 %v294
  %411 = vmatprep.subr.bf16.mxu0 %v297
  %412 = vmatpush1.bf16.msra.mxu0 %v296
  %413 = vmatprep.subr.bf16.mxu0 %v299
  %414 = vmatpush1.bf16.msra.mxu0 %v298
  %415 = vmatprep.subr.bf16.mxu0 0
  %416 = vmatpush1.bf16.msra.mxu0 0
  %417 = vmatprep.subr.bf16.mxu0 0
  %418 = vmatpush1.bf16.msra.mxu0 0
  %419 = vmatprep.subr.bf16.mxu0 0
  %420 = vmatpush1.bf16.msra.mxu0 0
  %421 = vmatprep.subr.bf16.mxu0 0
  %422 = vmatpush1.bf16.msra.mxu0 0
  %423 = vmatprep.subr.bf16.mxu0 0
  %424 = vmatpush1.bf16.msra.mxu0 0
  %425 = vmatprep.subr.bf16.mxu0 0
  %426 = vmatpush1.bf16.msra.mxu0 0
  %427 = vmatprep.subr.bf16.mxu0 0
  %428 = vmatpush1.bf16.msra.mxu0 0
  %429 = vmatprep.mubr.bf16.mxu0 %v352
  %430 = vmatmul.mubr.bf16.gmra.mrb[0].mxu0 %v95
  %v431 = vpop.f32.mrb[0].mxu0
  %v432 = vadd.f32 %v389, %v431
  %v433 = vpop.f32.mrb[0].mxu0
  %v434 = vadd.f32 %v391, %v433
  %v435 = vpop.f32.mrb[0].mxu0
  %v436 = vadd.f32 %v393, %v435
  %v437 = vpop.f32.mrb[0].mxu0
  %v438 = vadd.f32 %v395, %v437
  %439 = vdwg.mxu0
  %440 = vst [vmem:[%s3] sm:$0xff] %v432
  %vm441 = vcmask 326656
  %442 = vst.msk [vmem:[%s3 + $0x8] sm:$0xff] %vm441, %v434
  %443 = vst [vmem:[%s3 + $0x10] sm:$0xff] %v436
  %444 = vst.msk [vmem:[%s3 + $0x18] sm:$0xff] %vm441, %v438
  // Predicated region
  $region14: #{forward.6} parent=0 // pred_check
    _
  $region15: #{forward.6} parent=0 // pred_check_branch
    %446 = sbr.rel (0) target = $region17
  $region16: #{forward.6} parent=0 // pred_region
    _
  $region17: #{forward.6} parent=0 // pred_fallthru
    _
  // Predicated region
  $region18: #{forward.6} parent=0 // pred_check
    _
  $region19: #{forward.6} parent=0 // pred_check_branch
    %448 = sbr.rel (0) target = $region21
  $region20: #{forward.6} parent=0 // pred_region
    _
  $region21: #{forward.6} parent=0 // pred_fallthru
    _

// kernel: forward.7
$region0: #{forward.7}
  #allocation0 [shape = 'u32[]', space=smem, size = 0x4, offset = 0x4, fixed_abs, tag = 'smem constant byte address 0x4 - core index']
  #allocation1 [shape = 'u32[144,128]{1,0:T(1,128)}', space=vmem, size = 0x12000, scoped, tag = 'internal scratch']
  #allocation2 [shape = 'f32[1,1]{1,0:T(1,128)S(1)}', space=vmem, size = 0x200, scoped, tag = 'scoped memory for forward.7']
  %s0 = inlined_call_operand.vmem [shape: bf16[400,24], index: 0, kind: input, shape index: {}]
  %s1 = inlined_call_operand.vmem [shape: bf16[1,400], index: 1, kind: input, shape index: {}]
  %s2 = inlined_call_operand.<no memory space> [shape: f32[1,1], index: 2, kind: input, shape index: {}]
  %s3 = inlined_call_operand.vmem [shape: bf16[12,64], index: 3, kind: input, shape index: {}]
  %s4 = inlined_call_operand.vmem [shape: f32[1,64], index: 4, kind: input, shape index: {}]
  %s5 = inlined_call_operand.vmem [shape: bf16[64,32], index: 5, kind: input, shape index: {}]
  %s6 = inlined_call_operand.vmem [shape: f32[1,32], index: 6, kind: input, shape index: {}]
  %s7 = inlined_call_operand.vmem [shape: bf16[32,4], index: 7, kind: input, shape index: {}]
  %s8 = inlined_call_operand.vmem [shape: f32[1,4], index: 8, kind: input, shape index: {}]
  %s9 = inlined_call_operand.hbm [shape: f32[2,4], index: 9, kind: output, shape index: {}]
  %s10 = sld [smem:[#allocation0]]
  $region46: #{forward.7} parent=0
    _
  %s12 = ssub.s32 1, %s10
  %s13 = scalar_select 0, %s12, %s10
  %v14 = vstv %s2
  %15 = vst [vmem:[#allocation2] sm:$0x1] %v14
  $region1: #{forward.7} parent=0
    #allocation3 [shape = 'u8[1024]{0}', space=vmem, size = 0x400, scoped, tag = 'output window, operand 0, single buffered']
    #allocation4 [shape = 's32[1]{0}', space=sflag, size = 0x4, scoped, tag = 'scoped memory for forward.7']
    %16 = vsyncpa [#allocation4], 0
    // Predicated region
    $region2: #{forward.7} parent=1 // pred_check
      _
    $region3: #{forward.7} parent=1 // pred_check_branch
      %18 = sbr.rel (0) target = $region5
    $region4: #{forward.7} parent=1 // pred_region
      _
    $region5: #{forward.7} parent=1 // pred_fallthru
      _
    // Predicated region
    $region6: #{forward.7} parent=1 // pred_check
      _
    $region7: #{forward.7} parent=1 // pred_check_branch
      %20 = sbr.rel (0) target = $region9
    $region8: #{forward.7} parent=1 // pred_region
      _
    $region9: #{forward.7} parent=1 // pred_fallthru
      _
    // Predicated region
    $region10: #{forward.7} parent=1 // pred_check
      _
    $region11: #{forward.7} parent=1 // pred_check_branch
      %22 = sbr.rel (0) target = $region13
    $region12: #{forward.7} parent=1 // pred_region
      _
    $region13: #{forward.7} parent=1 // pred_fallthru
      _
    // Predicated region
    $region14: #{forward.7} parent=1 // pred_check
      _
    $region15: #{forward.7} parent=1 // pred_check_branch
      %24 = sbr.rel (0) target = $region17
    $region16: #{forward.7} parent=1 // pred_region
      _
    $region17: #{forward.7} parent=1 // pred_fallthru
      _
    // Predicated region
    $region18: #{forward.7} parent=1 // pred_check
      _
    $region19: #{forward.7} parent=1 // pred_check_branch
      %26 = sbr.rel (0) target = $region21
    $region20: #{forward.7} parent=1 // pred_region
      _
    $region21: #{forward.7} parent=1 // pred_fallthru
      _
    // Predicated region
    $region22: #{forward.7} parent=1 // pred_check
      _
    $region23: #{forward.7} parent=1 // pred_check_branch
      %28 = sbr.rel (0) target = $region25
    $region24: #{forward.7} parent=1 // pred_region
      _
    $region25: #{forward.7} parent=1 // pred_fallthru
      _
    // Predicated region
    $region26: #{forward.7} parent=1 // pred_check
      _
    $region27: #{forward.7} parent=1 // pred_check_branch
      %30 = sbr.rel (0) target = $region29
    $region28: #{forward.7} parent=1 // pred_region
      _
    $region29: #{forward.7} parent=1 // pred_fallthru
      _
    // Predicated region
    $region30: #{forward.7} parent=1 // pred_check
      _
    $region31: #{forward.7} parent=1 // pred_check_branch
      %32 = sbr.rel (0) target = $region33
    $region32: #{forward.7} parent=1 // pred_region
      _
    $region33: #{forward.7} parent=1 // pred_fallthru
      _
    // Predicated region
    $region34: #{forward.7} parent=1 // pred_check
      _
    $region35: #{forward.7} parent=1 // pred_check_branch
      %34 = sbr.rel (0) target = $region37
    $region36: #{forward.7} parent=1 // pred_region
      _
    $region37: #{forward.7} parent=1 // pred_fallthru
      _
    %v36 = vld [vmem:[%s1] sm:$0xf]
    %v37 = vld [vmem:[%s0] sm:$0xf]
    %v38 = vld [vmem:[%s0 + $0x4] sm:$0xf]
    %v39 = vld [vmem:[%s0 + $0x8] sm:$0xf]
    %v40 = vld [vmem:[%s0 + $0xc] sm:$0xf]
    %v41 = vld [vmem:[%s0 + $0x10] sm:$0xf]
    %v42 = vld [vmem:[%s0 + $0x14] sm:$0xf]
    %v43 = vld [vmem:[%s0 + $0x18] sm:$0xf]
    %v44 = vld [vmem:[%s0 + $0x1c] sm:$0xf]
    %v45 = vld [vmem:[%s0 + $0x20] sm:$0xf]
    %v46 = vld [vmem:[%s0 + $0x24] sm:$0xf]
    %v47 = vld [vmem:[%s0 + $0x28] sm:$0xf]
    %v48 = vld [vmem:[%s0 + $0x2c] sm:$0xf]
    %v49 = vld [vmem:[%s0 + $0x30] sm:$0xf]
    %v50 = vld [vmem:[%s0 + $0x34] sm:$0xf]
    %v51 = vld [vmem:[%s0 + $0x38] sm:$0xf]
    %v52 = vld [vmem:[%s0 + $0x3c] sm:$0xf]
    %v53 = vld [vmem:[%s0 + $0x40] sm:$0xf]
    %v54 = vld [vmem:[%s0 + $0x44] sm:$0xf]
    %v55 = vld [vmem:[%s0 + $0x48] sm:$0xf]
    %v56 = vld [vmem:[%s0 + $0x4c] sm:$0xf]
    %v57 = vld [vmem:[%s0 + $0x50] sm:$0xf]
    %v58 = vld [vmem:[%s0 + $0x54] sm:$0xf]
    %v59 = vld [vmem:[%s0 + $0x58] sm:$0xf]
    %v60 = vld [vmem:[%s0 + $0x5c] sm:$0xf]
    %v61 = vld [vmem:[%s0 + $0x60] sm:$0xf]
    %v62 = vld [vmem:[%s0 + $0x64] sm:$0xf]
    %v63 = vld [vmem:[%s0 + $0x68] sm:$0xf]
    %v64 = vld [vmem:[%s0 + $0x6c] sm:$0xf]
    %v65 = vld [vmem:[%s0 + $0x70] sm:$0xf]
    %v66 = vld [vmem:[%s0 + $0x74] sm:$0xf]
    %v67 = vld [vmem:[%s0 + $0x78] sm:$0xf]
    %v68 = vld [vmem:[%s0 + $0x7c] sm:$0xf]
    %v69 = vld [vmem:[%s0 + $0x80] sm:$0xf]
    %v70 = vld [vmem:[%s0 + $0x84] sm:$0xf]
    %v71 = vld [vmem:[%s0 + $0x88] sm:$0xf]
    %v72 = vld [vmem:[%s0 + $0x8c] sm:$0xf]
    %v73 = vld [vmem:[%s0 + $0x90] sm:$0xf]
    %v74 = vld [vmem:[%s0 + $0x94] sm:$0xf]
    %v75 = vld [vmem:[%s0 + $0x98] sm:$0xf]
    %v76 = vld [vmem:[%s0 + $0x9c] sm:$0xf]
    %v77 = vld [vmem:[%s0 + $0xa0] sm:$0xf]
    %v78 = vld [vmem:[%s0 + $0xa4] sm:$0xf]
    %v79 = vld [vmem:[%s0 + $0xa8] sm:$0xf]
    %v80 = vld [vmem:[%s0 + $0xac] sm:$0xf]
    %v81 = vld [vmem:[%s0 + $0xb0] sm:$0xf]
    %v82 = vld [vmem:[%s0 + $0xb4] sm:$0xf]
    %v83 = vld [vmem:[%s0 + $0xb8] sm:$0xf]
    %v84 = vld [vmem:[%s0 + $0xbc] sm:$0xf]
    %v85 = vld [vmem:[%s0 + $0xc0] sm:$0xf]
    %v86 = vld [vmem:[%s0 + $0xc4] sm:$0xf]
    %v87 = vld [vmem:[#allocation2] sm:$0x1]
    %89 = vset.pattern.permute.xlu0 0
    %90 = vperm.xlu0 %89, %v87
    %v91 = vpop.permute.xlu0 %90
    %v93 = vlaneseq
    %v94 = vshrl.u32 %v93, 7
    %v95 = vsub.s32 0, %v94
    %v96 = vrot.slane %v91, %v95
    %v99 = vunpack.c.l.s4 1966171168
    %v100 = vunpack.c.0.s8 %v99
    %v101 = vlaneseq
    %v102 = vshrl.u32 %v101, 7
    %v103 = vsub.s32 %v100, %v102
    %v104 = vrot.slane %v36, %v103
    %v105 = vcombine.high %v104, %v104
    %v107 = vunpack.c.l.s4 1966171168
    %v108 = vunpack.c.0.s8 %v107
    %v109 = vlaneseq
    %v110 = vshrl.u32 %v109, 7
    %v111 = vsub.s32 %v108, %v110
    %v112 = vrot.slane %v104, %v111
    %v114 = vunpack.c.l.s4 1966171168
    %v115 = vunpack.c.0.s8 %v114
    %v116 = vlaneseq
    %v117 = vshrl.u32 %v116, 7
    %v118 = vsub.s32 %v115, %v117
    %v119 = vrot.slane %v105, %v118
    %v120 = vcombine.high %v112, %v112
    %v121 = vcombine.high %v119, %v119
    %v175 = vunpack.c.l.b16 %v37
    %v176 = vunpack.c.l.b16 %v38
    %v177 = vunpack.c.l.b16 %v39
    %v178 = vunpack.c.l.b16 %v40
    %v179 = vunpack.c.l.b16 %v41
    %v180 = vunpack.c.l.b16 %v42
    %v181 = vunpack.c.l.b16 %v43
    %v182 = vunpack.c.l.b16 %v44
    %v183 = vunpack.c.l.b16 %v45
    %v184 = vunpack.c.l.b16 %v46
    %v185 = vunpack.c.l.b16 %v47
    %v186 = vunpack.c.l.b16 %v48
    %v187 = vunpack.c.l.b16 %v49
    %v188 = vunpack.c.l.b16 %v50
    %v189 = vunpack.c.l.b16 %v51
    %v190 = vunpack.c.l.b16 %v52
    %v191 = vunpack.c.l.b16 %v53
    %v192 = vunpack.c.l.b16 %v54
    %v193 = vunpack.c.l.b16 %v55
    %v194 = vunpack.c.l.b16 %v56
    %v195 = vunpack.c.l.b16 %v57
    %v196 = vunpack.c.l.b16 %v58
    %v197 = vunpack.c.l.b16 %v59
    %v198 = vunpack.c.l.b16 %v60
    %v199 = vunpack.c.l.b16 %v61
    %v200 = vunpack.c.l.b16 %v62
    %v201 = vunpack.c.l.b16 %v63
    %v202 = vunpack.c.l.b16 %v64
    %v203 = vunpack.c.l.b16 %v65
    %v204 = vunpack.c.l.b16 %v66
    %v205 = vunpack.c.l.b16 %v67
    %v206 = vunpack.c.l.b16 %v68
    %v207 = vunpack.c.l.b16 %v69
    %v208 = vunpack.c.l.b16 %v70
    %v209 = vunpack.c.l.b16 %v71
    %v210 = vunpack.c.l.b16 %v72
    %v211 = vunpack.c.l.b16 %v73
    %v212 = vunpack.c.l.b16 %v74
    %v213 = vunpack.c.l.b16 %v75
    %v214 = vunpack.c.l.b16 %v76
    %v215 = vunpack.c.l.b16 %v77
    %v216 = vunpack.c.l.b16 %v78
    %v217 = vunpack.c.l.b16 %v79
    %v218 = vunpack.c.l.b16 %v80
    %v219 = vunpack.c.l.b16 %v81
    %v220 = vunpack.c.l.b16 %v82
    %v221 = vunpack.c.l.b16 %v83
    %v222 = vunpack.c.l.b16 %v84
    %v223 = vunpack.c.l.b16 %v85
    %v224 = vunpack.c.l.b16 %v86
    %v225 = vpack.c.b16 %v176, %v175
    %v226 = vpack.c.b16 %v178, %v177
    %v227 = vpack.c.b16 %v180, %v179
    %v228 = vpack.c.b16 %v182, %v181
    %v229 = vpack.c.b16 %v184, %v183
    %v230 = vpack.c.b16 %v186, %v185
    %v231 = vpack.c.b16 %v188, %v187
    %v232 = vpack.c.b16 %v190, %v189
    %v233 = vpack.c.b16 %v192, %v191
    %v234 = vpack.c.b16 %v194, %v193
    %v235 = vpack.c.b16 %v196, %v195
    %v236 = vpack.c.b16 %v198, %v197
    %v237 = vpack.c.b16 %v200, %v199
    %v238 = vpack.c.b16 %v202, %v201
    %v239 = vpack.c.b16 %v204, %v203
    %v240 = vpack.c.b16 %v206, %v205
    %v241 = vpack.c.b16 %v208, %v207
    %v242 = vpack.c.b16 %v210, %v209
    %v243 = vpack.c.b16 %v212, %v211
    %v244 = vpack.c.b16 %v214, %v213
    %v245 = vpack.c.b16 %v216, %v215
    %v246 = vpack.c.b16 %v218, %v217
    %v247 = vpack.c.b16 %v220, %v219
    %v248 = vpack.c.b16 %v222, %v221
    %v249 = vpack.c.b16 %v224, %v223
    %vm275 = vcmask 130048
    %v277 = vsel %vm275, %v121, 0
    %279 = vmatprep.subr.bf16.mxu0 0
    %280 = vmatpush1.bf16.msra.mxu0 %v225
    %281 = vmatprep.subr.bf16.mxu0 0
    %282 = vmatpush1.bf16.msra.mxu0 %v226
    %283 = vmatprep.subr.bf16.mxu0 0
    %284 = vmatpush1.bf16.msra.mxu0 %v227
    %285 = vmatprep.subr.bf16.mxu0 0
    %286 = vmatpush1.bf16.msra.mxu0 %v228
    %287 = vmatprep.subr.bf16.mxu0 0
    %288 = vmatpush1.bf16.msra.mxu0 %v229
    %289 = vmatprep.subr.bf16.mxu0 0
    %290 = vmatpush1.bf16.msra.mxu0 %v230
    %291 = vmatprep.subr.bf16.mxu0 0
    %292 = vmatpush1.bf16.msra.mxu0 %v231
    %293 = vmatprep.subr.bf16.mxu0 0
    %294 = vmatpush1.bf16.msra.mxu0 %v232
    %295 = vmatprep.subr.bf16.mxu0 0
    %296 = vmatpush1.bf16.msra.mxu0 %v233
    %297 = vmatprep.subr.bf16.mxu0 0
    %298 = vmatpush1.bf16.msra.mxu0 %v234
    %299 = vmatprep.subr.bf16.mxu0 0
    %300 = vmatpush1.bf16.msra.mxu0 %v235
    %301 = vmatprep.subr.bf16.mxu0 0
    %302 = vmatpush1.bf16.msra.mxu0 %v236
    %303 = vmatprep.subr.bf16.mxu0 0
    %304 = vmatpush1.bf16.msra.mxu0 %v237
    %305 = vmatprep.subr.bf16.mxu0 0
    %306 = vmatpush1.bf16.msra.mxu0 %v238
    %307 = vmatprep.subr.bf16.mxu0 0
    %308 = vmatpush1.bf16.msra.mxu0 %v239
    %309 = vmatprep.subr.bf16.mxu0 0
    %310 = vmatpush1.bf16.msra.mxu0 %v240
    %311 = vmatprep.mubr.bf16.mxu0 %v119
    %312 = vmatmul.mubr.bf16.gmra.mrb[0].mxu0 %v112
    %v313 = vpop.f32.mrb[0].mxu0
    %v314 = vadd.f32 %v96, %v313
    %v315 = vpop.f32.mrb[0].mxu0
    %v316 = vpop.f32.mrb[0].mxu0
    %v317 = vpop.f32.mrb[0].mxu0
    %318 = vdwg.mxu0
    %319 = vmatprep.subr.bf16.mxu0 0
    %320 = vmatpush1.bf16.msra.mxu0 %v241
    %321 = vmatprep.subr.bf16.mxu0 0
    %322 = vmatpush1.bf16.msra.mxu0 %v242
    %323 = vmatprep.subr.bf16.mxu0 0
    %324 = vmatpush1.bf16.msra.mxu0 %v243
    %325 = vmatprep.subr.bf16.mxu0 0
    %326 = vmatpush1.bf16.msra.mxu0 %v244
    %327 = vmatprep.subr.bf16.mxu0 0
    %328 = vmatpush1.bf16.msra.mxu0 %v245
    %329 = vmatprep.subr.bf16.mxu0 0
    %330 = vmatpush1.bf16.msra.mxu0 %v246
    %331 = vmatprep.subr.bf16.mxu0 0
    %332 = vmatpush1.bf16.msra.mxu0 %v247
    %333 = vmatprep.subr.bf16.mxu0 0
    %334 = vmatpush1.bf16.msra.mxu0 %v248
    %335 = vmatprep.subr.bf16.mxu0 0
    %336 = vmatpush1.bf16.msra.mxu0 %v249
    %337 = vmatprep.subr.bf16.mxu0 0
    %338 = vmatpush1.bf16.msra.mxu0 0
    %339 = vmatprep.subr.bf16.mxu0 0
    %340 = vmatpush1.bf16.msra.mxu0 0
    %341 = vmatprep.subr.bf16.mxu0 0
    %342 = vmatpush1.bf16.msra.mxu0 0
    %343 = vmatprep.subr.bf16.mxu0 0
    %344 = vmatpush1.bf16.msra.mxu0 0
    %345 = vmatprep.subr.bf16.mxu0 0
    %346 = vmatpush1.bf16.msra.mxu0 0
    %347 = vmatprep.subr.bf16.mxu0 0
    %348 = vmatpush1.bf16.msra.mxu0 0
    %349 = vmatprep.subr.bf16.mxu0 0
    %350 = vmatpush1.bf16.msra.mxu0 0
    %351 = vmatprep.mubr.bf16.mxu0 %v277
    %352 = vmatmul.mubr.bf16.gmra.mrb[0].mxu0 %v120
    %v353 = vpop.f32.mrb[0].mxu0
    %v354 = vadd.f32 %v314, %v353
    %v355 = vpop.f32.mrb[0].mxu0
    %v356 = vpop.f32.mrb[0].mxu0
    %v357 = vpop.f32.mrb[0].mxu0
    %358 = vdwg.mxu0
    %v360 = vrot.slane %v354, 7
    %361 = vrot.lane.b32.xlu0 %v360, 116
    %v362 = vpop.permute.xlu0 %361
    %vm364 = vcmask 1040384
    %v365 = vsel %vm364, %v354, %v362
    %v366 = vpack.c.bf16 %v365, %v365
    %v367 = vld [vmem:[%s3] sm:$0xf]
    %v368 = vld [vmem:[%s3 + $0x4] sm:$0x3]
    %v369 = vld [vmem:[%s4] sm:$0x1]
    %v371 = vlaneseq
    %v372 = vshrl.u32 %v371, 7
    %v373 = vsub.s32 0, %v372
    %v374 = vrot.slane %v369, %v373
    %v378 = vunpack.c.l.b16 %v367
    %v379 = vunpack.c.l.b16 %v368
    %v380 = vpack.c.b16 %v379, %v378
    %vm381 = vcmask 97280
    %v383 = vsel %vm381, %v366, 0
    %vm385 = vcmask 1045504
    %v387 = vsel %vm385, %v380, 0
    %389 = vmatprep.subr.bf16.mxu0 0
    %390 = vmatpush1.bf16.msra.mxu0 %v387
    %391 = vmatprep.subr.bf16.mxu0 0
    %392 = vmatpush1.bf16.msra.mxu0 0
    %393 = vmatprep.subr.bf16.mxu0 0
    %394 = vmatpush1.bf16.msra.mxu0 0
    %395 = vmatprep.subr.bf16.mxu0 0
    %396 = vmatpush1.bf16.msra.mxu0 0
    %397 = vmatprep.subr.bf16.mxu0 0
    %398 = vmatpush1.bf16.msra.mxu0 0
    %399 = vmatprep.subr.bf16.mxu0 0
    %400 = vmatpush1.bf16.msra.mxu0 0
    %401 = vmatprep.subr.bf16.mxu0 0
    %402 = vmatpush1.bf16.msra.mxu0 0
    %403 = vmatprep.subr.bf16.mxu0 0
    %404 = vmatpush1.bf16.msra.mxu0 0
    %405 = vmatprep.subr.bf16.mxu0 0
    %406 = vmatpush1.bf16.msra.mxu0 0
    %407 = vmatprep.subr.bf16.mxu0 0
    %408 = vmatpush1.bf16.msra.mxu0 0
    %409 = vmatprep.subr.bf16.mxu0 0
    %410 = vmatpush1.bf16.msra.mxu0 0
    %411 = vmatprep.subr.bf16.mxu0 0
    %412 = vmatpush1.bf16.msra.mxu0 0
    %413 = vmatprep.subr.bf16.mxu0 0
    %414 = vmatpush1.bf16.msra.mxu0 0
    %415 = vmatprep.subr.bf16.mxu0 0
    %416 = vmatpush1.bf16.msra.mxu0 0
    %417 = vmatprep.subr.bf16.mxu0 0
    %418 = vmatpush1.bf16.msra.mxu0 0
    %419 = vmatprep.subr.bf16.mxu0 0
    %420 = vmatpush1.bf16.msra.mxu0 0
    %421 = vmatprep.mubr.bf16.mxu0 0
    %422 = vmatmul.mubr.bf16.gmra.mrb[0].mxu0 %v383
    %v423 = vpop.f32.mrb[0].mxu0
    %v424 = vadd.f32 %v374, %v423
    %v425 = vpop.f32.mrb[0].mxu0
    %v426 = vpop.f32.mrb[0].mxu0
    %v427 = vpop.f32.mrb[0].mxu0
    %428 = vdwg.mxu0
    %vm429 = vcmp.gt.f32.partialorder %v424, 0.0
    %v430 = vmul.f32 %v424, 0.1
    %v431 = vsel %vm429, %v424, %v430
    %v432 = vpack.c.bf16 %v431, %v431
    %v433 = vld [vmem:[%s5] sm:$0xf]
    %v434 = vld [vmem:[%s5 + $0x4] sm:$0xf]
    %v435 = vld [vmem:[%s5 + $0x8] sm:$0xf]
    %v436 = vld [vmem:[%s5 + $0xc] sm:$0xf]
    %v437 = vld [vmem:[%s5 + $0x10] sm:$0xf]
    %v438 = vld [vmem:[%s5 + $0x14] sm:$0xf]
    %v439 = vld [vmem:[%s5 + $0x18] sm:$0xf]
    %v440 = vld [vmem:[%s5 + $0x1c] sm:$0xf]
    %v441 = vld [vmem:[%s6] sm:$0x1]
    %v443 = vlaneseq
    %v444 = vshrl.u32 %v443, 7
    %v445 = vsub.s32 0, %v444
    %v446 = vrot.slane %v441, %v445
    %v456 = vunpack.c.l.b16 %v433
    %v457 = vunpack.c.l.b16 %v434
    %v458 = vunpack.c.l.b16 %v435
    %v459 = vunpack.c.l.b16 %v436
    %v460 = vunpack.c.l.b16 %v437
    %v461 = vunpack.c.l.b16 %v438
    %v462 = vunpack.c.l.b16 %v439
    %v463 = vunpack.c.l.b16 %v440
    %v464 = vpack.c.b16 %v457, %v456
    %v465 = vpack.c.b16 %v459, %v458
    %v466 = vpack.c.b16 %v461, %v460
    %v467 = vpack.c.b16 %v463, %v462
    %vm472 = vcmask 523264
    %v474 = vsel %vm472, %v432, 0
    %476 = vmatprep.subr.bf16.mxu0 0
    %477 = vmatpush1.bf16.msra.mxu0 %v464
    %478 = vmatprep.subr.bf16.mxu0 0
    %479 = vmatpush1.bf16.msra.mxu0 %v465
    %480 = vmatprep.subr.bf16.mxu0 0
    %481 = vmatpush1.bf16.msra.mxu0 %v466
    %482 = vmatprep.subr.bf16.mxu0 0
    %483 = vmatpush1.bf16.msra.mxu0 %v467
    %484 = vmatprep.subr.bf16.mxu0 0
    %485 = vmatpush1.bf16.msra.mxu0 0
    %486 = vmatprep.subr.bf16.mxu0 0
    %487 = vmatpush1.bf16.msra.mxu0 0
    %488 = vmatprep.subr.bf16.mxu0 0
    %489 = vmatpush1.bf16.msra.mxu0 0
    %490 = vmatprep.subr.bf16.mxu0 0
    %491 = vmatpush1.bf16.msra.mxu0 0
    %492 = vmatprep.subr.bf16.mxu0 0
    %493 = vmatpush1.bf16.msra.mxu0 0
    %494 = vmatprep.subr.bf16.mxu0 0
    %495 = vmatpush1.bf16.msra.mxu0 0
    %496 = vmatprep.subr.bf16.mxu0 0
    %497 = vmatpush1.bf16.msra.mxu0 0
    %498 = vmatprep.subr.bf16.mxu0 0
    %499 = vmatpush1.bf16.msra.mxu0 0
    %500 = vmatprep.subr.bf16.mxu0 0
    %501 = vmatpush1.bf16.msra.mxu0 0
    %502 = vmatprep.subr.bf16.mxu0 0
    %503 = vmatpush1.bf16.msra.mxu0 0
    %504 = vmatprep.subr.bf16.mxu0 0
    %505 = vmatpush1.bf16.msra.mxu0 0
    %506 = vmatprep.subr.bf16.mxu0 0
    %507 = vmatpush1.bf16.msra.mxu0 0
    %508 = vmatprep.mubr.bf16.mxu0 0
    %509 = vmatmul.mubr.bf16.gmra.mrb[0].mxu0 %v474
    %v510 = vpop.f32.mrb[0].mxu0
    %v511 = vadd.f32 %v446, %v510
    %v512 = vpop.f32.mrb[0].mxu0
    %v513 = vpop.f32.mrb[0].mxu0
    %v514 = vpop.f32.mrb[0].mxu0
    %515 = vdwg.mxu0
    %vm516 = vcmp.gt.f32.partialorder %v511, 0.0
    %v517 = vmul.f32 %v511, 0.1
    %v518 = vsel %vm516, %v511, %v517
    %v519 = vpack.c.bf16 %v518, %v518
    %v520 = vld [vmem:[%s7] sm:$0xf]
    %v521 = vld [vmem:[%s7 + $0x4] sm:$0xf]
    %v522 = vld [vmem:[%s7 + $0x8] sm:$0xf]
    %v523 = vld [vmem:[%s7 + $0xc] sm:$0xf]
    %v524 = vld [vmem:[%s8] sm:$0x1]
    %v526 = vlaneseq
    %v527 = vshrl.u32 %v526, 7
    %v528 = vsub.s32 0, %v527
    %v529 = vrot.slane %v524, %v528
    %v535 = vunpack.c.l.b16 %v520
    %v536 = vunpack.c.l.b16 %v521
    %v537 = vunpack.c.l.b16 %v522
    %v538 = vunpack.c.l.b16 %v523
    %v539 = vpack.c.b16 %v536, %v535
    %v540 = vpack.c.b16 %v538, %v537
    %vm543 = vcmask 261120
    %v545 = vsel %vm543, %v519, 0
    %547 = vmatprep.subr.bf16.mxu0 0
    %548 = vmatpush1.bf16.msra.mxu0 %v539
    %549 = vmatprep.subr.bf16.mxu0 0
    %550 = vmatpush1.bf16.msra.mxu0 %v540
    %551 = vmatprep.subr.bf16.mxu0 0
    %552 = vmatpush1.bf16.msra.mxu0 0
    %553 = vmatprep.subr.bf16.mxu0 0
    %554 = vmatpush1.bf16.msra.mxu0 0
    %555 = vmatprep.subr.bf16.mxu0 0
    %556 = vmatpush1.bf16.msra.mxu0 0
    %557 = vmatprep.subr.bf16.mxu0 0
    %558 = vmatpush1.bf16.msra.mxu0 0
    %559 = vmatprep.subr.bf16.mxu0 0
    %560 = vmatpush1.bf16.msra.mxu0 0
    %561 = vmatprep.subr.bf16.mxu0 0
    %562 = vmatpush1.bf16.msra.mxu0 0
    %563 = vmatprep.subr.bf16.mxu0 0
    %564 = vmatpush1.bf16.msra.mxu0 0
    %565 = vmatprep.subr.bf16.mxu0 0
    %566 = vmatpush1.bf16.msra.mxu0 0
    %567 = vmatprep.subr.bf16.mxu0 0
    %568 = vmatpush1.bf16.msra.mxu0 0
    %569 = vmatprep.subr.bf16.mxu0 0
    %570 = vmatpush1.bf16.msra.mxu0 0
    %571 = vmatprep.subr.bf16.mxu0 0
    %572 = vmatpush1.bf16.msra.mxu0 0
    %573 = vmatprep.subr.bf16.mxu0 0
    %574 = vmatpush1.bf16.msra.mxu0 0
    %575 = vmatprep.subr.bf16.mxu0 0
    %576 = vmatpush1.bf16.msra.mxu0 0
    %577 = vmatprep.subr.bf16.mxu0 0
    %578 = vmatpush1.bf16.msra.mxu0 0
    %579 = vmatprep.mubr.bf16.mxu0 0
    %580 = vmatmul.mubr.bf16.gmra.mrb[0].mxu0 %v545
    %v581 = vpop.f32.mrb[0].mxu0
    %v582 = vadd.f32 %v529, %v581
    %v583 = vpop.f32.mrb[0].mxu0
    %v584 = vpop.f32.mrb[0].mxu0
    %v585 = vpop.f32.mrb[0].mxu0
    %586 = vdwg.mxu0
    %vm587 = vcmask 25600
    %588 = vst.msk [vmem:[#allocation3] sm:$0x3] %vm587, %v582
    // Predicated region
    $region38: #{forward.7} parent=1 // pred_check
      _
    $region39: #{forward.7} parent=1 // pred_check_branch
      %590 = sbr.rel (0) target = $region41
    $region40: #{forward.7} parent=1 // pred_region
      %s592 = ssub.s32 32, 32
      %593 = vsyncadd [#allocation4], %s592
      %s595 = sshll.u32 [#allocation3], 4
      %s596 = int_to_ptr.vmem [resolvable:$true] %s595
      %598 = dma.vmem_to_hbm [thread:$0]  %s596, 32, %s9, [#allocation4]
    $region41: #{forward.7} parent=1 // pred_fallthru
      _
    // Predicated region
    $region42: #{forward.7} parent=1 // pred_check
      _
    $region43: #{forward.7} parent=1 // pred_check_branch
      %600 = sbr.rel (0) target = $region45
    $region44: #{forward.7} parent=1 // pred_region
      %601 = dma.done [#allocation4], 32
    $region45: #{forward.7} parent=1 // pred_fallthru
      _
    %602 = vsyncpa [#allocation4], 1

</llo_original>
